<compile_context>
chip_gen: v7x
topology: tpu7x:2x2x1
jax: 0.10.0
libtpu: 0.0.40
codegen_flags: <defaults>
</compile_context>

<pallas_src>
import functools
import math

import jax
import jax.numpy as jnp
from jax import lax
from jax.experimental import pallas as pl
from jax.experimental.pallas import tpu as pltpu


# ----------------------------- Pallas kernel --------------------------------
def _resblockd_kernel(H, W, x_ref, w1_ref, b1_ref, w2_ref, b2_ref, o_ref):
    # x_ref  : (B, C, L)  with L = H*W   (flat NCHW; lanes = spatial, lane-dense)
    # w*_ref : (9, C, C)  tap-major weights, w[t=ky*3+kx, cout, cin]
    # b*_ref : (C, 1)     f32
    # o_ref  : (B, C, L)
    B, C, L = x_ref.shape
    BL = B * L
    neg_slope = 0.01  # nn.LeakyReLU default
    sdtype = x_ref.dtype

    # ---- fold batch into the lane axis: (B, C, L) -> (C, B*L) ---------------
    # Each per-image slice is L lanes (a multiple of 128 for typical shapes), so the
    # concat / final split are lane-aligned vreg moves, not masked shuffles.
    x = x_ref[...]
    if B > 1:
        xcat = jnp.concatenate([x[b] for b in range(B)], axis=-1)
    else:
        xcat = x[0]

    # ---- per-pixel (h, w) coordinates in the folded flat layout -------------
    # Built once per grid step from a lane iota; power-of-two fast path avoids
    # vector integer div/rem.
    g = lax.broadcasted_iota(jnp.int32, (1, BL), 1)
    if W & (W - 1) == 0:
        wpos = jnp.bitwise_and(g, W - 1)
        row = jnp.right_shift(g, W.bit_length() - 1)
    else:  # TODO(synk): non-power-of-two W falls back to vector div/rem.
        wpos = g % W
        row = g // W
    hpos = jnp.bitwise_and(row, H - 1) if H & (H - 1) == 0 else row % H

    h_ok = {-1: hpos >= 1, 0: None, 1: hpos <= H - 2}
    w_ok = {-1: wpos >= 1, 0: None, 1: wpos <= W - 2}

    def shift_lanes(v, d):
        # y[..., i] = v[..., i + d], zero-filled at the array ends (static lane shift).
        if d == 0:
            return v
        z = jnp.zeros(v.shape[:-1] + (abs(d),), v.dtype)
        if d > 0:
            return jnp.concatenate([v[..., d:], z], axis=-1)
        return jnp.concatenate([z, v[..., :BL + d]], axis=-1)

    def conv3x3(v, w_ref_, b_ref_):
        # Shift-and-accumulate: 9 taps, each a (C, C) @ (C, B*L) MXU dot into f32.
        acc = jnp.zeros((C, BL), jnp.float32)
        for t, (oy, ox) in enumerate(
                (ky - 1, kx - 1) for ky in range(3) for kx in range(3)):
            xs = shift_lanes(v, oy * W + ox)
            mh, mw = h_ok[oy], w_ok[ox]
            m = mh if mw is None else (mw if mh is None else jnp.logical_and(mh, mw))
            if m is not None:  # zero out-of-image taps (replaces the padded halo)
                xs = jnp.where(m, xs, jnp.zeros((), xs.dtype))
            acc = acc + jnp.dot(w_ref_[t], xs, preferred_element_type=jnp.float32)
        return acc + b_ref_[...].astype(jnp.float32)   # bias (C,1) broadcast over lanes

    # ---- conv1 + LeakyReLU (f32) --------------------------------------------
    h1 = conv3x3(xcat, w1_ref, b1_ref)
    h1 = jnp.where(h1 > 0, h1, neg_slope * h1)

    # ---- conv2 + residual add (f32) -----------------------------------------
    h2 = conv3x3(h1.astype(sdtype), w2_ref, b2_ref)
    out = h2 + xcat.astype(jnp.float32)

    # Lane-aligned per-image stores (offsets are multiples of L).
    for b in range(B):
        o_ref[b] = out[:, b * L:(b + 1) * L].astype(o_ref.dtype)


def _vmem_limit_bytes(B, C, L, itemsize):
    act_blk = B * C * L * itemsize                        # one activation block
    weights = 2 * 9 * C * C * itemsize + 2 * C * 4        # both convs + f32 biases
    transient = 16 * C * B * L * 4                        # shifts / masks / f32 accumulators
    est = 2 * (2 * act_blk) + 2 * weights + transient     # double-buffered in + out blocks
    # ~25% headroom below v7x's 64 MiB physical VMEM; no artificial 32 MiB floor
    # for tiny shapes (leave room for Mosaic internal scratch + pipeline buffers).
    return int(min(48 * 1024 * 1024, max(8 * 1024 * 1024, 4 * est)))


def resblockd_pallas(x_nchw, w1_taps, b1, w2_taps, b2, *,
                     storage_dtype=None, images_per_step=None):
    """x_nchw: (N, C, H, W) like PyTorch; w*_taps: (9, C, C); b*: (C,). Returns NCHW."""
    N, C, H, W = x_nchw.shape
    L = H * W
    if storage_dtype is None:
        storage_dtype = x_nchw.dtype
    if images_per_step is None:
        images_per_step = 2 if N % 2 == 0 else 1
    B = images_per_step
    assert N % B == 0, "images_per_step must divide N"

    # Free reshape (contiguous) — no HBM transpose anywhere in this wrapper.
    x_flat = x_nchw.reshape(N, C, L).astype(storage_dtype)
    w1c = w1_taps.astype(storage_dtype)
    w2c = w2_taps.astype(storage_dtype)
    b1c = b1.reshape(C, 1).astype(jnp.float32)
    b2c = b2.reshape(C, 1).astype(jnp.float32)

    itemsize = jnp.dtype(storage_dtype).itemsize
    cost = pl.CostEstimate(
        flops=2 * 2 * 9 * C * C * L * N,                  # 2 convs, 2 flops/MAC
        transcendentals=0,
        bytes_accessed=(2 * N * C * L + 2 * 9 * C * C) * itemsize + 2 * C * 4)

    # TODO(synk): for production H*W*C that does not fit VMEM, add an H-band grid
    # axis (1-row halo re-read) sized for v7x's 64 MiB, and for C >= 128 switch to
    # channel-dense (K = C) contractions so the MXU K/N dims reach native size.
    out_flat = pl.pallas_call(
        functools.partial(_resblockd_kernel, H, W),
        out_shape=jax.ShapeDtypeStruct((N, C, L), storage_dtype),
        grid_spec=pltpu.PrefetchScalarGridSpec(
            num_scalar_prefetch=0,
            grid=(N // B,),
            in_specs=[
                pl.BlockSpec((B, C, L), lambda n: (n, 0, 0)),
                pl.BlockSpec((9, C, C), lambda n: (0, 0, 0)),
                pl.BlockSpec((C, 1), lambda n: (0, 0)),
                pl.BlockSpec((9, C, C), lambda n: (0, 0, 0)),
                pl.BlockSpec((C, 1), lambda n: (0, 0)),
            ],
            out_specs=pl.BlockSpec((B, C, L), lambda n: (n, 0, 0)),
        ),
        compiler_params=pltpu.CompilerParams(
            dimension_semantics=("parallel",),
            vmem_limit_bytes=_vmem_limit_bytes(B, C, L, itemsize),
        ),
        cost_estimate=cost,
    )(x_flat, w1c, b1c, w2c, b2c)

    return out_flat.reshape(N, C, H, W)                   # free reshape back to NCHW


# --------------------------- parameter setup (glue) --------------------------
def _l2norm(v, eps=1e-12):
    return v / (jnp.linalg.norm(v) + eps)


def spectral_normalize(w, u, n_iter=1):
    """PyTorch nn.utils.spectral_norm semantics: weight / sigma, one power iteration
    per forward on the (Cout, Cin*kh*kw) matrix."""
    cout = w.shape[0]
    w_mat = w.reshape(cout, -1)
    v = None
    for _ in range(n_iter):
        v = _l2norm(w_mat.T @ u)
        u = _l2norm(w_mat @ v)
    sigma = jnp.dot(u, w_mat @ v)
    return w / sigma


def init_params(key, c):
    """Deterministic synthetic init mirroring ResBlockD.__init__:
    _weights_init divides conv weights by sqrt(prod(shape)); biases are zeroed."""
    # TODO(synk): PyTorch spectral_norm keeps a persistent running `u`; a fixed
    # synthetic u is used here (host-side init glue, not part of the kernel).
    k1, k2, k3, k4 = jax.random.split(key, 4)
    scale = 1.0 / math.sqrt(c * c * 3 * 3)
    w1_orig = jax.random.normal(k1, (c, c, 3, 3), jnp.float32) * scale  # (Cout,Cin,3,3)
    w2_orig = jax.random.normal(k2, (c, c, 3, 3), jnp.float32) * scale
    u1 = _l2norm(jax.random.normal(k3, (c,), jnp.float32))
    u2 = _l2norm(jax.random.normal(k4, (c,), jnp.float32))
    w1 = spectral_normalize(w1_orig, u1)
    w2 = spectral_normalize(w2_orig, u2)
    b1 = jnp.zeros((c,), jnp.float32)
    b2 = jnp.zeros((c,), jnp.float32)
    return w1, b1, w2, b2


def to_taps(w_oihw):
    """(Cout, Cin, 3, 3) -> (9, Cout, Cin); tap index t = ky*3 + kx, matching the
    in-kernel tap enumeration order."""
    c = w_oihw.shape[0]
    return jnp.transpose(w_oihw, (2, 3, 0, 1)).reshape(9, c, c)


# ------------------------------ pure-JAX reference ---------------------------
def ref_forward_nchw(x, w1_oihw, b1, w2_oihw, b2):
    dn = lax.conv_dimension_numbers(x.shape, w1_oihw.shape, ('NCHW', 'OIHW', 'NCHW'))
    out = lax.conv_general_dilated(x, w1_oihw, (1, 1), 'SAME', dimension_numbers=dn)
    out = out + b1.reshape(1, -1, 1, 1)
    out = jnp.where(out > 0, out, 0.01 * out)
    out = lax.conv_general_dilated(out, w2_oihw, (1, 1), 'SAME', dimension_numbers=dn)
    out = out + b2.reshape(1, -1, 1, 1)
    return out + x


# ------------------------------------ main ------------------------------------
if __name__ == "__main__":
    N, C, H, W = 2, 4, 16, 16
    key = jax.random.PRNGKey(0)
    kx_, kp = jax.random.split(key)

    x = jax.random.normal(kx_, (N, C, H, W), jnp.float32)      # NCHW like PyTorch
    w1, b1, w2, b2 = init_params(kp, C)
    ref = ref_forward_nchw(x, w1, b1, w2, b2)

    # f32 storage path (strict numerical check).
    out = resblockd_pallas(x, to_taps(w1), b1, to_taps(w2), b2)
    out = jax.block_until_ready(out)
    assert out.shape == (N, C, H, W)
    assert jnp.allclose(out, ref, atol=1e-4, rtol=1e-4), (
        float(jnp.max(jnp.abs(out - ref))))

    # bf16 storage / f32 accumulation path (perf configuration; looser tolerance).
    out_bf16 = resblockd_pallas(x, to_taps(w1), b1, to_taps(w2), b2,
                                storage_dtype=jnp.bfloat16)
    out_bf16 = jax.block_until_ready(out_bf16).astype(jnp.float32)
    assert jnp.allclose(out_bf16, ref, atol=1e-1, rtol=1e-1), (
        float(jnp.max(jnp.abs(out_bf16 - ref))))

    print("KERNEL_OK")
</pallas_src>

<mosaic_0001>
module attributes {stable_mosaic.version = 11 : i64} {
  func.func @_resblockd_kernel(%arg0: i32, %arg1: memref<2x4x256xf32, #tpu.memory_space<vmem>>, %arg2: memref<9x4x4xf32, #tpu.memory_space<vmem>>, %arg3: memref<4x1xf32, #tpu.memory_space<vmem>>, %arg4: memref<9x4x4xf32, #tpu.memory_space<vmem>>, %arg5: memref<4x1xf32, #tpu.memory_space<vmem>>, %arg6: memref<2x4x256xf32, #tpu.memory_space<vmem>>) attributes {dimension_semantics = [#tpu.dimension_semantics<parallel>], iteration_bounds = array<i64: 1>, scalar_prefetch = 0 : i64, scratch_operands = 0 : i64, tpu.core_type = #tpu.core_type<tc>, window_params = [{transform_indices = @transform_0, window_bounds = array<i64: 2, 4, 256>}, {pipeline_mode = #tpu.pipeline_mode<synchronous>, transform_indices = @transform_1, window_bounds = array<i64: 9, 4, 4>}, {pipeline_mode = #tpu.pipeline_mode<synchronous>, transform_indices = @transform_2, window_bounds = array<i64: 4, 1>}, {pipeline_mode = #tpu.pipeline_mode<synchronous>, transform_indices = @transform_3, window_bounds = array<i64: 9, 4, 4>}, {pipeline_mode = #tpu.pipeline_mode<synchronous>, transform_indices = @transform_4, window_bounds = array<i64: 4, 1>}, {transform_indices = @transform_5, window_bounds = array<i64: 2, 4, 256>}]} {
    %c0 = arith.constant 0 : index
    %c0_0 = arith.constant 0 : index
    %c0_1 = arith.constant 0 : index
    %0 = vector.load %arg1[%c0, %c0_0, %c0_1] : memref<2x4x256xf32, #tpu.memory_space<vmem>>, vector<2x4x256xf32>
    %1 = vector.extract_strided_slice %0 {offsets = [0, 0, 0], sizes = [1, 4, 256], strides = [1, 1, 1]} : vector<2x4x256xf32> to vector<1x4x256xf32>
    %2 = vector.shape_cast %1 : vector<1x4x256xf32> to vector<4x256xf32>
    %3 = vector.extract_strided_slice %0 {offsets = [1, 0, 0], sizes = [1, 4, 256], strides = [1, 1, 1]} : vector<2x4x256xf32> to vector<1x4x256xf32>
    %4 = vector.shape_cast %3 : vector<1x4x256xf32> to vector<4x256xf32>
    %5 = tpu.concatenate %2, %4 in 1 : vector<4x256xf32>, vector<4x256xf32> -> vector<4x512xf32>
    %6 = tpu.iota {dimensions = array<i32: 1>} : vector<1x512xi32>
    %c15_i32 = arith.constant 15 : i32
    %7 = vector.broadcast %c15_i32 : i32 to vector<1x512xi32>
    %8 = arith.andi %6, %7 : vector<1x512xi32>
    %c4_i32 = arith.constant 4 : i32
    %9 = vector.broadcast %c4_i32 : i32 to vector<1x512xi32>
    %10 = arith.shrsi %6, %9 : vector<1x512xi32>
    %c15_i32_2 = arith.constant 15 : i32
    %11 = vector.broadcast %c15_i32_2 : i32 to vector<1x512xi32>
    %12 = arith.andi %10, %11 : vector<1x512xi32>
    %c1_i32 = arith.constant 1 : i32
    %13 = vector.broadcast %c1_i32 : i32 to vector<1x512xi32>
    %14 = arith.cmpi sge, %12, %13 : vector<1x512xi32>
    %c14_i32 = arith.constant 14 : i32
    %15 = vector.broadcast %c14_i32 : i32 to vector<1x512xi32>
    %16 = arith.cmpi sle, %12, %15 : vector<1x512xi32>
    %c1_i32_3 = arith.constant 1 : i32
    %17 = vector.broadcast %c1_i32_3 : i32 to vector<1x512xi32>
    %18 = arith.cmpi sge, %8, %17 : vector<1x512xi32>
    %c14_i32_4 = arith.constant 14 : i32
    %19 = vector.broadcast %c14_i32_4 : i32 to vector<1x512xi32>
    %20 = arith.cmpi sle, %8, %19 : vector<1x512xi32>
    %cst = arith.constant 0.000000e+00 : f32
    %21 = vector.broadcast %cst : f32 to vector<4x512xf32>
    %cst_5 = arith.constant 0.000000e+00 : f32
    %22 = vector.broadcast %cst_5 : f32 to vector<4x17xf32>
    %23 = vector.extract_strided_slice %5 {offsets = [0, 0], sizes = [4, 495], strides = [1, 1]} : vector<4x512xf32> to vector<4x495xf32>
    %24 = tpu.concatenate %22, %23 in 1 : vector<4x17xf32>, vector<4x495xf32> -> vector<4x512xf32>
    %25 = arith.andi %14, %18 : vector<1x512xi1>
    %cst_6 = arith.constant 0.000000e+00 : f32
    %26 = vector.shape_cast %25 : vector<1x512xi1> to vector<1x512xi1>
    %27 = vector.broadcast %26 : vector<1x512xi1> to vector<4x512xi1>
    %28 = vector.broadcast %cst_6 : f32 to vector<4x512xf32>
    %29 = arith.select %27, %24, %28 : vector<4x512xi1>, vector<4x512xf32>
    %c0_7 = arith.constant 0 : index
    %c0_8 = arith.constant 0 : index
    %c0_9 = arith.constant 0 : index
    %30 = vector.load %arg2[%c0_7, %c0_8, %c0_9] : memref<9x4x4xf32, #tpu.memory_space<vmem>>, vector<1x4x4xf32>
    %31 = vector.shape_cast %30 : vector<1x4x4xf32> to vector<4x4xf32>
    %cst_10 = arith.constant dense<0.000000e+00> : vector<4x512xf32>
    %32 = tpu.matmul %31, %29, %cst_10 {dimension_numbers = #tpu.dot_dimension_numbers<[1], [0], [0], [1], [0, 0, 1, 1], [], []>} : vector<4x4xf32>, vector<4x512xf32>, vector<4x512xf32> -> vector<4x512xf32>
    %33 = arith.addf %21, %32 : vector<4x512xf32>
    %cst_11 = arith.constant 0.000000e+00 : f32
    %34 = vector.broadcast %cst_11 : f32 to vector<4x16xf32>
    %35 = vector.extract_strided_slice %5 {offsets = [0, 0], sizes = [4, 496], strides = [1, 1]} : vector<4x512xf32> to vector<4x496xf32>
    %36 = tpu.concatenate %34, %35 in 1 : vector<4x16xf32>, vector<4x496xf32> -> vector<4x512xf32>
    %cst_12 = arith.constant 0.000000e+00 : f32
    %37 = vector.shape_cast %14 : vector<1x512xi1> to vector<1x512xi1>
    %38 = vector.broadcast %37 : vector<1x512xi1> to vector<4x512xi1>
    %39 = vector.broadcast %cst_12 : f32 to vector<4x512xf32>
    %40 = arith.select %38, %36, %39 : vector<4x512xi1>, vector<4x512xf32>
    %c1 = arith.constant 1 : index
    %c0_13 = arith.constant 0 : index
    %c0_14 = arith.constant 0 : index
    %41 = vector.load %arg2[%c1, %c0_13, %c0_14] : memref<9x4x4xf32, #tpu.memory_space<vmem>>, vector<1x4x4xf32>
    %42 = vector.shape_cast %41 : vector<1x4x4xf32> to vector<4x4xf32>
    %cst_15 = arith.constant dense<0.000000e+00> : vector<4x512xf32>
    %43 = tpu.matmul %42, %40, %cst_15 {dimension_numbers = #tpu.dot_dimension_numbers<[1], [0], [0], [1], [0, 0, 1, 1], [], []>} : vector<4x4xf32>, vector<4x512xf32>, vector<4x512xf32> -> vector<4x512xf32>
    %44 = arith.addf %33, %43 : vector<4x512xf32>
    %cst_16 = arith.constant 0.000000e+00 : f32
    %45 = vector.broadcast %cst_16 : f32 to vector<4x15xf32>
    %46 = vector.extract_strided_slice %5 {offsets = [0, 0], sizes = [4, 497], strides = [1, 1]} : vector<4x512xf32> to vector<4x497xf32>
    %47 = tpu.concatenate %45, %46 in 1 : vector<4x15xf32>, vector<4x497xf32> -> vector<4x512xf32>
    %48 = arith.andi %14, %20 : vector<1x512xi1>
    %cst_17 = arith.constant 0.000000e+00 : f32
    %49 = vector.shape_cast %48 : vector<1x512xi1> to vector<1x512xi1>
    %50 = vector.broadcast %49 : vector<1x512xi1> to vector<4x512xi1>
    %51 = vector.broadcast %cst_17 : f32 to vector<4x512xf32>
    %52 = arith.select %50, %47, %51 : vector<4x512xi1>, vector<4x512xf32>
    %c2 = arith.constant 2 : index
    %c0_18 = arith.constant 0 : index
    %c0_19 = arith.constant 0 : index
    %53 = vector.load %arg2[%c2, %c0_18, %c0_19] : memref<9x4x4xf32, #tpu.memory_space<vmem>>, vector<1x4x4xf32>
    %54 = vector.shape_cast %53 : vector<1x4x4xf32> to vector<4x4xf32>
    %cst_20 = arith.constant dense<0.000000e+00> : vector<4x512xf32>
    %55 = tpu.matmul %54, %52, %cst_20 {dimension_numbers = #tpu.dot_dimension_numbers<[1], [0], [0], [1], [0, 0, 1, 1], [], []>} : vector<4x4xf32>, vector<4x512xf32>, vector<4x512xf32> -> vector<4x512xf32>
    %56 = arith.addf %44, %55 : vector<4x512xf32>
    %cst_21 = arith.constant 0.000000e+00 : f32
    %57 = vector.broadcast %cst_21 : f32 to vector<4x1xf32>
    %58 = vector.extract_strided_slice %5 {offsets = [0, 0], sizes = [4, 511], strides = [1, 1]} : vector<4x512xf32> to vector<4x511xf32>
    %59 = tpu.concatenate %57, %58 in 1 : vector<4x1xf32>, vector<4x511xf32> -> vector<4x512xf32>
    %cst_22 = arith.constant 0.000000e+00 : f32
    %60 = vector.shape_cast %18 : vector<1x512xi1> to vector<1x512xi1>
    %61 = vector.broadcast %60 : vector<1x512xi1> to vector<4x512xi1>
    %62 = vector.broadcast %cst_22 : f32 to vector<4x512xf32>
    %63 = arith.select %61, %59, %62 : vector<4x512xi1>, vector<4x512xf32>
    %c3 = arith.constant 3 : index
    %c0_23 = arith.constant 0 : index
    %c0_24 = arith.constant 0 : index
    %64 = vector.load %arg2[%c3, %c0_23, %c0_24] : memref<9x4x4xf32, #tpu.memory_space<vmem>>, vector<1x4x4xf32>
    %65 = vector.shape_cast %64 : vector<1x4x4xf32> to vector<4x4xf32>
    %cst_25 = arith.constant dense<0.000000e+00> : vector<4x512xf32>
    %66 = tpu.matmul %65, %63, %cst_25 {dimension_numbers = #tpu.dot_dimension_numbers<[1], [0], [0], [1], [0, 0, 1, 1], [], []>} : vector<4x4xf32>, vector<4x512xf32>, vector<4x512xf32> -> vector<4x512xf32>
    %67 = arith.addf %56, %66 : vector<4x512xf32>
    %c4 = arith.constant 4 : index
    %c0_26 = arith.constant 0 : index
    %c0_27 = arith.constant 0 : index
    %68 = vector.load %arg2[%c4, %c0_26, %c0_27] : memref<9x4x4xf32, #tpu.memory_space<vmem>>, vector<1x4x4xf32>
    %69 = vector.shape_cast %68 : vector<1x4x4xf32> to vector<4x4xf32>
    %cst_28 = arith.constant dense<0.000000e+00> : vector<4x512xf32>
    %70 = tpu.matmul %69, %5, %cst_28 {dimension_numbers = #tpu.dot_dimension_numbers<[1], [0], [0], [1], [0, 0, 1, 1], [], []>} : vector<4x4xf32>, vector<4x512xf32>, vector<4x512xf32> -> vector<4x512xf32>
    %71 = arith.addf %67, %70 : vector<4x512xf32>
    %cst_29 = arith.constant 0.000000e+00 : f32
    %72 = vector.broadcast %cst_29 : f32 to vector<4x1xf32>
    %73 = vector.extract_strided_slice %5 {offsets = [0, 1], sizes = [4, 511], strides = [1, 1]} : vector<4x512xf32> to vector<4x511xf32>
    %74 = tpu.concatenate %73, %72 in 1 : vector<4x511xf32>, vector<4x1xf32> -> vector<4x512xf32>
    %cst_30 = arith.constant 0.000000e+00 : f32
    %75 = vector.shape_cast %20 : vector<1x512xi1> to vector<1x512xi1>
    %76 = vector.broadcast %75 : vector<1x512xi1> to vector<4x512xi1>
    %77 = vector.broadcast %cst_30 : f32 to vector<4x512xf32>
    %78 = arith.select %76, %74, %77 : vector<4x512xi1>, vector<4x512xf32>
    %c5 = arith.constant 5 : index
    %c0_31 = arith.constant 0 : index
    %c0_32 = arith.constant 0 : index
    %79 = vector.load %arg2[%c5, %c0_31, %c0_32] : memref<9x4x4xf32, #tpu.memory_space<vmem>>, vector<1x4x4xf32>
    %80 = vector.shape_cast %79 : vector<1x4x4xf32> to vector<4x4xf32>
    %cst_33 = arith.constant dense<0.000000e+00> : vector<4x512xf32>
    %81 = tpu.matmul %80, %78, %cst_33 {dimension_numbers = #tpu.dot_dimension_numbers<[1], [0], [0], [1], [0, 0, 1, 1], [], []>} : vector<4x4xf32>, vector<4x512xf32>, vector<4x512xf32> -> vector<4x512xf32>
    %82 = arith.addf %71, %81 : vector<4x512xf32>
    %cst_34 = arith.constant 0.000000e+00 : f32
    %83 = vector.broadcast %cst_34 : f32 to vector<4x15xf32>
    %84 = vector.extract_strided_slice %5 {offsets = [0, 15], sizes = [4, 497], strides = [1, 1]} : vector<4x512xf32> to vector<4x497xf32>
    %85 = tpu.concatenate %84, %83 in 1 : vector<4x497xf32>, vector<4x15xf32> -> vector<4x512xf32>
    %86 = arith.andi %16, %18 : vector<1x512xi1>
    %cst_35 = arith.constant 0.000000e+00 : f32
    %87 = vector.shape_cast %86 : vector<1x512xi1> to vector<1x512xi1>
    %88 = vector.broadcast %87 : vector<1x512xi1> to vector<4x512xi1>
    %89 = vector.broadcast %cst_35 : f32 to vector<4x512xf32>
    %90 = arith.select %88, %85, %89 : vector<4x512xi1>, vector<4x512xf32>
    %c6 = arith.constant 6 : index
    %c0_36 = arith.constant 0 : index
    %c0_37 = arith.constant 0 : index
    %91 = vector.load %arg2[%c6, %c0_36, %c0_37] : memref<9x4x4xf32, #tpu.memory_space<vmem>>, vector<1x4x4xf32>
    %92 = vector.shape_cast %91 : vector<1x4x4xf32> to vector<4x4xf32>
    %cst_38 = arith.constant dense<0.000000e+00> : vector<4x512xf32>
    %93 = tpu.matmul %92, %90, %cst_38 {dimension_numbers = #tpu.dot_dimension_numbers<[1], [0], [0], [1], [0, 0, 1, 1], [], []>} : vector<4x4xf32>, vector<4x512xf32>, vector<4x512xf32> -> vector<4x512xf32>
    %94 = arith.addf %82, %93 : vector<4x512xf32>
    %cst_39 = arith.constant 0.000000e+00 : f32
    %95 = vector.broadcast %cst_39 : f32 to vector<4x16xf32>
    %96 = vector.extract_strided_slice %5 {offsets = [0, 16], sizes = [4, 496], strides = [1, 1]} : vector<4x512xf32> to vector<4x496xf32>
    %97 = tpu.concatenate %96, %95 in 1 : vector<4x496xf32>, vector<4x16xf32> -> vector<4x512xf32>
    %cst_40 = arith.constant 0.000000e+00 : f32
    %98 = vector.shape_cast %16 : vector<1x512xi1> to vector<1x512xi1>
    %99 = vector.broadcast %98 : vector<1x512xi1> to vector<4x512xi1>
    %100 = vector.broadcast %cst_40 : f32 to vector<4x512xf32>
    %101 = arith.select %99, %97, %100 : vector<4x512xi1>, vector<4x512xf32>
    %c7 = arith.constant 7 : index
    %c0_41 = arith.constant 0 : index
    %c0_42 = arith.constant 0 : index
    %102 = vector.load %arg2[%c7, %c0_41, %c0_42] : memref<9x4x4xf32, #tpu.memory_space<vmem>>, vector<1x4x4xf32>
    %103 = vector.shape_cast %102 : vector<1x4x4xf32> to vector<4x4xf32>
    %cst_43 = arith.constant dense<0.000000e+00> : vector<4x512xf32>
    %104 = tpu.matmul %103, %101, %cst_43 {dimension_numbers = #tpu.dot_dimension_numbers<[1], [0], [0], [1], [0, 0, 1, 1], [], []>} : vector<4x4xf32>, vector<4x512xf32>, vector<4x512xf32> -> vector<4x512xf32>
    %105 = arith.addf %94, %104 : vector<4x512xf32>
    %cst_44 = arith.constant 0.000000e+00 : f32
    %106 = vector.broadcast %cst_44 : f32 to vector<4x17xf32>
    %107 = vector.extract_strided_slice %5 {offsets = [0, 17], sizes = [4, 495], strides = [1, 1]} : vector<4x512xf32> to vector<4x495xf32>
    %108 = tpu.concatenate %107, %106 in 1 : vector<4x495xf32>, vector<4x17xf32> -> vector<4x512xf32>
    %109 = arith.andi %16, %20 : vector<1x512xi1>
    %cst_45 = arith.constant 0.000000e+00 : f32
    %110 = vector.shape_cast %109 : vector<1x512xi1> to vector<1x512xi1>
    %111 = vector.broadcast %110 : vector<1x512xi1> to vector<4x512xi1>
    %112 = vector.broadcast %cst_45 : f32 to vector<4x512xf32>
    %113 = arith.select %111, %108, %112 : vector<4x512xi1>, vector<4x512xf32>
    %c8 = arith.constant 8 : index
    %c0_46 = arith.constant 0 : index
    %c0_47 = arith.constant 0 : index
    %114 = vector.load %arg2[%c8, %c0_46, %c0_47] : memref<9x4x4xf32, #tpu.memory_space<vmem>>, vector<1x4x4xf32>
    %115 = vector.shape_cast %114 : vector<1x4x4xf32> to vector<4x4xf32>
    %cst_48 = arith.constant dense<0.000000e+00> : vector<4x512xf32>
    %116 = tpu.matmul %115, %113, %cst_48 {dimension_numbers = #tpu.dot_dimension_numbers<[1], [0], [0], [1], [0, 0, 1, 1], [], []>} : vector<4x4xf32>, vector<4x512xf32>, vector<4x512xf32> -> vector<4x512xf32>
    %117 = arith.addf %105, %116 : vector<4x512xf32>
    %c0_49 = arith.constant 0 : index
    %c0_50 = arith.constant 0 : index
    %118 = vector.load %arg3[%c0_49, %c0_50] : memref<4x1xf32, #tpu.memory_space<vmem>>, vector<4x1xf32>
    %119 = vector.broadcast %118 : vector<4x1xf32> to vector<4x512xf32>
    %120 = arith.addf %117, %119 : vector<4x512xf32>
    %cst_51 = arith.constant 0.000000e+00 : f32
    %121 = vector.broadcast %cst_51 : f32 to vector<4x512xf32>
    %122 = arith.cmpf ogt, %120, %121 : vector<4x512xf32>
    %cst_52 = arith.constant 0.00999999977 : f32
    %123 = vector.broadcast %cst_52 : f32 to vector<4x512xf32>
    %124 = arith.mulf %123, %120 : vector<4x512xf32>
    %125 = arith.select %122, %120, %124 : vector<4x512xi1>, vector<4x512xf32>
    %cst_53 = arith.constant 0.000000e+00 : f32
    %126 = vector.broadcast %cst_53 : f32 to vector<4x512xf32>
    %cst_54 = arith.constant 0.000000e+00 : f32
    %127 = vector.broadcast %cst_54 : f32 to vector<4x17xf32>
    %128 = vector.extract_strided_slice %125 {offsets = [0, 0], sizes = [4, 495], strides = [1, 1]} : vector<4x512xf32> to vector<4x495xf32>
    %129 = tpu.concatenate %127, %128 in 1 : vector<4x17xf32>, vector<4x495xf32> -> vector<4x512xf32>
    %130 = arith.andi %14, %18 : vector<1x512xi1>
    %cst_55 = arith.constant 0.000000e+00 : f32
    %131 = vector.shape_cast %130 : vector<1x512xi1> to vector<1x512xi1>
    %132 = vector.broadcast %131 : vector<1x512xi1> to vector<4x512xi1>
    %133 = vector.broadcast %cst_55 : f32 to vector<4x512xf32>
    %134 = arith.select %132, %129, %133 : vector<4x512xi1>, vector<4x512xf32>
    %c0_56 = arith.constant 0 : index
    %c0_57 = arith.constant 0 : index
    %c0_58 = arith.constant 0 : index
    %135 = vector.load %arg4[%c0_56, %c0_57, %c0_58] : memref<9x4x4xf32, #tpu.memory_space<vmem>>, vector<1x4x4xf32>
    %136 = vector.shape_cast %135 : vector<1x4x4xf32> to vector<4x4xf32>
    %cst_59 = arith.constant dense<0.000000e+00> : vector<4x512xf32>
    %137 = tpu.matmul %136, %134, %cst_59 {dimension_numbers = #tpu.dot_dimension_numbers<[1], [0], [0], [1], [0, 0, 1, 1], [], []>} : vector<4x4xf32>, vector<4x512xf32>, vector<4x512xf32> -> vector<4x512xf32>
    %138 = arith.addf %126, %137 : vector<4x512xf32>
    %cst_60 = arith.constant 0.000000e+00 : f32
    %139 = vector.broadcast %cst_60 : f32 to vector<4x16xf32>
    %140 = vector.extract_strided_slice %125 {offsets = [0, 0], sizes = [4, 496], strides = [1, 1]} : vector<4x512xf32> to vector<4x496xf32>
    %141 = tpu.concatenate %139, %140 in 1 : vector<4x16xf32>, vector<4x496xf32> -> vector<4x512xf32>
    %cst_61 = arith.constant 0.000000e+00 : f32
    %142 = vector.shape_cast %14 : vector<1x512xi1> to vector<1x512xi1>
    %143 = vector.broadcast %142 : vector<1x512xi1> to vector<4x512xi1>
    %144 = vector.broadcast %cst_61 : f32 to vector<4x512xf32>
    %145 = arith.select %143, %141, %144 : vector<4x512xi1>, vector<4x512xf32>
    %c1_62 = arith.constant 1 : index
    %c0_63 = arith.constant 0 : index
    %c0_64 = arith.constant 0 : index
    %146 = vector.load %arg4[%c1_62, %c0_63, %c0_64] : memref<9x4x4xf32, #tpu.memory_space<vmem>>, vector<1x4x4xf32>
    %147 = vector.shape_cast %146 : vector<1x4x4xf32> to vector<4x4xf32>
    %cst_65 = arith.constant dense<0.000000e+00> : vector<4x512xf32>
    %148 = tpu.matmul %147, %145, %cst_65 {dimension_numbers = #tpu.dot_dimension_numbers<[1], [0], [0], [1], [0, 0, 1, 1], [], []>} : vector<4x4xf32>, vector<4x512xf32>, vector<4x512xf32> -> vector<4x512xf32>
    %149 = arith.addf %138, %148 : vector<4x512xf32>
    %cst_66 = arith.constant 0.000000e+00 : f32
    %150 = vector.broadcast %cst_66 : f32 to vector<4x15xf32>
    %151 = vector.extract_strided_slice %125 {offsets = [0, 0], sizes = [4, 497], strides = [1, 1]} : vector<4x512xf32> to vector<4x497xf32>
    %152 = tpu.concatenate %150, %151 in 1 : vector<4x15xf32>, vector<4x497xf32> -> vector<4x512xf32>
    %153 = arith.andi %14, %20 : vector<1x512xi1>
    %cst_67 = arith.constant 0.000000e+00 : f32
    %154 = vector.shape_cast %153 : vector<1x512xi1> to vector<1x512xi1>
    %155 = vector.broadcast %154 : vector<1x512xi1> to vector<4x512xi1>
    %156 = vector.broadcast %cst_67 : f32 to vector<4x512xf32>
    %157 = arith.select %155, %152, %156 : vector<4x512xi1>, vector<4x512xf32>
    %c2_68 = arith.constant 2 : index
    %c0_69 = arith.constant 0 : index
    %c0_70 = arith.constant 0 : index
    %158 = vector.load %arg4[%c2_68, %c0_69, %c0_70] : memref<9x4x4xf32, #tpu.memory_space<vmem>>, vector<1x4x4xf32>
    %159 = vector.shape_cast %158 : vector<1x4x4xf32> to vector<4x4xf32>
    %cst_71 = arith.constant dense<0.000000e+00> : vector<4x512xf32>
    %160 = tpu.matmul %159, %157, %cst_71 {dimension_numbers = #tpu.dot_dimension_numbers<[1], [0], [0], [1], [0, 0, 1, 1], [], []>} : vector<4x4xf32>, vector<4x512xf32>, vector<4x512xf32> -> vector<4x512xf32>
    %161 = arith.addf %149, %160 : vector<4x512xf32>
    %cst_72 = arith.constant 0.000000e+00 : f32
    %162 = vector.broadcast %cst_72 : f32 to vector<4x1xf32>
    %163 = vector.extract_strided_slice %125 {offsets = [0, 0], sizes = [4, 511], strides = [1, 1]} : vector<4x512xf32> to vector<4x511xf32>
    %164 = tpu.concatenate %162, %163 in 1 : vector<4x1xf32>, vector<4x511xf32> -> vector<4x512xf32>
    %cst_73 = arith.constant 0.000000e+00 : f32
    %165 = vector.shape_cast %18 : vector<1x512xi1> to vector<1x512xi1>
    %166 = vector.broadcast %165 : vector<1x512xi1> to vector<4x512xi1>
    %167 = vector.broadcast %cst_73 : f32 to vector<4x512xf32>
    %168 = arith.select %166, %164, %167 : vector<4x512xi1>, vector<4x512xf32>
    %c3_74 = arith.constant 3 : index
    %c0_75 = arith.constant 0 : index
    %c0_76 = arith.constant 0 : index
    %169 = vector.load %arg4[%c3_74, %c0_75, %c0_76] : memref<9x4x4xf32, #tpu.memory_space<vmem>>, vector<1x4x4xf32>
    %170 = vector.shape_cast %169 : vector<1x4x4xf32> to vector<4x4xf32>
    %cst_77 = arith.constant dense<0.000000e+00> : vector<4x512xf32>
    %171 = tpu.matmul %170, %168, %cst_77 {dimension_numbers = #tpu.dot_dimension_numbers<[1], [0], [0], [1], [0, 0, 1, 1], [], []>} : vector<4x4xf32>, vector<4x512xf32>, vector<4x512xf32> -> vector<4x512xf32>
    %172 = arith.addf %161, %171 : vector<4x512xf32>
    %c4_78 = arith.constant 4 : index
    %c0_79 = arith.constant 0 : index
    %c0_80 = arith.constant 0 : index
    %173 = vector.load %arg4[%c4_78, %c0_79, %c0_80] : memref<9x4x4xf32, #tpu.memory_space<vmem>>, vector<1x4x4xf32>
    %174 = vector.shape_cast %173 : vector<1x4x4xf32> to vector<4x4xf32>
    %cst_81 = arith.constant dense<0.000000e+00> : vector<4x512xf32>
    %175 = tpu.matmul %174, %125, %cst_81 {dimension_numbers = #tpu.dot_dimension_numbers<[1], [0], [0], [1], [0, 0, 1, 1], [], []>} : vector<4x4xf32>, vector<4x512xf32>, vector<4x512xf32> -> vector<4x512xf32>
    %176 = arith.addf %172, %175 : vector<4x512xf32>
    %cst_82 = arith.constant 0.000000e+00 : f32
    %177 = vector.broadcast %cst_82 : f32 to vector<4x1xf32>
    %178 = vector.extract_strided_slice %125 {offsets = [0, 1], sizes = [4, 511], strides = [1, 1]} : vector<4x512xf32> to vector<4x511xf32>
    %179 = tpu.concatenate %178, %177 in 1 : vector<4x511xf32>, vector<4x1xf32> -> vector<4x512xf32>
    %cst_83 = arith.constant 0.000000e+00 : f32
    %180 = vector.shape_cast %20 : vector<1x512xi1> to vector<1x512xi1>
    %181 = vector.broadcast %180 : vector<1x512xi1> to vector<4x512xi1>
    %182 = vector.broadcast %cst_83 : f32 to vector<4x512xf32>
    %183 = arith.select %181, %179, %182 : vector<4x512xi1>, vector<4x512xf32>
    %c5_84 = arith.constant 5 : index
    %c0_85 = arith.constant 0 : index
    %c0_86 = arith.constant 0 : index
    %184 = vector.load %arg4[%c5_84, %c0_85, %c0_86] : memref<9x4x4xf32, #tpu.memory_space<vmem>>, vector<1x4x4xf32>
    %185 = vector.shape_cast %184 : vector<1x4x4xf32> to vector<4x4xf32>
    %cst_87 = arith.constant dense<0.000000e+00> : vector<4x512xf32>
    %186 = tpu.matmul %185, %183, %cst_87 {dimension_numbers = #tpu.dot_dimension_numbers<[1], [0], [0], [1], [0, 0, 1, 1], [], []>} : vector<4x4xf32>, vector<4x512xf32>, vector<4x512xf32> -> vector<4x512xf32>
    %187 = arith.addf %176, %186 : vector<4x512xf32>
    %cst_88 = arith.constant 0.000000e+00 : f32
    %188 = vector.broadcast %cst_88 : f32 to vector<4x15xf32>
    %189 = vector.extract_strided_slice %125 {offsets = [0, 15], sizes = [4, 497], strides = [1, 1]} : vector<4x512xf32> to vector<4x497xf32>
    %190 = tpu.concatenate %189, %188 in 1 : vector<4x497xf32>, vector<4x15xf32> -> vector<4x512xf32>
    %191 = arith.andi %16, %18 : vector<1x512xi1>
    %cst_89 = arith.constant 0.000000e+00 : f32
    %192 = vector.shape_cast %191 : vector<1x512xi1> to vector<1x512xi1>
    %193 = vector.broadcast %192 : vector<1x512xi1> to vector<4x512xi1>
    %194 = vector.broadcast %cst_89 : f32 to vector<4x512xf32>
    %195 = arith.select %193, %190, %194 : vector<4x512xi1>, vector<4x512xf32>
    %c6_90 = arith.constant 6 : index
    %c0_91 = arith.constant 0 : index
    %c0_92 = arith.constant 0 : index
    %196 = vector.load %arg4[%c6_90, %c0_91, %c0_92] : memref<9x4x4xf32, #tpu.memory_space<vmem>>, vector<1x4x4xf32>
    %197 = vector.shape_cast %196 : vector<1x4x4xf32> to vector<4x4xf32>
    %cst_93 = arith.constant dense<0.000000e+00> : vector<4x512xf32>
    %198 = tpu.matmul %197, %195, %cst_93 {dimension_numbers = #tpu.dot_dimension_numbers<[1], [0], [0], [1], [0, 0, 1, 1], [], []>} : vector<4x4xf32>, vector<4x512xf32>, vector<4x512xf32> -> vector<4x512xf32>
    %199 = arith.addf %187, %198 : vector<4x512xf32>
    %cst_94 = arith.constant 0.000000e+00 : f32
    %200 = vector.broadcast %cst_94 : f32 to vector<4x16xf32>
    %201 = vector.extract_strided_slice %125 {offsets = [0, 16], sizes = [4, 496], strides = [1, 1]} : vector<4x512xf32> to vector<4x496xf32>
    %202 = tpu.concatenate %201, %200 in 1 : vector<4x496xf32>, vector<4x16xf32> -> vector<4x512xf32>
    %cst_95 = arith.constant 0.000000e+00 : f32
    %203 = vector.shape_cast %16 : vector<1x512xi1> to vector<1x512xi1>
    %204 = vector.broadcast %203 : vector<1x512xi1> to vector<4x512xi1>
    %205 = vector.broadcast %cst_95 : f32 to vector<4x512xf32>
    %206 = arith.select %204, %202, %205 : vector<4x512xi1>, vector<4x512xf32>
    %c7_96 = arith.constant 7 : index
    %c0_97 = arith.constant 0 : index
    %c0_98 = arith.constant 0 : index
    %207 = vector.load %arg4[%c7_96, %c0_97, %c0_98] : memref<9x4x4xf32, #tpu.memory_space<vmem>>, vector<1x4x4xf32>
    %208 = vector.shape_cast %207 : vector<1x4x4xf32> to vector<4x4xf32>
    %cst_99 = arith.constant dense<0.000000e+00> : vector<4x512xf32>
    %209 = tpu.matmul %208, %206, %cst_99 {dimension_numbers = #tpu.dot_dimension_numbers<[1], [0], [0], [1], [0, 0, 1, 1], [], []>} : vector<4x4xf32>, vector<4x512xf32>, vector<4x512xf32> -> vector<4x512xf32>
    %210 = arith.addf %199, %209 : vector<4x512xf32>
    %cst_100 = arith.constant 0.000000e+00 : f32
    %211 = vector.broadcast %cst_100 : f32 to vector<4x17xf32>
    %212 = vector.extract_strided_slice %125 {offsets = [0, 17], sizes = [4, 495], strides = [1, 1]} : vector<4x512xf32> to vector<4x495xf32>
    %213 = tpu.concatenate %212, %211 in 1 : vector<4x495xf32>, vector<4x17xf32> -> vector<4x512xf32>
    %214 = arith.andi %16, %20 : vector<1x512xi1>
    %cst_101 = arith.constant 0.000000e+00 : f32
    %215 = vector.shape_cast %214 : vector<1x512xi1> to vector<1x512xi1>
    %216 = vector.broadcast %215 : vector<1x512xi1> to vector<4x512xi1>
    %217 = vector.broadcast %cst_101 : f32 to vector<4x512xf32>
    %218 = arith.select %216, %213, %217 : vector<4x512xi1>, vector<4x512xf32>
    %c8_102 = arith.constant 8 : index
    %c0_103 = arith.constant 0 : index
    %c0_104 = arith.constant 0 : index
    %219 = vector.load %arg4[%c8_102, %c0_103, %c0_104] : memref<9x4x4xf32, #tpu.memory_space<vmem>>, vector<1x4x4xf32>
    %220 = vector.shape_cast %219 : vector<1x4x4xf32> to vector<4x4xf32>
    %cst_105 = arith.constant dense<0.000000e+00> : vector<4x512xf32>
    %221 = tpu.matmul %220, %218, %cst_105 {dimension_numbers = #tpu.dot_dimension_numbers<[1], [0], [0], [1], [0, 0, 1, 1], [], []>} : vector<4x4xf32>, vector<4x512xf32>, vector<4x512xf32> -> vector<4x512xf32>
    %222 = arith.addf %210, %221 : vector<4x512xf32>
    %c0_106 = arith.constant 0 : index
    %c0_107 = arith.constant 0 : index
    %223 = vector.load %arg5[%c0_106, %c0_107] : memref<4x1xf32, #tpu.memory_space<vmem>>, vector<4x1xf32>
    %224 = vector.broadcast %223 : vector<4x1xf32> to vector<4x512xf32>
    %225 = arith.addf %222, %224 : vector<4x512xf32>
    %226 = arith.addf %225, %5 : vector<4x512xf32>
    %227 = vector.extract_strided_slice %226 {offsets = [0, 0], sizes = [4, 256], strides = [1, 1]} : vector<4x512xf32> to vector<4x256xf32>
    %c0_108 = arith.constant 0 : index
    %c0_109 = arith.constant 0 : index
    %c0_110 = arith.constant 0 : index
    %228 = vector.load %arg6[%c0_108, %c0_109, %c0_110] : memref<2x4x256xf32, #tpu.memory_space<vmem>>, vector<1x4x256xf32>
    %229 = vector.shape_cast %228 : vector<1x4x256xf32> to vector<4x256xf32>
    %230 = vector.shape_cast %227 : vector<4x256xf32> to vector<1x4x256xf32>
    tpu.vector_store %arg6[%c0_108, %c0_109, %c0_110], %230 {strides = array<i32>} : memref<2x4x256xf32, #tpu.memory_space<vmem>>, vector<1x4x256xf32>,
    %231 = vector.extract_strided_slice %226 {offsets = [0, 256], sizes = [4, 256], strides = [1, 1]} : vector<4x512xf32> to vector<4x256xf32>
    %c1_111 = arith.constant 1 : index
    %c0_112 = arith.constant 0 : index
    %c0_113 = arith.constant 0 : index
    %232 = vector.load %arg6[%c1_111, %c0_112, %c0_113] : memref<2x4x256xf32, #tpu.memory_space<vmem>>, vector<1x4x256xf32>
    %233 = vector.shape_cast %232 : vector<1x4x256xf32> to vector<4x256xf32>
    %234 = vector.shape_cast %231 : vector<4x256xf32> to vector<1x4x256xf32>
    tpu.vector_store %arg6[%c1_111, %c0_112, %c0_113], %234 {strides = array<i32>} : memref<2x4x256xf32, #tpu.memory_space<vmem>>, vector<1x4x256xf32>,
    return
  }
  func.func @transform_0(%arg0: i32) -> (i32, i32, i32) {
    %c0_i32 = arith.constant 0 : i32
    %c0_i32_0 = arith.constant 0 : i32
    %c0_i32_1 = arith.constant 0 : i32
    return %arg0, %c0_i32, %c0_i32_0 : i32, i32, i32
  }
  func.func @transform_1(%arg0: i32) -> (i32, i32, i32) {
    %c0_i32 = arith.constant 0 : i32
    %c0_i32_0 = arith.constant 0 : i32
    %c0_i32_1 = arith.constant 0 : i32
    %c0_i32_2 = arith.constant 0 : i32
    return %c0_i32, %c0_i32_0, %c0_i32_1 : i32, i32, i32
  }
  func.func @transform_2(%arg0: i32) -> (i32, i32) {
    %c0_i32 = arith.constant 0 : i32
    %c0_i32_0 = arith.constant 0 : i32
    %c0_i32_1 = arith.constant 0 : i32
    return %c0_i32, %c0_i32_0 : i32, i32
  }
  func.func @transform_3(%arg0: i32) -> (i32, i32, i32) {
    %c0_i32 = arith.constant 0 : i32
    %c0_i32_0 = arith.constant 0 : i32
    %c0_i32_1 = arith.constant 0 : i32
    %c0_i32_2 = arith.constant 0 : i32
    return %c0_i32, %c0_i32_0, %c0_i32_1 : i32, i32, i32
  }
  func.func @transform_4(%arg0: i32) -> (i32, i32) {
    %c0_i32 = arith.constant 0 : i32
    %c0_i32_0 = arith.constant 0 : i32
    %c0_i32_1 = arith.constant 0 : i32
    return %c0_i32, %c0_i32_0 : i32, i32
  }
  func.func @transform_5(%arg0: i32) -> (i32, i32, i32) {
    %c0_i32 = arith.constant 0 : i32
    %c0_i32_0 = arith.constant 0 : i32
    %c0_i32_1 = arith.constant 0 : i32
    return %arg0, %c0_i32, %c0_i32_0 : i32, i32, i32
  }
}

</mosaic_0001>

<llo_original>
// kernel: tpu_custom_call.1
$region0: #{tpu_custom_call.1}
  #allocation0 [shape = 'u32[]', space=smem, size = 0x4, offset = 0x4, fixed_abs, tag = 'smem constant byte address 0x4 - core index']
  #allocation1 [shape = 'u32[144,128]{1,0:T(1,128)}', space=vmem, size = 0x12000, scoped, tag = 'internal scratch']
  %s0 = inlined_call_operand.vmem [shape: f32[2,4,256], index: 0, kind: input, shape index: {}]
  %s1 = inlined_call_operand.vmem [shape: f32[9,4,4], index: 1, kind: input, shape index: {}]
  %s2 = inlined_call_operand.vmem [shape: f32[4,1], index: 2, kind: input, shape index: {}]
  %s3 = inlined_call_operand.vmem [shape: f32[9,4,4], index: 3, kind: input, shape index: {}]
  %s4 = inlined_call_operand.vmem [shape: f32[4,1], index: 4, kind: input, shape index: {}]
  %s5 = inlined_call_operand.hbm [shape: f32[2,4,256], index: 5, kind: output, shape index: {}]
  %s6 = sld [smem:[#allocation0]]
  $region30: #{tpu_custom_call.1} parent=0
    _
  %s8 = ssub.s32 1, %s6
  %s9 = scalar_select 0, %s8, %s6
  $region1: #{tpu_custom_call.1} parent=0
    #allocation2 [shape = 'u8[8192]{0}', space=vmem, size = 0x2000, scoped, tag = 'output window, operand 0, single buffered']
    #allocation3 [shape = 's32[1]{0}', space=sflag, size = 0x4, scoped, tag = 'scoped memory for tpu_custom_call.1']
    %10 = vsyncpa [#allocation3], 0
    // Predicated region
    $region2: #{tpu_custom_call.1} parent=1 // pred_check
      _
    $region3: #{tpu_custom_call.1} parent=1 // pred_check_branch
      %12 = sbr.rel (0) target = $region5
    $region4: #{tpu_custom_call.1} parent=1 // pred_region
      _
    $region5: #{tpu_custom_call.1} parent=1 // pred_fallthru
      _
    // Predicated region
    $region6: #{tpu_custom_call.1} parent=1 // pred_check
      _
    $region7: #{tpu_custom_call.1} parent=1 // pred_check_branch
      %14 = sbr.rel (0) target = $region9
    $region8: #{tpu_custom_call.1} parent=1 // pred_region
      _
    $region9: #{tpu_custom_call.1} parent=1 // pred_fallthru
      _
    // Predicated region
    $region10: #{tpu_custom_call.1} parent=1 // pred_check
      _
    $region11: #{tpu_custom_call.1} parent=1 // pred_check_branch
      %16 = sbr.rel (0) target = $region13
    $region12: #{tpu_custom_call.1} parent=1 // pred_region
      _
    $region13: #{tpu_custom_call.1} parent=1 // pred_fallthru
      _
    // Predicated region
    $region14: #{tpu_custom_call.1} parent=1 // pred_check
      _
    $region15: #{tpu_custom_call.1} parent=1 // pred_check_branch
      %18 = sbr.rel (0) target = $region17
    $region16: #{tpu_custom_call.1} parent=1 // pred_region
      _
    $region17: #{tpu_custom_call.1} parent=1 // pred_fallthru
      _
    // Predicated region
    $region18: #{tpu_custom_call.1} parent=1 // pred_check
      _
    $region19: #{tpu_custom_call.1} parent=1 // pred_check_branch
      %20 = sbr.rel (0) target = $region21
    $region20: #{tpu_custom_call.1} parent=1 // pred_region
      _
    $region21: #{tpu_custom_call.1} parent=1 // pred_fallthru
      _
    %v21 = vld [vmem:[%s0] sm:$0xff]
    %v22 = vld [vmem:[%s0 + $0x8] sm:$0xff]
    %v24 = vcombine.high %v21, %v21
    %v27 = vcombine.high %v22, %v22
    %v29 = vlaneseq
    %v30 = vand.u32 %v29, 127
    %v31 = vadd.s32 %v30, 128
    %v32 = vadd.s32 %v30, 256
    %v33 = vadd.s32 %v30, 384
    %v34 = vand.u32 %v30, 15
    %v35 = vand.u32 %v31, 15
    %v36 = vand.u32 %v32, 15
    %v37 = vand.u32 %v33, 15
    %v38 = vshra.s32 %v30, 4
    %v39 = vshra.s32 %v31, 4
    %v40 = vshra.s32 %v32, 4
    %v41 = vshra.s32 %v33, 4
    %v42 = vand.u32 %v38, 15
    %v43 = vand.u32 %v39, 15
    %v44 = vand.u32 %v40, 15
    %v45 = vand.u32 %v41, 15
    %vm46 = vcmp.ge.s32.totalorder %v42, 1
    %vm47 = vcmp.ge.s32.totalorder %v43, 1
    %vm48 = vcmp.ge.s32.totalorder %v44, 1
    %vm49 = vcmp.ge.s32.totalorder %v45, 1
    %vm50 = vcmp.le.s32.totalorder %v42, 14
    %vm51 = vcmp.le.s32.totalorder %v43, 14
    %vm52 = vcmp.le.s32.totalorder %v44, 14
    %vm53 = vcmp.le.s32.totalorder %v45, 14
    %vm54 = vcmp.ge.s32.totalorder %v34, 1
    %vm55 = vcmp.ge.s32.totalorder %v35, 1
    %vm56 = vcmp.ge.s32.totalorder %v36, 1
    %vm57 = vcmp.ge.s32.totalorder %v37, 1
    %vm58 = vcmp.le.s32.totalorder %v34, 14
    %vm59 = vcmp.le.s32.totalorder %v35, 14
    %vm60 = vcmp.le.s32.totalorder %v36, 14
    %vm61 = vcmp.le.s32.totalorder %v37, 14
    %62 = vrot.lane.b32.xlu0 %v21, 17
    %v63 = vpop.permute.xlu0 %62
    %64 = vrot.lane.b32.xlu0 %v24, 17
    %v65 = vpop.permute.xlu0 %64
    %66 = vrot.lane.b32.xlu0 %v22, 17
    %v67 = vpop.permute.xlu0 %66
    %68 = vrot.lane.b32.xlu0 %v27, 17
    %v69 = vpop.permute.xlu0 %68
    %vm70 = vcmask 138240
    %v71 = vsel %vm70, %v63, %v65
    %v72 = vsel %vm70, %v65, %v67
    %v73 = vsel %vm70, %v67, %v69
    %v78 = vsel %vm70, 0.0, %v63
    %vm79 = vmand %vm46, %vm54
    %vm80 = vmand %vm47, %vm55
    %vm81 = vmand %vm48, %vm56
    %vm82 = vmand %vm49, %vm57
    %v83 = vsel %vm79, 1, 0
    %v84 = vsel %vm80, 1, 0
    %v85 = vsel %vm81, 1, 0
    %v86 = vsel %vm82, 1, 0
    %vm87 = vcmp.eq.s32.totalorder %v83, 1
    %vm88 = vcmp.eq.s32.totalorder %v84, 1
    %vm89 = vcmp.eq.s32.totalorder %v85, 1
    %vm90 = vcmp.eq.s32.totalorder %v86, 1
    %v91 = vsel %vm87, %v78, 0.0
    %v92 = vsel %vm88, %v71, 0.0
    %v93 = vsel %vm89, %v72, 0.0
    %v94 = vsel %vm90, %v73, 0.0
    %v95 = vld [vmem:[%s1] sm:$0xf]
    %96 = vrot.lane.b32.xlu0 %v21, 16
    %v97 = vpop.permute.xlu0 %96
    %98 = vrot.lane.b32.xlu0 %v24, 16
    %v99 = vpop.permute.xlu0 %98
    %100 = vrot.lane.b32.xlu0 %v22, 16
    %v101 = vpop.permute.xlu0 %100
    %102 = vrot.lane.b32.xlu0 %v27, 16
    %v103 = vpop.permute.xlu0 %102
    %vm104 = vcmask 130048
    %v105 = vsel %vm104, %v97, %v99
    %v106 = vsel %vm104, %v99, %v101
    %v107 = vsel %vm104, %v101, %v103
    %v112 = vsel %vm104, 0.0, %v97
    %v113 = vsel %vm46, 1, 0
    %v114 = vsel %vm47, 1, 0
    %v115 = vsel %vm48, 1, 0
    %v116 = vsel %vm49, 1, 0
    %vm117 = vcmp.eq.s32.totalorder %v113, 1
    %vm118 = vcmp.eq.s32.totalorder %v114, 1
    %vm119 = vcmp.eq.s32.totalorder %v115, 1
    %vm120 = vcmp.eq.s32.totalorder %v116, 1
    %v121 = vsel %vm117, %v112, 0.0
    %v122 = vsel %vm118, %v105, 0.0
    %v123 = vsel %vm119, %v106, 0.0
    %v124 = vsel %vm120, %v107, 0.0
    %s125 = scalar_lea.vmem %s1, 4
    %v126 = vld [vmem:[%s125] sm:$0xf]
    %vm127 = vcmask 31744
    %v129 = vsel %vm127, %v126, 0
    %vm131 = vcmask 1043456
    %v133 = vsel %vm131, %v121, 0
    %v136 = vsel %vm131, %v122, 0
    %v139 = vsel %vm131, %v123, 0
    %v142 = vsel %vm131, %v124, 0
    %144 = vmatprep.subr.mxu0 %v136
    %145 = vmatpush1.msra.mxu0 %v133
    %146 = vmatprep.subr.mxu0 0.0
    %147 = vmatpush1.msra.mxu0 0.0
    %148 = vmatprep.subr.mxu0 0.0
    %149 = vmatpush1.msra.mxu0 0.0
    %150 = vmatprep.subr.mxu0 0.0
    %151 = vmatpush1.msra.mxu0 0.0
    %152 = vmatprep.subr.mxu0 0.0
    %153 = vmatpush1.msra.mxu0 0.0
    %154 = vmatprep.subr.mxu0 0.0
    %155 = vmatpush1.msra.mxu0 0.0
    %156 = vmatprep.subr.mxu0 0.0
    %157 = vmatpush1.msra.mxu0 0.0
    %158 = vmatprep.subr.mxu0 0.0
    %159 = vmatpush1.msra.mxu0 0.0
    %160 = vmatprep.subr.mxu0 0.0
    %161 = vmatpush1.msra.mxu0 0.0
    %162 = vmatprep.subr.mxu0 0.0
    %163 = vmatpush1.msra.mxu0 0.0
    %164 = vmatprep.subr.mxu0 0.0
    %165 = vmatpush1.msra.mxu0 0.0
    %166 = vmatprep.subr.mxu0 0.0
    %167 = vmatpush1.msra.mxu0 0.0
    %168 = vmatprep.subr.mxu0 0.0
    %169 = vmatpush1.msra.mxu0 0.0
    %170 = vmatprep.subr.mxu0 0.0
    %171 = vmatpush1.msra.mxu0 0.0
    %172 = vmatprep.subr.mxu0 0.0
    %173 = vmatpush1.msra.mxu0 0.0
    %174 = vmatprep.subr.mxu0 0.0
    %175 = vmatpush1.msra.mxu0 0.0
    %176 = vmatprep.subr.mxu0 0.0
    %177 = vmatpush1.msra.mxu0 0.0
    %178 = vmatprep.subr.mxu0 0.0
    %179 = vmatpush1.msra.mxu0 0.0
    %180 = vmatprep.subr.mxu0 0.0
    %181 = vmatpush1.msra.mxu0 0.0
    %182 = vmatprep.subr.mxu0 0.0
    %183 = vmatpush1.msra.mxu0 0.0
    %184 = vmatprep.subr.mxu0 0.0
    %185 = vmatpush1.msra.mxu0 0.0
    %186 = vmatprep.subr.mxu0 0.0
    %187 = vmatpush1.msra.mxu0 0.0
    %188 = vmatprep.subr.mxu0 0.0
    %189 = vmatpush1.msra.mxu0 0.0
    %190 = vmatprep.subr.mxu0 0.0
    %191 = vmatpush1.msra.mxu0 0.0
    %192 = vmatprep.subr.mxu0 0.0
    %193 = vmatpush1.msra.mxu0 0.0
    %194 = vmatprep.subr.mxu0 0.0
    %195 = vmatpush1.msra.mxu0 0.0
    %196 = vmatprep.subr.mxu0 0.0
    %197 = vmatpush1.msra.mxu0 0.0
    %198 = vmatprep.subr.mxu0 0.0
    %199 = vmatpush1.msra.mxu0 0.0
    %200 = vmatprep.subr.mxu0 0.0
    %201 = vmatpush1.msra.mxu0 0.0
    %202 = vmatprep.subr.mxu0 0.0
    %203 = vmatpush1.msra.mxu0 0.0
    %204 = vmatprep.subr.mxu0 0.0
    %205 = vmatpush1.msra.mxu0 0.0
    %206 = vmatprep.subr.mxu0 0.0
    %207 = vmatpush1.msra.mxu0 0.0
    %208 = vmatprep.mubr.f32.mxu0 0.0
    %209 = vmatmul.mubr.f32.gmra.mrb[0].mxu0 %v129
    %v210 = vpop.f32.mrb[0].mxu0
    %v211 = vadd.f32 0.0, %v210
    %v212 = vpop.f32.mrb[0].mxu0
    %v213 = vadd.f32 0.0, %v212
    %214 = vdwg.mxu0
    %215 = vmatprep.subr.mxu0 %v142
    %216 = vmatpush1.msra.mxu0 %v139
    %217 = vmatprep.subr.mxu0 0.0
    %218 = vmatpush1.msra.mxu0 0.0
    %219 = vmatprep.subr.mxu0 0.0
    %220 = vmatpush1.msra.mxu0 0.0
    %221 = vmatprep.subr.mxu0 0.0
    %222 = vmatpush1.msra.mxu0 0.0
    %223 = vmatprep.subr.mxu0 0.0
    %224 = vmatpush1.msra.mxu0 0.0
    %225 = vmatprep.subr.mxu0 0.0
    %226 = vmatpush1.msra.mxu0 0.0
    %227 = vmatprep.subr.mxu0 0.0
    %228 = vmatpush1.msra.mxu0 0.0
    %229 = vmatprep.subr.mxu0 0.0
    %230 = vmatpush1.msra.mxu0 0.0
    %231 = vmatprep.subr.mxu0 0.0
    %232 = vmatpush1.msra.mxu0 0.0
    %233 = vmatprep.subr.mxu0 0.0
    %234 = vmatpush1.msra.mxu0 0.0
    %235 = vmatprep.subr.mxu0 0.0
    %236 = vmatpush1.msra.mxu0 0.0
    %237 = vmatprep.subr.mxu0 0.0
    %238 = vmatpush1.msra.mxu0 0.0
    %239 = vmatprep.subr.mxu0 0.0
    %240 = vmatpush1.msra.mxu0 0.0
    %241 = vmatprep.subr.mxu0 0.0
    %242 = vmatpush1.msra.mxu0 0.0
    %243 = vmatprep.subr.mxu0 0.0
    %244 = vmatpush1.msra.mxu0 0.0
    %245 = vmatprep.subr.mxu0 0.0
    %246 = vmatpush1.msra.mxu0 0.0
    %247 = vmatprep.subr.mxu0 0.0
    %248 = vmatpush1.msra.mxu0 0.0
    %249 = vmatprep.subr.mxu0 0.0
    %250 = vmatpush1.msra.mxu0 0.0
    %251 = vmatprep.subr.mxu0 0.0
    %252 = vmatpush1.msra.mxu0 0.0
    %253 = vmatprep.subr.mxu0 0.0
    %254 = vmatpush1.msra.mxu0 0.0
    %255 = vmatprep.subr.mxu0 0.0
    %256 = vmatpush1.msra.mxu0 0.0
    %257 = vmatprep.subr.mxu0 0.0
    %258 = vmatpush1.msra.mxu0 0.0
    %259 = vmatprep.subr.mxu0 0.0
    %260 = vmatpush1.msra.mxu0 0.0
    %261 = vmatprep.subr.mxu0 0.0
    %262 = vmatpush1.msra.mxu0 0.0
    %263 = vmatprep.subr.mxu0 0.0
    %264 = vmatpush1.msra.mxu0 0.0
    %265 = vmatprep.subr.mxu0 0.0
    %266 = vmatpush1.msra.mxu0 0.0
    %267 = vmatprep.subr.mxu0 0.0
    %268 = vmatpush1.msra.mxu0 0.0
    %269 = vmatprep.subr.mxu0 0.0
    %270 = vmatpush1.msra.mxu0 0.0
    %271 = vmatprep.subr.mxu0 0.0
    %272 = vmatpush1.msra.mxu0 0.0
    %273 = vmatprep.subr.mxu0 0.0
    %274 = vmatpush1.msra.mxu0 0.0
    %275 = vmatprep.subr.mxu0 0.0
    %276 = vmatpush1.msra.mxu0 0.0
    %277 = vmatprep.subr.mxu0 0.0
    %278 = vmatpush1.msra.mxu0 0.0
    %279 = vmatprep.mubr.f32.mxu0 0.0
    %280 = vmatmul.mubr.f32.gmra.mrb[0].mxu0 %v129
    %v281 = vpop.f32.mrb[0].mxu0
    %v282 = vadd.f32 0.0, %v281
    %v283 = vpop.f32.mrb[0].mxu0
    %v284 = vadd.f32 0.0, %v283
    %285 = vdwg.mxu0
    %v287 = vsel %vm127, %v95, 0
    %v290 = vsel %vm131, %v91, 0
    %v293 = vsel %vm131, %v92, 0
    %v296 = vsel %vm131, %v93, 0
    %v299 = vsel %vm131, %v94, 0
    %301 = vmatprep.subr.mxu0 %v293
    %302 = vmatpush1.msra.mxu0 %v290
    %303 = vmatprep.subr.mxu0 0.0
    %304 = vmatpush1.msra.mxu0 0.0
    %305 = vmatprep.subr.mxu0 0.0
    %306 = vmatpush1.msra.mxu0 0.0
    %307 = vmatprep.subr.mxu0 0.0
    %308 = vmatpush1.msra.mxu0 0.0
    %309 = vmatprep.subr.mxu0 0.0
    %310 = vmatpush1.msra.mxu0 0.0
    %311 = vmatprep.subr.mxu0 0.0
    %312 = vmatpush1.msra.mxu0 0.0
    %313 = vmatprep.subr.mxu0 0.0
    %314 = vmatpush1.msra.mxu0 0.0
    %315 = vmatprep.subr.mxu0 0.0
    %316 = vmatpush1.msra.mxu0 0.0
    %317 = vmatprep.subr.mxu0 0.0
    %318 = vmatpush1.msra.mxu0 0.0
    %319 = vmatprep.subr.mxu0 0.0
    %320 = vmatpush1.msra.mxu0 0.0
    %321 = vmatprep.subr.mxu0 0.0
    %322 = vmatpush1.msra.mxu0 0.0
    %323 = vmatprep.subr.mxu0 0.0
    %324 = vmatpush1.msra.mxu0 0.0
    %325 = vmatprep.subr.mxu0 0.0
    %326 = vmatpush1.msra.mxu0 0.0
    %327 = vmatprep.subr.mxu0 0.0
    %328 = vmatpush1.msra.mxu0 0.0
    %329 = vmatprep.subr.mxu0 0.0
    %330 = vmatpush1.msra.mxu0 0.0
    %331 = vmatprep.subr.mxu0 0.0
    %332 = vmatpush1.msra.mxu0 0.0
    %333 = vmatprep.subr.mxu0 0.0
    %334 = vmatpush1.msra.mxu0 0.0
    %335 = vmatprep.subr.mxu0 0.0
    %336 = vmatpush1.msra.mxu0 0.0
    %337 = vmatprep.subr.mxu0 0.0
    %338 = vmatpush1.msra.mxu0 0.0
    %339 = vmatprep.subr.mxu0 0.0
    %340 = vmatpush1.msra.mxu0 0.0
    %341 = vmatprep.subr.mxu0 0.0
    %342 = vmatpush1.msra.mxu0 0.0
    %343 = vmatprep.subr.mxu0 0.0
    %344 = vmatpush1.msra.mxu0 0.0
    %345 = vmatprep.subr.mxu0 0.0
    %346 = vmatpush1.msra.mxu0 0.0
    %347 = vmatprep.subr.mxu0 0.0
    %348 = vmatpush1.msra.mxu0 0.0
    %349 = vmatprep.subr.mxu0 0.0
    %350 = vmatpush1.msra.mxu0 0.0
    %351 = vmatprep.subr.mxu0 0.0
    %352 = vmatpush1.msra.mxu0 0.0
    %353 = vmatprep.subr.mxu0 0.0
    %354 = vmatpush1.msra.mxu0 0.0
    %355 = vmatprep.subr.mxu0 0.0
    %356 = vmatpush1.msra.mxu0 0.0
    %357 = vmatprep.subr.mxu0 0.0
    %358 = vmatpush1.msra.mxu0 0.0
    %359 = vmatprep.subr.mxu0 0.0
    %360 = vmatpush1.msra.mxu0 0.0
    %361 = vmatprep.subr.mxu0 0.0
    %362 = vmatpush1.msra.mxu0 0.0
    %363 = vmatprep.subr.mxu0 0.0
    %364 = vmatpush1.msra.mxu0 0.0
    %365 = vmatprep.mubr.f32.mxu0 0.0
    %366 = vmatmul.mubr.f32.gmra.mrb[0].mxu0 %v287
    %v367 = vpop.f32.mrb[0].mxu0
    %v368 = vadd.f32 %v211, %v367
    %v369 = vpop.f32.mrb[0].mxu0
    %v370 = vadd.f32 %v213, %v369
    %371 = vdwg.mxu0
    %372 = vmatprep.subr.mxu0 %v299
    %373 = vmatpush1.msra.mxu0 %v296
    %374 = vmatprep.subr.mxu0 0.0
    %375 = vmatpush1.msra.mxu0 0.0
    %376 = vmatprep.subr.mxu0 0.0
    %377 = vmatpush1.msra.mxu0 0.0
    %378 = vmatprep.subr.mxu0 0.0
    %379 = vmatpush1.msra.mxu0 0.0
    %380 = vmatprep.subr.mxu0 0.0
    %381 = vmatpush1.msra.mxu0 0.0
    %382 = vmatprep.subr.mxu0 0.0
    %383 = vmatpush1.msra.mxu0 0.0
    %384 = vmatprep.subr.mxu0 0.0
    %385 = vmatpush1.msra.mxu0 0.0
    %386 = vmatprep.subr.mxu0 0.0
    %387 = vmatpush1.msra.mxu0 0.0
    %388 = vmatprep.subr.mxu0 0.0
    %389 = vmatpush1.msra.mxu0 0.0
    %390 = vmatprep.subr.mxu0 0.0
    %391 = vmatpush1.msra.mxu0 0.0
    %392 = vmatprep.subr.mxu0 0.0
    %393 = vmatpush1.msra.mxu0 0.0
    %394 = vmatprep.subr.mxu0 0.0
    %395 = vmatpush1.msra.mxu0 0.0
    %396 = vmatprep.subr.mxu0 0.0
    %397 = vmatpush1.msra.mxu0 0.0
    %398 = vmatprep.subr.mxu0 0.0
    %399 = vmatpush1.msra.mxu0 0.0
    %400 = vmatprep.subr.mxu0 0.0
    %401 = vmatpush1.msra.mxu0 0.0
    %402 = vmatprep.subr.mxu0 0.0
    %403 = vmatpush1.msra.mxu0 0.0
    %404 = vmatprep.subr.mxu0 0.0
    %405 = vmatpush1.msra.mxu0 0.0
    %406 = vmatprep.subr.mxu0 0.0
    %407 = vmatpush1.msra.mxu0 0.0
    %408 = vmatprep.subr.mxu0 0.0
    %409 = vmatpush1.msra.mxu0 0.0
    %410 = vmatprep.subr.mxu0 0.0
    %411 = vmatpush1.msra.mxu0 0.0
    %412 = vmatprep.subr.mxu0 0.0
    %413 = vmatpush1.msra.mxu0 0.0
    %414 = vmatprep.subr.mxu0 0.0
    %415 = vmatpush1.msra.mxu0 0.0
    %416 = vmatprep.subr.mxu0 0.0
    %417 = vmatpush1.msra.mxu0 0.0
    %418 = vmatprep.subr.mxu0 0.0
    %419 = vmatpush1.msra.mxu0 0.0
    %420 = vmatprep.subr.mxu0 0.0
    %421 = vmatpush1.msra.mxu0 0.0
    %422 = vmatprep.subr.mxu0 0.0
    %423 = vmatpush1.msra.mxu0 0.0
    %424 = vmatprep.subr.mxu0 0.0
    %425 = vmatpush1.msra.mxu0 0.0
    %426 = vmatprep.subr.mxu0 0.0
    %427 = vmatpush1.msra.mxu0 0.0
    %428 = vmatprep.subr.mxu0 0.0
    %429 = vmatpush1.msra.mxu0 0.0
    %430 = vmatprep.subr.mxu0 0.0
    %431 = vmatpush1.msra.mxu0 0.0
    %432 = vmatprep.subr.mxu0 0.0
    %433 = vmatpush1.msra.mxu0 0.0
    %434 = vmatprep.subr.mxu0 0.0
    %435 = vmatpush1.msra.mxu0 0.0
    %436 = vmatprep.mubr.f32.mxu0 0.0
    %437 = vmatmul.mubr.f32.gmra.mrb[0].mxu0 %v287
    %v438 = vpop.f32.mrb[0].mxu0
    %v439 = vadd.f32 %v282, %v438
    %v440 = vpop.f32.mrb[0].mxu0
    %v441 = vadd.f32 %v284, %v440
    %442 = vdwg.mxu0
    %443 = vrot.lane.b32.xlu0 %v21, 15
    %v444 = vpop.permute.xlu0 %443
    %445 = vrot.lane.b32.xlu0 %v24, 15
    %v446 = vpop.permute.xlu0 %445
    %447 = vrot.lane.b32.xlu0 %v22, 15
    %v448 = vpop.permute.xlu0 %447
    %449 = vrot.lane.b32.xlu0 %v27, 15
    %v450 = vpop.permute.xlu0 %449
    %vm451 = vcmask 121856
    %v452 = vsel %vm451, %v444, %v446
    %v453 = vsel %vm451, %v446, %v448
    %v454 = vsel %vm451, %v448, %v450
    %v459 = vsel %vm451, 0.0, %v444
    %vm460 = vmand %vm46, %vm58
    %vm461 = vmand %vm47, %vm59
    %vm462 = vmand %vm48, %vm60
    %vm463 = vmand %vm49, %vm61
    %v464 = vsel %vm460, 1, 0
    %v465 = vsel %vm461, 1, 0
    %v466 = vsel %vm462, 1, 0
    %v467 = vsel %vm463, 1, 0
    %vm468 = vcmp.eq.s32.totalorder %v464, 1
    %vm469 = vcmp.eq.s32.totalorder %v465, 1
    %vm470 = vcmp.eq.s32.totalorder %v466, 1
    %vm471 = vcmp.eq.s32.totalorder %v467, 1
    %v472 = vsel %vm468, %v459, 0.0
    %v473 = vsel %vm469, %v452, 0.0
    %v474 = vsel %vm470, %v453, 0.0
    %v475 = vsel %vm471, %v454, 0.0
    %s476 = scalar_lea.vmem %s1, 8
    %v477 = vld [vmem:[%s476] sm:$0xf]
    %v479 = vsel %vm127, %v477, 0
    %v482 = vsel %vm131, %v472, 0
    %v485 = vsel %vm131, %v473, 0
    %v488 = vsel %vm131, %v474, 0
    %v491 = vsel %vm131, %v475, 0
    %493 = vmatprep.subr.mxu0 %v485
    %494 = vmatpush1.msra.mxu0 %v482
    %495 = vmatprep.subr.mxu0 0.0
    %496 = vmatpush1.msra.mxu0 0.0
    %497 = vmatprep.subr.mxu0 0.0
    %498 = vmatpush1.msra.mxu0 0.0
    %499 = vmatprep.subr.mxu0 0.0
    %500 = vmatpush1.msra.mxu0 0.0
    %501 = vmatprep.subr.mxu0 0.0
    %502 = vmatpush1.msra.mxu0 0.0
    %503 = vmatprep.subr.mxu0 0.0
    %504 = vmatpush1.msra.mxu0 0.0
    %505 = vmatprep.subr.mxu0 0.0
    %506 = vmatpush1.msra.mxu0 0.0
    %507 = vmatprep.subr.mxu0 0.0
    %508 = vmatpush1.msra.mxu0 0.0
    %509 = vmatprep.subr.mxu0 0.0
    %510 = vmatpush1.msra.mxu0 0.0
    %511 = vmatprep.subr.mxu0 0.0
    %512 = vmatpush1.msra.mxu0 0.0
    %513 = vmatprep.subr.mxu0 0.0
    %514 = vmatpush1.msra.mxu0 0.0
    %515 = vmatprep.subr.mxu0 0.0
    %516 = vmatpush1.msra.mxu0 0.0
    %517 = vmatprep.subr.mxu0 0.0
    %518 = vmatpush1.msra.mxu0 0.0
    %519 = vmatprep.subr.mxu0 0.0
    %520 = vmatpush1.msra.mxu0 0.0
    %521 = vmatprep.subr.mxu0 0.0
    %522 = vmatpush1.msra.mxu0 0.0
    %523 = vmatprep.subr.mxu0 0.0
    %524 = vmatpush1.msra.mxu0 0.0
    %525 = vmatprep.subr.mxu0 0.0
    %526 = vmatpush1.msra.mxu0 0.0
    %527 = vmatprep.subr.mxu0 0.0
    %528 = vmatpush1.msra.mxu0 0.0
    %529 = vmatprep.subr.mxu0 0.0
    %530 = vmatpush1.msra.mxu0 0.0
    %531 = vmatprep.subr.mxu0 0.0
    %532 = vmatpush1.msra.mxu0 0.0
    %533 = vmatprep.subr.mxu0 0.0
    %534 = vmatpush1.msra.mxu0 0.0
    %535 = vmatprep.subr.mxu0 0.0
    %536 = vmatpush1.msra.mxu0 0.0
    %537 = vmatprep.subr.mxu0 0.0
    %538 = vmatpush1.msra.mxu0 0.0
    %539 = vmatprep.subr.mxu0 0.0
    %540 = vmatpush1.msra.mxu0 0.0
    %541 = vmatprep.subr.mxu0 0.0
    %542 = vmatpush1.msra.mxu0 0.0
    %543 = vmatprep.subr.mxu0 0.0
    %544 = vmatpush1.msra.mxu0 0.0
    %545 = vmatprep.subr.mxu0 0.0
    %546 = vmatpush1.msra.mxu0 0.0
    %547 = vmatprep.subr.mxu0 0.0
    %548 = vmatpush1.msra.mxu0 0.0
    %549 = vmatprep.subr.mxu0 0.0
    %550 = vmatpush1.msra.mxu0 0.0
    %551 = vmatprep.subr.mxu0 0.0
    %552 = vmatpush1.msra.mxu0 0.0
    %553 = vmatprep.subr.mxu0 0.0
    %554 = vmatpush1.msra.mxu0 0.0
    %555 = vmatprep.subr.mxu0 0.0
    %556 = vmatpush1.msra.mxu0 0.0
    %557 = vmatprep.mubr.f32.mxu0 0.0
    %558 = vmatmul.mubr.f32.gmra.mrb[0].mxu0 %v479
    %v559 = vpop.f32.mrb[0].mxu0
    %v560 = vadd.f32 0.0, %v559
    %v561 = vpop.f32.mrb[0].mxu0
    %v562 = vadd.f32 0.0, %v561
    %563 = vdwg.mxu0
    %564 = vmatprep.subr.mxu0 %v491
    %565 = vmatpush1.msra.mxu0 %v488
    %566 = vmatprep.subr.mxu0 0.0
    %567 = vmatpush1.msra.mxu0 0.0
    %568 = vmatprep.subr.mxu0 0.0
    %569 = vmatpush1.msra.mxu0 0.0
    %570 = vmatprep.subr.mxu0 0.0
    %571 = vmatpush1.msra.mxu0 0.0
    %572 = vmatprep.subr.mxu0 0.0
    %573 = vmatpush1.msra.mxu0 0.0
    %574 = vmatprep.subr.mxu0 0.0
    %575 = vmatpush1.msra.mxu0 0.0
    %576 = vmatprep.subr.mxu0 0.0
    %577 = vmatpush1.msra.mxu0 0.0
    %578 = vmatprep.subr.mxu0 0.0
    %579 = vmatpush1.msra.mxu0 0.0
    %580 = vmatprep.subr.mxu0 0.0
    %581 = vmatpush1.msra.mxu0 0.0
    %582 = vmatprep.subr.mxu0 0.0
    %583 = vmatpush1.msra.mxu0 0.0
    %584 = vmatprep.subr.mxu0 0.0
    %585 = vmatpush1.msra.mxu0 0.0
    %586 = vmatprep.subr.mxu0 0.0
    %587 = vmatpush1.msra.mxu0 0.0
    %588 = vmatprep.subr.mxu0 0.0
    %589 = vmatpush1.msra.mxu0 0.0
    %590 = vmatprep.subr.mxu0 0.0
    %591 = vmatpush1.msra.mxu0 0.0
    %592 = vmatprep.subr.mxu0 0.0
    %593 = vmatpush1.msra.mxu0 0.0
    %594 = vmatprep.subr.mxu0 0.0
    %595 = vmatpush1.msra.mxu0 0.0
    %596 = vmatprep.subr.mxu0 0.0
    %597 = vmatpush1.msra.mxu0 0.0
    %598 = vmatprep.subr.mxu0 0.0
    %599 = vmatpush1.msra.mxu0 0.0
    %600 = vmatprep.subr.mxu0 0.0
    %601 = vmatpush1.msra.mxu0 0.0
    %602 = vmatprep.subr.mxu0 0.0
    %603 = vmatpush1.msra.mxu0 0.0
    %604 = vmatprep.subr.mxu0 0.0
    %605 = vmatpush1.msra.mxu0 0.0
    %606 = vmatprep.subr.mxu0 0.0
    %607 = vmatpush1.msra.mxu0 0.0
    %608 = vmatprep.subr.mxu0 0.0
    %609 = vmatpush1.msra.mxu0 0.0
    %610 = vmatprep.subr.mxu0 0.0
    %611 = vmatpush1.msra.mxu0 0.0
    %612 = vmatprep.subr.mxu0 0.0
    %613 = vmatpush1.msra.mxu0 0.0
    %614 = vmatprep.subr.mxu0 0.0
    %615 = vmatpush1.msra.mxu0 0.0
    %616 = vmatprep.subr.mxu0 0.0
    %617 = vmatpush1.msra.mxu0 0.0
    %618 = vmatprep.subr.mxu0 0.0
    %619 = vmatpush1.msra.mxu0 0.0
    %620 = vmatprep.subr.mxu0 0.0
    %621 = vmatpush1.msra.mxu0 0.0
    %622 = vmatprep.subr.mxu0 0.0
    %623 = vmatpush1.msra.mxu0 0.0
    %624 = vmatprep.subr.mxu0 0.0
    %625 = vmatpush1.msra.mxu0 0.0
    %626 = vmatprep.subr.mxu0 0.0
    %627 = vmatpush1.msra.mxu0 0.0
    %628 = vmatprep.mubr.f32.mxu0 0.0
    %629 = vmatmul.mubr.f32.gmra.mrb[0].mxu0 %v479
    %v630 = vpop.f32.mrb[0].mxu0
    %v631 = vadd.f32 0.0, %v630
    %v632 = vpop.f32.mrb[0].mxu0
    %v633 = vadd.f32 0.0, %v632
    %634 = vdwg.mxu0
    %v635 = vadd.f32 %v368, %v560
    %v636 = vadd.f32 %v370, %v562
    %v637 = vadd.f32 %v439, %v631
    %v638 = vadd.f32 %v441, %v633
    %639 = vrot.lane.b32.xlu0 %v21, 1
    %v640 = vpop.permute.xlu0 %639
    %641 = vrot.lane.b32.xlu0 %v24, 1
    %v642 = vpop.permute.xlu0 %641
    %643 = vrot.lane.b32.xlu0 %v22, 1
    %v644 = vpop.permute.xlu0 %643
    %645 = vrot.lane.b32.xlu0 %v27, 1
    %v646 = vpop.permute.xlu0 %645
    %vm647 = vcmask 7168
    %v648 = vsel %vm647, %v640, %v642
    %v649 = vsel %vm647, %v642, %v644
    %v650 = vsel %vm647, %v644, %v646
    %v655 = vsel %vm647, 0.0, %v640
    %v656 = vsel %vm54, 1, 0
    %v657 = vsel %vm55, 1, 0
    %v658 = vsel %vm56, 1, 0
    %v659 = vsel %vm57, 1, 0
    %vm660 = vcmp.eq.s32.totalorder %v656, 1
    %vm661 = vcmp.eq.s32.totalorder %v657, 1
    %vm662 = vcmp.eq.s32.totalorder %v658, 1
    %vm663 = vcmp.eq.s32.totalorder %v659, 1
    %v664 = vsel %vm660, %v655, 0.0
    %v665 = vsel %vm661, %v648, 0.0
    %v666 = vsel %vm662, %v649, 0.0
    %v667 = vsel %vm663, %v650, 0.0
    %s668 = scalar_lea.vmem %s1, 12
    %v669 = vld [vmem:[%s668] sm:$0xf]
    %v671 = vsel %vm127, %v669, 0
    %v674 = vsel %vm131, %v664, 0
    %v677 = vsel %vm131, %v665, 0
    %v680 = vsel %vm131, %v666, 0
    %v683 = vsel %vm131, %v667, 0
    %685 = vmatprep.subr.mxu0 %v677
    %686 = vmatpush1.msra.mxu0 %v674
    %687 = vmatprep.subr.mxu0 0.0
    %688 = vmatpush1.msra.mxu0 0.0
    %689 = vmatprep.subr.mxu0 0.0
    %690 = vmatpush1.msra.mxu0 0.0
    %691 = vmatprep.subr.mxu0 0.0
    %692 = vmatpush1.msra.mxu0 0.0
    %693 = vmatprep.subr.mxu0 0.0
    %694 = vmatpush1.msra.mxu0 0.0
    %695 = vmatprep.subr.mxu0 0.0
    %696 = vmatpush1.msra.mxu0 0.0
    %697 = vmatprep.subr.mxu0 0.0
    %698 = vmatpush1.msra.mxu0 0.0
    %699 = vmatprep.subr.mxu0 0.0
    %700 = vmatpush1.msra.mxu0 0.0
    %701 = vmatprep.subr.mxu0 0.0
    %702 = vmatpush1.msra.mxu0 0.0
    %703 = vmatprep.subr.mxu0 0.0
    %704 = vmatpush1.msra.mxu0 0.0
    %705 = vmatprep.subr.mxu0 0.0
    %706 = vmatpush1.msra.mxu0 0.0
    %707 = vmatprep.subr.mxu0 0.0
    %708 = vmatpush1.msra.mxu0 0.0
    %709 = vmatprep.subr.mxu0 0.0
    %710 = vmatpush1.msra.mxu0 0.0
    %711 = vmatprep.subr.mxu0 0.0
    %712 = vmatpush1.msra.mxu0 0.0
    %713 = vmatprep.subr.mxu0 0.0
    %714 = vmatpush1.msra.mxu0 0.0
    %715 = vmatprep.subr.mxu0 0.0
    %716 = vmatpush1.msra.mxu0 0.0
    %717 = vmatprep.subr.mxu0 0.0
    %718 = vmatpush1.msra.mxu0 0.0
    %719 = vmatprep.subr.mxu0 0.0
    %720 = vmatpush1.msra.mxu0 0.0
    %721 = vmatprep.subr.mxu0 0.0
    %722 = vmatpush1.msra.mxu0 0.0
    %723 = vmatprep.subr.mxu0 0.0
    %724 = vmatpush1.msra.mxu0 0.0
    %725 = vmatprep.subr.mxu0 0.0
    %726 = vmatpush1.msra.mxu0 0.0
    %727 = vmatprep.subr.mxu0 0.0
    %728 = vmatpush1.msra.mxu0 0.0
    %729 = vmatprep.subr.mxu0 0.0
    %730 = vmatpush1.msra.mxu0 0.0
    %731 = vmatprep.subr.mxu0 0.0
    %732 = vmatpush1.msra.mxu0 0.0
    %733 = vmatprep.subr.mxu0 0.0
    %734 = vmatpush1.msra.mxu0 0.0
    %735 = vmatprep.subr.mxu0 0.0
    %736 = vmatpush1.msra.mxu0 0.0
    %737 = vmatprep.subr.mxu0 0.0
    %738 = vmatpush1.msra.mxu0 0.0
    %739 = vmatprep.subr.mxu0 0.0
    %740 = vmatpush1.msra.mxu0 0.0
    %741 = vmatprep.subr.mxu0 0.0
    %742 = vmatpush1.msra.mxu0 0.0
    %743 = vmatprep.subr.mxu0 0.0
    %744 = vmatpush1.msra.mxu0 0.0
    %745 = vmatprep.subr.mxu0 0.0
    %746 = vmatpush1.msra.mxu0 0.0
    %747 = vmatprep.subr.mxu0 0.0
    %748 = vmatpush1.msra.mxu0 0.0
    %749 = vmatprep.mubr.f32.mxu0 0.0
    %750 = vmatmul.mubr.f32.gmra.mrb[0].mxu0 %v671
    %v751 = vpop.f32.mrb[0].mxu0
    %v752 = vadd.f32 0.0, %v751
    %v753 = vpop.f32.mrb[0].mxu0
    %v754 = vadd.f32 0.0, %v753
    %755 = vdwg.mxu0
    %756 = vmatprep.subr.mxu0 %v683
    %757 = vmatpush1.msra.mxu0 %v680
    %758 = vmatprep.subr.mxu0 0.0
    %759 = vmatpush1.msra.mxu0 0.0
    %760 = vmatprep.subr.mxu0 0.0
    %761 = vmatpush1.msra.mxu0 0.0
    %762 = vmatprep.subr.mxu0 0.0
    %763 = vmatpush1.msra.mxu0 0.0
    %764 = vmatprep.subr.mxu0 0.0
    %765 = vmatpush1.msra.mxu0 0.0
    %766 = vmatprep.subr.mxu0 0.0
    %767 = vmatpush1.msra.mxu0 0.0
    %768 = vmatprep.subr.mxu0 0.0
    %769 = vmatpush1.msra.mxu0 0.0
    %770 = vmatprep.subr.mxu0 0.0
    %771 = vmatpush1.msra.mxu0 0.0
    %772 = vmatprep.subr.mxu0 0.0
    %773 = vmatpush1.msra.mxu0 0.0
    %774 = vmatprep.subr.mxu0 0.0
    %775 = vmatpush1.msra.mxu0 0.0
    %776 = vmatprep.subr.mxu0 0.0
    %777 = vmatpush1.msra.mxu0 0.0
    %778 = vmatprep.subr.mxu0 0.0
    %779 = vmatpush1.msra.mxu0 0.0
    %780 = vmatprep.subr.mxu0 0.0
    %781 = vmatpush1.msra.mxu0 0.0
    %782 = vmatprep.subr.mxu0 0.0
    %783 = vmatpush1.msra.mxu0 0.0
    %784 = vmatprep.subr.mxu0 0.0
    %785 = vmatpush1.msra.mxu0 0.0
    %786 = vmatprep.subr.mxu0 0.0
    %787 = vmatpush1.msra.mxu0 0.0
    %788 = vmatprep.subr.mxu0 0.0
    %789 = vmatpush1.msra.mxu0 0.0
    %790 = vmatprep.subr.mxu0 0.0
    %791 = vmatpush1.msra.mxu0 0.0
    %792 = vmatprep.subr.mxu0 0.0
    %793 = vmatpush1.msra.mxu0 0.0
    %794 = vmatprep.subr.mxu0 0.0
    %795 = vmatpush1.msra.mxu0 0.0
    %796 = vmatprep.subr.mxu0 0.0
    %797 = vmatpush1.msra.mxu0 0.0
    %798 = vmatprep.subr.mxu0 0.0
    %799 = vmatpush1.msra.mxu0 0.0
    %800 = vmatprep.subr.mxu0 0.0
    %801 = vmatpush1.msra.mxu0 0.0
    %802 = vmatprep.subr.mxu0 0.0
    %803 = vmatpush1.msra.mxu0 0.0
    %804 = vmatprep.subr.mxu0 0.0
    %805 = vmatpush1.msra.mxu0 0.0
    %806 = vmatprep.subr.mxu0 0.0
    %807 = vmatpush1.msra.mxu0 0.0
    %808 = vmatprep.subr.mxu0 0.0
    %809 = vmatpush1.msra.mxu0 0.0
    %810 = vmatprep.subr.mxu0 0.0
    %811 = vmatpush1.msra.mxu0 0.0
    %812 = vmatprep.subr.mxu0 0.0
    %813 = vmatpush1.msra.mxu0 0.0
    %814 = vmatprep.subr.mxu0 0.0
    %815 = vmatpush1.msra.mxu0 0.0
    %816 = vmatprep.subr.mxu0 0.0
    %817 = vmatpush1.msra.mxu0 0.0
    %818 = vmatprep.subr.mxu0 0.0
    %819 = vmatpush1.msra.mxu0 0.0
    %820 = vmatprep.mubr.f32.mxu0 0.0
    %821 = vmatmul.mubr.f32.gmra.mrb[0].mxu0 %v671
    %v822 = vpop.f32.mrb[0].mxu0
    %v823 = vadd.f32 0.0, %v822
    %v824 = vpop.f32.mrb[0].mxu0
    %v825 = vadd.f32 0.0, %v824
    %826 = vdwg.mxu0
    %v827 = vadd.f32 %v635, %v752
    %v828 = vadd.f32 %v636, %v754
    %v829 = vadd.f32 %v637, %v823
    %v830 = vadd.f32 %v638, %v825
    %s831 = scalar_lea.vmem %s1, 16
    %v832 = vld [vmem:[%s831] sm:$0xf]
    %v834 = vsel %vm127, %v832, 0
    %v836 = vsel %vm131, %v21, 0
    %v838 = vsel %vm131, %v24, 0
    %v840 = vsel %vm131, %v22, 0
    %v842 = vsel %vm131, %v27, 0
    %844 = vmatprep.subr.mxu0 %v838
    %845 = vmatpush1.msra.mxu0 %v836
    %846 = vmatprep.subr.mxu0 0.0
    %847 = vmatpush1.msra.mxu0 0.0
    %848 = vmatprep.subr.mxu0 0.0
    %849 = vmatpush1.msra.mxu0 0.0
    %850 = vmatprep.subr.mxu0 0.0
    %851 = vmatpush1.msra.mxu0 0.0
    %852 = vmatprep.subr.mxu0 0.0
    %853 = vmatpush1.msra.mxu0 0.0
    %854 = vmatprep.subr.mxu0 0.0
    %855 = vmatpush1.msra.mxu0 0.0
    %856 = vmatprep.subr.mxu0 0.0
    %857 = vmatpush1.msra.mxu0 0.0
    %858 = vmatprep.subr.mxu0 0.0
    %859 = vmatpush1.msra.mxu0 0.0
    %860 = vmatprep.subr.mxu0 0.0
    %861 = vmatpush1.msra.mxu0 0.0
    %862 = vmatprep.subr.mxu0 0.0
    %863 = vmatpush1.msra.mxu0 0.0
    %864 = vmatprep.subr.mxu0 0.0
    %865 = vmatpush1.msra.mxu0 0.0
    %866 = vmatprep.subr.mxu0 0.0
    %867 = vmatpush1.msra.mxu0 0.0
    %868 = vmatprep.subr.mxu0 0.0
    %869 = vmatpush1.msra.mxu0 0.0
    %870 = vmatprep.subr.mxu0 0.0
    %871 = vmatpush1.msra.mxu0 0.0
    %872 = vmatprep.subr.mxu0 0.0
    %873 = vmatpush1.msra.mxu0 0.0
    %874 = vmatprep.subr.mxu0 0.0
    %875 = vmatpush1.msra.mxu0 0.0
    %876 = vmatprep.subr.mxu0 0.0
    %877 = vmatpush1.msra.mxu0 0.0
    %878 = vmatprep.subr.mxu0 0.0
    %879 = vmatpush1.msra.mxu0 0.0
    %880 = vmatprep.subr.mxu0 0.0
    %881 = vmatpush1.msra.mxu0 0.0
    %882 = vmatprep.subr.mxu0 0.0
    %883 = vmatpush1.msra.mxu0 0.0
    %884 = vmatprep.subr.mxu0 0.0
    %885 = vmatpush1.msra.mxu0 0.0
    %886 = vmatprep.subr.mxu0 0.0
    %887 = vmatpush1.msra.mxu0 0.0
    %888 = vmatprep.subr.mxu0 0.0
    %889 = vmatpush1.msra.mxu0 0.0
    %890 = vmatprep.subr.mxu0 0.0
    %891 = vmatpush1.msra.mxu0 0.0
    %892 = vmatprep.subr.mxu0 0.0
    %893 = vmatpush1.msra.mxu0 0.0
    %894 = vmatprep.subr.mxu0 0.0
    %895 = vmatpush1.msra.mxu0 0.0
    %896 = vmatprep.subr.mxu0 0.0
    %897 = vmatpush1.msra.mxu0 0.0
    %898 = vmatprep.subr.mxu0 0.0
    %899 = vmatpush1.msra.mxu0 0.0
    %900 = vmatprep.subr.mxu0 0.0
    %901 = vmatpush1.msra.mxu0 0.0
    %902 = vmatprep.subr.mxu0 0.0
    %903 = vmatpush1.msra.mxu0 0.0
    %904 = vmatprep.subr.mxu0 0.0
    %905 = vmatpush1.msra.mxu0 0.0
    %906 = vmatprep.subr.mxu0 0.0
    %907 = vmatpush1.msra.mxu0 0.0
    %908 = vmatprep.mubr.f32.mxu0 0.0
    %909 = vmatmul.mubr.f32.gmra.mrb[0].mxu0 %v834
    %v910 = vpop.f32.mrb[0].mxu0
    %v911 = vadd.f32 0.0, %v910
    %v912 = vpop.f32.mrb[0].mxu0
    %v913 = vadd.f32 0.0, %v912
    %914 = vdwg.mxu0
    %915 = vmatprep.subr.mxu0 %v842
    %916 = vmatpush1.msra.mxu0 %v840
    %917 = vmatprep.subr.mxu0 0.0
    %918 = vmatpush1.msra.mxu0 0.0
    %919 = vmatprep.subr.mxu0 0.0
    %920 = vmatpush1.msra.mxu0 0.0
    %921 = vmatprep.subr.mxu0 0.0
    %922 = vmatpush1.msra.mxu0 0.0
    %923 = vmatprep.subr.mxu0 0.0
    %924 = vmatpush1.msra.mxu0 0.0
    %925 = vmatprep.subr.mxu0 0.0
    %926 = vmatpush1.msra.mxu0 0.0
    %927 = vmatprep.subr.mxu0 0.0
    %928 = vmatpush1.msra.mxu0 0.0
    %929 = vmatprep.subr.mxu0 0.0
    %930 = vmatpush1.msra.mxu0 0.0
    %931 = vmatprep.subr.mxu0 0.0
    %932 = vmatpush1.msra.mxu0 0.0
    %933 = vmatprep.subr.mxu0 0.0
    %934 = vmatpush1.msra.mxu0 0.0
    %935 = vmatprep.subr.mxu0 0.0
    %936 = vmatpush1.msra.mxu0 0.0
    %937 = vmatprep.subr.mxu0 0.0
    %938 = vmatpush1.msra.mxu0 0.0
    %939 = vmatprep.subr.mxu0 0.0
    %940 = vmatpush1.msra.mxu0 0.0
    %941 = vmatprep.subr.mxu0 0.0
    %942 = vmatpush1.msra.mxu0 0.0
    %943 = vmatprep.subr.mxu0 0.0
    %944 = vmatpush1.msra.mxu0 0.0
    %945 = vmatprep.subr.mxu0 0.0
    %946 = vmatpush1.msra.mxu0 0.0
    %947 = vmatprep.subr.mxu0 0.0
    %948 = vmatpush1.msra.mxu0 0.0
    %949 = vmatprep.subr.mxu0 0.0
    %950 = vmatpush1.msra.mxu0 0.0
    %951 = vmatprep.subr.mxu0 0.0
    %952 = vmatpush1.msra.mxu0 0.0
    %953 = vmatprep.subr.mxu0 0.0
    %954 = vmatpush1.msra.mxu0 0.0
    %955 = vmatprep.subr.mxu0 0.0
    %956 = vmatpush1.msra.mxu0 0.0
    %957 = vmatprep.subr.mxu0 0.0
    %958 = vmatpush1.msra.mxu0 0.0
    %959 = vmatprep.subr.mxu0 0.0
    %960 = vmatpush1.msra.mxu0 0.0
    %961 = vmatprep.subr.mxu0 0.0
    %962 = vmatpush1.msra.mxu0 0.0
    %963 = vmatprep.subr.mxu0 0.0
    %964 = vmatpush1.msra.mxu0 0.0
    %965 = vmatprep.subr.mxu0 0.0
    %966 = vmatpush1.msra.mxu0 0.0
    %967 = vmatprep.subr.mxu0 0.0
    %968 = vmatpush1.msra.mxu0 0.0
    %969 = vmatprep.subr.mxu0 0.0
    %970 = vmatpush1.msra.mxu0 0.0
    %971 = vmatprep.subr.mxu0 0.0
    %972 = vmatpush1.msra.mxu0 0.0
    %973 = vmatprep.subr.mxu0 0.0
    %974 = vmatpush1.msra.mxu0 0.0
    %975 = vmatprep.subr.mxu0 0.0
    %976 = vmatpush1.msra.mxu0 0.0
    %977 = vmatprep.subr.mxu0 0.0
    %978 = vmatpush1.msra.mxu0 0.0
    %979 = vmatprep.mubr.f32.mxu0 0.0
    %980 = vmatmul.mubr.f32.gmra.mrb[0].mxu0 %v834
    %v981 = vpop.f32.mrb[0].mxu0
    %v982 = vadd.f32 0.0, %v981
    %v983 = vpop.f32.mrb[0].mxu0
    %v984 = vadd.f32 0.0, %v983
    %985 = vdwg.mxu0
    %v986 = vadd.f32 %v827, %v911
    %v987 = vadd.f32 %v828, %v913
    %v988 = vadd.f32 %v829, %v982
    %v989 = vadd.f32 %v830, %v984
    %990 = vrot.lane.b32.xlu0 %v21, 127
    %v991 = vpop.permute.xlu0 %990
    %992 = vrot.lane.b32.xlu0 %v24, 127
    %v993 = vpop.permute.xlu0 %992
    %994 = vrot.lane.b32.xlu0 %v22, 127
    %v995 = vpop.permute.xlu0 %994
    %996 = vrot.lane.b32.xlu0 %v27, 127
    %v997 = vpop.permute.xlu0 %996
    %vm998 = vcmask 1039360
    %v999 = vsel %vm998, %v991, %v993
    %v1000 = vsel %vm998, %v993, %v995
    %v1001 = vsel %vm998, %v995, %v997
    %v1006 = vsel %vm998, %v997, 0.0
    %v1007 = vsel %vm58, 1, 0
    %v1008 = vsel %vm59, 1, 0
    %v1009 = vsel %vm60, 1, 0
    %v1010 = vsel %vm61, 1, 0
    %vm1011 = vcmp.eq.s32.totalorder %v1007, 1
    %vm1012 = vcmp.eq.s32.totalorder %v1008, 1
    %vm1013 = vcmp.eq.s32.totalorder %v1009, 1
    %vm1014 = vcmp.eq.s32.totalorder %v1010, 1
    %v1015 = vsel %vm1011, %v999, 0.0
    %v1016 = vsel %vm1012, %v1000, 0.0
    %v1017 = vsel %vm1013, %v1001, 0.0
    %v1018 = vsel %vm1014, %v1006, 0.0
    %s1019 = scalar_lea.vmem %s1, 20
    %v1020 = vld [vmem:[%s1019] sm:$0xf]
    %v1022 = vsel %vm127, %v1020, 0
    %v1025 = vsel %vm131, %v1015, 0
    %v1028 = vsel %vm131, %v1016, 0
    %v1031 = vsel %vm131, %v1017, 0
    %v1034 = vsel %vm131, %v1018, 0
    %1036 = vmatprep.subr.mxu0 %v1028
    %1037 = vmatpush1.msra.mxu0 %v1025
    %1038 = vmatprep.subr.mxu0 0.0
    %1039 = vmatpush1.msra.mxu0 0.0
    %1040 = vmatprep.subr.mxu0 0.0
    %1041 = vmatpush1.msra.mxu0 0.0
    %1042 = vmatprep.subr.mxu0 0.0
    %1043 = vmatpush1.msra.mxu0 0.0
    %1044 = vmatprep.subr.mxu0 0.0
    %1045 = vmatpush1.msra.mxu0 0.0
    %1046 = vmatprep.subr.mxu0 0.0
    %1047 = vmatpush1.msra.mxu0 0.0
    %1048 = vmatprep.subr.mxu0 0.0
    %1049 = vmatpush1.msra.mxu0 0.0
    %1050 = vmatprep.subr.mxu0 0.0
    %1051 = vmatpush1.msra.mxu0 0.0
    %1052 = vmatprep.subr.mxu0 0.0
    %1053 = vmatpush1.msra.mxu0 0.0
    %1054 = vmatprep.subr.mxu0 0.0
    %1055 = vmatpush1.msra.mxu0 0.0
    %1056 = vmatprep.subr.mxu0 0.0
    %1057 = vmatpush1.msra.mxu0 0.0
    %1058 = vmatprep.subr.mxu0 0.0
    %1059 = vmatpush1.msra.mxu0 0.0
    %1060 = vmatprep.subr.mxu0 0.0
    %1061 = vmatpush1.msra.mxu0 0.0
    %1062 = vmatprep.subr.mxu0 0.0
    %1063 = vmatpush1.msra.mxu0 0.0
    %1064 = vmatprep.subr.mxu0 0.0
    %1065 = vmatpush1.msra.mxu0 0.0
    %1066 = vmatprep.subr.mxu0 0.0
    %1067 = vmatpush1.msra.mxu0 0.0
    %1068 = vmatprep.subr.mxu0 0.0
    %1069 = vmatpush1.msra.mxu0 0.0
    %1070 = vmatprep.subr.mxu0 0.0
    %1071 = vmatpush1.msra.mxu0 0.0
    %1072 = vmatprep.subr.mxu0 0.0
    %1073 = vmatpush1.msra.mxu0 0.0
    %1074 = vmatprep.subr.mxu0 0.0
    %1075 = vmatpush1.msra.mxu0 0.0
    %1076 = vmatprep.subr.mxu0 0.0
    %1077 = vmatpush1.msra.mxu0 0.0
    %1078 = vmatprep.subr.mxu0 0.0
    %1079 = vmatpush1.msra.mxu0 0.0
    %1080 = vmatprep.subr.mxu0 0.0
    %1081 = vmatpush1.msra.mxu0 0.0
    %1082 = vmatprep.subr.mxu0 0.0
    %1083 = vmatpush1.msra.mxu0 0.0
    %1084 = vmatprep.subr.mxu0 0.0
    %1085 = vmatpush1.msra.mxu0 0.0
    %1086 = vmatprep.subr.mxu0 0.0
    %1087 = vmatpush1.msra.mxu0 0.0
    %1088 = vmatprep.subr.mxu0 0.0
    %1089 = vmatpush1.msra.mxu0 0.0
    %1090 = vmatprep.subr.mxu0 0.0
    %1091 = vmatpush1.msra.mxu0 0.0
    %1092 = vmatprep.subr.mxu0 0.0
    %1093 = vmatpush1.msra.mxu0 0.0
    %1094 = vmatprep.subr.mxu0 0.0
    %1095 = vmatpush1.msra.mxu0 0.0
    %1096 = vmatprep.subr.mxu0 0.0
    %1097 = vmatpush1.msra.mxu0 0.0
    %1098 = vmatprep.subr.mxu0 0.0
    %1099 = vmatpush1.msra.mxu0 0.0
    %1100 = vmatprep.mubr.f32.mxu0 0.0
    %1101 = vmatmul.mubr.f32.gmra.mrb[0].mxu0 %v1022
    %v1102 = vpop.f32.mrb[0].mxu0
    %v1103 = vadd.f32 0.0, %v1102
    %v1104 = vpop.f32.mrb[0].mxu0
    %v1105 = vadd.f32 0.0, %v1104
    %1106 = vdwg.mxu0
    %1107 = vmatprep.subr.mxu0 %v1034
    %1108 = vmatpush1.msra.mxu0 %v1031
    %1109 = vmatprep.subr.mxu0 0.0
    %1110 = vmatpush1.msra.mxu0 0.0
    %1111 = vmatprep.subr.mxu0 0.0
    %1112 = vmatpush1.msra.mxu0 0.0
    %1113 = vmatprep.subr.mxu0 0.0
    %1114 = vmatpush1.msra.mxu0 0.0
    %1115 = vmatprep.subr.mxu0 0.0
    %1116 = vmatpush1.msra.mxu0 0.0
    %1117 = vmatprep.subr.mxu0 0.0
    %1118 = vmatpush1.msra.mxu0 0.0
    %1119 = vmatprep.subr.mxu0 0.0
    %1120 = vmatpush1.msra.mxu0 0.0
    %1121 = vmatprep.subr.mxu0 0.0
    %1122 = vmatpush1.msra.mxu0 0.0
    %1123 = vmatprep.subr.mxu0 0.0
    %1124 = vmatpush1.msra.mxu0 0.0
    %1125 = vmatprep.subr.mxu0 0.0
    %1126 = vmatpush1.msra.mxu0 0.0
    %1127 = vmatprep.subr.mxu0 0.0
    %1128 = vmatpush1.msra.mxu0 0.0
    %1129 = vmatprep.subr.mxu0 0.0
    %1130 = vmatpush1.msra.mxu0 0.0
    %1131 = vmatprep.subr.mxu0 0.0
    %1132 = vmatpush1.msra.mxu0 0.0
    %1133 = vmatprep.subr.mxu0 0.0
    %1134 = vmatpush1.msra.mxu0 0.0
    %1135 = vmatprep.subr.mxu0 0.0
    %1136 = vmatpush1.msra.mxu0 0.0
    %1137 = vmatprep.subr.mxu0 0.0
    %1138 = vmatpush1.msra.mxu0 0.0
    %1139 = vmatprep.subr.mxu0 0.0
    %1140 = vmatpush1.msra.mxu0 0.0
    %1141 = vmatprep.subr.mxu0 0.0
    %1142 = vmatpush1.msra.mxu0 0.0
    %1143 = vmatprep.subr.mxu0 0.0
    %1144 = vmatpush1.msra.mxu0 0.0
    %1145 = vmatprep.subr.mxu0 0.0
    %1146 = vmatpush1.msra.mxu0 0.0
    %1147 = vmatprep.subr.mxu0 0.0
    %1148 = vmatpush1.msra.mxu0 0.0
    %1149 = vmatprep.subr.mxu0 0.0
    %1150 = vmatpush1.msra.mxu0 0.0
    %1151 = vmatprep.subr.mxu0 0.0
    %1152 = vmatpush1.msra.mxu0 0.0
    %1153 = vmatprep.subr.mxu0 0.0
    %1154 = vmatpush1.msra.mxu0 0.0
    %1155 = vmatprep.subr.mxu0 0.0
    %1156 = vmatpush1.msra.mxu0 0.0
    %1157 = vmatprep.subr.mxu0 0.0
    %1158 = vmatpush1.msra.mxu0 0.0
    %1159 = vmatprep.subr.mxu0 0.0
    %1160 = vmatpush1.msra.mxu0 0.0
    %1161 = vmatprep.subr.mxu0 0.0
    %1162 = vmatpush1.msra.mxu0 0.0
    %1163 = vmatprep.subr.mxu0 0.0
    %1164 = vmatpush1.msra.mxu0 0.0
    %1165 = vmatprep.subr.mxu0 0.0
    %1166 = vmatpush1.msra.mxu0 0.0
    %1167 = vmatprep.subr.mxu0 0.0
    %1168 = vmatpush1.msra.mxu0 0.0
    %1169 = vmatprep.subr.mxu0 0.0
    %1170 = vmatpush1.msra.mxu0 0.0
    %1171 = vmatprep.mubr.f32.mxu0 0.0
    %1172 = vmatmul.mubr.f32.gmra.mrb[0].mxu0 %v1022
    %v1173 = vpop.f32.mrb[0].mxu0
    %v1174 = vadd.f32 0.0, %v1173
    %v1175 = vpop.f32.mrb[0].mxu0
    %v1176 = vadd.f32 0.0, %v1175
    %1177 = vdwg.mxu0
    %v1178 = vadd.f32 %v986, %v1103
    %v1179 = vadd.f32 %v987, %v1105
    %v1180 = vadd.f32 %v988, %v1174
    %v1181 = vadd.f32 %v989, %v1176
    %1182 = vrot.lane.b32.xlu0 %v21, 113
    %v1183 = vpop.permute.xlu0 %1182
    %1184 = vrot.lane.b32.xlu0 %v24, 113
    %v1185 = vpop.permute.xlu0 %1184
    %1186 = vrot.lane.b32.xlu0 %v22, 113
    %v1187 = vpop.permute.xlu0 %1186
    %1188 = vrot.lane.b32.xlu0 %v27, 113
    %v1189 = vpop.permute.xlu0 %1188
    %vm1190 = vcmask 924672
    %v1191 = vsel %vm1190, %v1183, %v1185
    %v1192 = vsel %vm1190, %v1185, %v1187
    %v1193 = vsel %vm1190, %v1187, %v1189
    %v1198 = vsel %vm1190, %v1189, 0.0
    %vm1199 = vmand %vm50, %vm54
    %vm1200 = vmand %vm51, %vm55
    %vm1201 = vmand %vm52, %vm56
    %vm1202 = vmand %vm53, %vm57
    %v1203 = vsel %vm1199, 1, 0
    %v1204 = vsel %vm1200, 1, 0
    %v1205 = vsel %vm1201, 1, 0
    %v1206 = vsel %vm1202, 1, 0
    %vm1207 = vcmp.eq.s32.totalorder %v1203, 1
    %vm1208 = vcmp.eq.s32.totalorder %v1204, 1
    %vm1209 = vcmp.eq.s32.totalorder %v1205, 1
    %vm1210 = vcmp.eq.s32.totalorder %v1206, 1
    %v1211 = vsel %vm1207, %v1191, 0.0
    %v1212 = vsel %vm1208, %v1192, 0.0
    %v1213 = vsel %vm1209, %v1193, 0.0
    %v1214 = vsel %vm1210, %v1198, 0.0
    %s1215 = scalar_lea.vmem %s1, 24
    %v1216 = vld [vmem:[%s1215] sm:$0xf]
    %v1218 = vsel %vm127, %v1216, 0
    %v1221 = vsel %vm131, %v1211, 0
    %v1224 = vsel %vm131, %v1212, 0
    %v1227 = vsel %vm131, %v1213, 0
    %v1230 = vsel %vm131, %v1214, 0
    %1232 = vmatprep.subr.mxu0 %v1224
    %1233 = vmatpush1.msra.mxu0 %v1221
    %1234 = vmatprep.subr.mxu0 0.0
    %1235 = vmatpush1.msra.mxu0 0.0
    %1236 = vmatprep.subr.mxu0 0.0
    %1237 = vmatpush1.msra.mxu0 0.0
    %1238 = vmatprep.subr.mxu0 0.0
    %1239 = vmatpush1.msra.mxu0 0.0
    %1240 = vmatprep.subr.mxu0 0.0
    %1241 = vmatpush1.msra.mxu0 0.0
    %1242 = vmatprep.subr.mxu0 0.0
    %1243 = vmatpush1.msra.mxu0 0.0
    %1244 = vmatprep.subr.mxu0 0.0
    %1245 = vmatpush1.msra.mxu0 0.0
    %1246 = vmatprep.subr.mxu0 0.0
    %1247 = vmatpush1.msra.mxu0 0.0
    %1248 = vmatprep.subr.mxu0 0.0
    %1249 = vmatpush1.msra.mxu0 0.0
    %1250 = vmatprep.subr.mxu0 0.0
    %1251 = vmatpush1.msra.mxu0 0.0
    %1252 = vmatprep.subr.mxu0 0.0
    %1253 = vmatpush1.msra.mxu0 0.0
    %1254 = vmatprep.subr.mxu0 0.0
    %1255 = vmatpush1.msra.mxu0 0.0
    %1256 = vmatprep.subr.mxu0 0.0
    %1257 = vmatpush1.msra.mxu0 0.0
    %1258 = vmatprep.subr.mxu0 0.0
    %1259 = vmatpush1.msra.mxu0 0.0
    %1260 = vmatprep.subr.mxu0 0.0
    %1261 = vmatpush1.msra.mxu0 0.0
    %1262 = vmatprep.subr.mxu0 0.0
    %1263 = vmatpush1.msra.mxu0 0.0
    %1264 = vmatprep.subr.mxu0 0.0
    %1265 = vmatpush1.msra.mxu0 0.0
    %1266 = vmatprep.subr.mxu0 0.0
    %1267 = vmatpush1.msra.mxu0 0.0
    %1268 = vmatprep.subr.mxu0 0.0
    %1269 = vmatpush1.msra.mxu0 0.0
    %1270 = vmatprep.subr.mxu0 0.0
    %1271 = vmatpush1.msra.mxu0 0.0
    %1272 = vmatprep.subr.mxu0 0.0
    %1273 = vmatpush1.msra.mxu0 0.0
    %1274 = vmatprep.subr.mxu0 0.0
    %1275 = vmatpush1.msra.mxu0 0.0
    %1276 = vmatprep.subr.mxu0 0.0
    %1277 = vmatpush1.msra.mxu0 0.0
    %1278 = vmatprep.subr.mxu0 0.0
    %1279 = vmatpush1.msra.mxu0 0.0
    %1280 = vmatprep.subr.mxu0 0.0
    %1281 = vmatpush1.msra.mxu0 0.0
    %1282 = vmatprep.subr.mxu0 0.0
    %1283 = vmatpush1.msra.mxu0 0.0
    %1284 = vmatprep.subr.mxu0 0.0
    %1285 = vmatpush1.msra.mxu0 0.0
    %1286 = vmatprep.subr.mxu0 0.0
    %1287 = vmatpush1.msra.mxu0 0.0
    %1288 = vmatprep.subr.mxu0 0.0
    %1289 = vmatpush1.msra.mxu0 0.0
    %1290 = vmatprep.subr.mxu0 0.0
    %1291 = vmatpush1.msra.mxu0 0.0
    %1292 = vmatprep.subr.mxu0 0.0
    %1293 = vmatpush1.msra.mxu0 0.0
    %1294 = vmatprep.subr.mxu0 0.0
    %1295 = vmatpush1.msra.mxu0 0.0
    %1296 = vmatprep.mubr.f32.mxu0 0.0
    %1297 = vmatmul.mubr.f32.gmra.mrb[0].mxu0 %v1218
    %v1298 = vpop.f32.mrb[0].mxu0
    %v1299 = vadd.f32 0.0, %v1298
    %v1300 = vpop.f32.mrb[0].mxu0
    %v1301 = vadd.f32 0.0, %v1300
    %1302 = vdwg.mxu0
    %1303 = vmatprep.subr.mxu0 %v1230
    %1304 = vmatpush1.msra.mxu0 %v1227
    %1305 = vmatprep.subr.mxu0 0.0
    %1306 = vmatpush1.msra.mxu0 0.0
    %1307 = vmatprep.subr.mxu0 0.0
    %1308 = vmatpush1.msra.mxu0 0.0
    %1309 = vmatprep.subr.mxu0 0.0
    %1310 = vmatpush1.msra.mxu0 0.0
    %1311 = vmatprep.subr.mxu0 0.0
    %1312 = vmatpush1.msra.mxu0 0.0
    %1313 = vmatprep.subr.mxu0 0.0
    %1314 = vmatpush1.msra.mxu0 0.0
    %1315 = vmatprep.subr.mxu0 0.0
    %1316 = vmatpush1.msra.mxu0 0.0
    %1317 = vmatprep.subr.mxu0 0.0
    %1318 = vmatpush1.msra.mxu0 0.0
    %1319 = vmatprep.subr.mxu0 0.0
    %1320 = vmatpush1.msra.mxu0 0.0
    %1321 = vmatprep.subr.mxu0 0.0
    %1322 = vmatpush1.msra.mxu0 0.0
    %1323 = vmatprep.subr.mxu0 0.0
    %1324 = vmatpush1.msra.mxu0 0.0
    %1325 = vmatprep.subr.mxu0 0.0
    %1326 = vmatpush1.msra.mxu0 0.0
    %1327 = vmatprep.subr.mxu0 0.0
    %1328 = vmatpush1.msra.mxu0 0.0
    %1329 = vmatprep.subr.mxu0 0.0
    %1330 = vmatpush1.msra.mxu0 0.0
    %1331 = vmatprep.subr.mxu0 0.0
    %1332 = vmatpush1.msra.mxu0 0.0
    %1333 = vmatprep.subr.mxu0 0.0
    %1334 = vmatpush1.msra.mxu0 0.0
    %1335 = vmatprep.subr.mxu0 0.0
    %1336 = vmatpush1.msra.mxu0 0.0
    %1337 = vmatprep.subr.mxu0 0.0
    %1338 = vmatpush1.msra.mxu0 0.0
    %1339 = vmatprep.subr.mxu0 0.0
    %1340 = vmatpush1.msra.mxu0 0.0
    %1341 = vmatprep.subr.mxu0 0.0
    %1342 = vmatpush1.msra.mxu0 0.0
    %1343 = vmatprep.subr.mxu0 0.0
    %1344 = vmatpush1.msra.mxu0 0.0
    %1345 = vmatprep.subr.mxu0 0.0
    %1346 = vmatpush1.msra.mxu0 0.0
    %1347 = vmatprep.subr.mxu0 0.0
    %1348 = vmatpush1.msra.mxu0 0.0
    %1349 = vmatprep.subr.mxu0 0.0
    %1350 = vmatpush1.msra.mxu0 0.0
    %1351 = vmatprep.subr.mxu0 0.0
    %1352 = vmatpush1.msra.mxu0 0.0
    %1353 = vmatprep.subr.mxu0 0.0
    %1354 = vmatpush1.msra.mxu0 0.0
    %1355 = vmatprep.subr.mxu0 0.0
    %1356 = vmatpush1.msra.mxu0 0.0
    %1357 = vmatprep.subr.mxu0 0.0
    %1358 = vmatpush1.msra.mxu0 0.0
    %1359 = vmatprep.subr.mxu0 0.0
    %1360 = vmatpush1.msra.mxu0 0.0
    %1361 = vmatprep.subr.mxu0 0.0
    %1362 = vmatpush1.msra.mxu0 0.0
    %1363 = vmatprep.subr.mxu0 0.0
    %1364 = vmatpush1.msra.mxu0 0.0
    %1365 = vmatprep.subr.mxu0 0.0
    %1366 = vmatpush1.msra.mxu0 0.0
    %1367 = vmatprep.mubr.f32.mxu0 0.0
    %1368 = vmatmul.mubr.f32.gmra.mrb[0].mxu0 %v1218
    %v1369 = vpop.f32.mrb[0].mxu0
    %v1370 = vadd.f32 0.0, %v1369
    %v1371 = vpop.f32.mrb[0].mxu0
    %v1372 = vadd.f32 0.0, %v1371
    %1373 = vdwg.mxu0
    %v1374 = vadd.f32 %v1178, %v1299
    %v1375 = vadd.f32 %v1179, %v1301
    %v1376 = vadd.f32 %v1180, %v1370
    %v1377 = vadd.f32 %v1181, %v1372
    %1378 = vrot.lane.b32.xlu0 %v21, 112
    %v1379 = vpop.permute.xlu0 %1378
    %1380 = vrot.lane.b32.xlu0 %v24, 112
    %v1381 = vpop.permute.xlu0 %1380
    %1382 = vrot.lane.b32.xlu0 %v22, 112
    %v1383 = vpop.permute.xlu0 %1382
    %1384 = vrot.lane.b32.xlu0 %v27, 112
    %v1385 = vpop.permute.xlu0 %1384
    %vm1386 = vcmask 916480
    %v1387 = vsel %vm1386, %v1379, %v1381
    %v1388 = vsel %vm1386, %v1381, %v1383
    %v1389 = vsel %vm1386, %v1383, %v1385
    %v1394 = vsel %vm1386, %v1385, 0.0
    %v1395 = vsel %vm50, 1, 0
    %v1396 = vsel %vm51, 1, 0
    %v1397 = vsel %vm52, 1, 0
    %v1398 = vsel %vm53, 1, 0
    %vm1399 = vcmp.eq.s32.totalorder %v1395, 1
    %vm1400 = vcmp.eq.s32.totalorder %v1396, 1
    %vm1401 = vcmp.eq.s32.totalorder %v1397, 1
    %vm1402 = vcmp.eq.s32.totalorder %v1398, 1
    %v1403 = vsel %vm1399, %v1387, 0.0
    %v1404 = vsel %vm1400, %v1388, 0.0
    %v1405 = vsel %vm1401, %v1389, 0.0
    %v1406 = vsel %vm1402, %v1394, 0.0
    %s1407 = scalar_lea.vmem %s1, 28
    %v1408 = vld [vmem:[%s1407] sm:$0xf]
    %v1410 = vsel %vm127, %v1408, 0
    %v1413 = vsel %vm131, %v1403, 0
    %v1416 = vsel %vm131, %v1404, 0
    %v1419 = vsel %vm131, %v1405, 0
    %v1422 = vsel %vm131, %v1406, 0
    %1424 = vmatprep.subr.mxu0 %v1416
    %1425 = vmatpush1.msra.mxu0 %v1413
    %1426 = vmatprep.subr.mxu0 0.0
    %1427 = vmatpush1.msra.mxu0 0.0
    %1428 = vmatprep.subr.mxu0 0.0
    %1429 = vmatpush1.msra.mxu0 0.0
    %1430 = vmatprep.subr.mxu0 0.0
    %1431 = vmatpush1.msra.mxu0 0.0
    %1432 = vmatprep.subr.mxu0 0.0
    %1433 = vmatpush1.msra.mxu0 0.0
    %1434 = vmatprep.subr.mxu0 0.0
    %1435 = vmatpush1.msra.mxu0 0.0
    %1436 = vmatprep.subr.mxu0 0.0
    %1437 = vmatpush1.msra.mxu0 0.0
    %1438 = vmatprep.subr.mxu0 0.0
    %1439 = vmatpush1.msra.mxu0 0.0
    %1440 = vmatprep.subr.mxu0 0.0
    %1441 = vmatpush1.msra.mxu0 0.0
    %1442 = vmatprep.subr.mxu0 0.0
    %1443 = vmatpush1.msra.mxu0 0.0
    %1444 = vmatprep.subr.mxu0 0.0
    %1445 = vmatpush1.msra.mxu0 0.0
    %1446 = vmatprep.subr.mxu0 0.0
    %1447 = vmatpush1.msra.mxu0 0.0
    %1448 = vmatprep.subr.mxu0 0.0
    %1449 = vmatpush1.msra.mxu0 0.0
    %1450 = vmatprep.subr.mxu0 0.0
    %1451 = vmatpush1.msra.mxu0 0.0
    %1452 = vmatprep.subr.mxu0 0.0
    %1453 = vmatpush1.msra.mxu0 0.0
    %1454 = vmatprep.subr.mxu0 0.0
    %1455 = vmatpush1.msra.mxu0 0.0
    %1456 = vmatprep.subr.mxu0 0.0
    %1457 = vmatpush1.msra.mxu0 0.0
    %1458 = vmatprep.subr.mxu0 0.0
    %1459 = vmatpush1.msra.mxu0 0.0
    %1460 = vmatprep.subr.mxu0 0.0
    %1461 = vmatpush1.msra.mxu0 0.0
    %1462 = vmatprep.subr.mxu0 0.0
    %1463 = vmatpush1.msra.mxu0 0.0
    %1464 = vmatprep.subr.mxu0 0.0
    %1465 = vmatpush1.msra.mxu0 0.0
    %1466 = vmatprep.subr.mxu0 0.0
    %1467 = vmatpush1.msra.mxu0 0.0
    %1468 = vmatprep.subr.mxu0 0.0
    %1469 = vmatpush1.msra.mxu0 0.0
    %1470 = vmatprep.subr.mxu0 0.0
    %1471 = vmatpush1.msra.mxu0 0.0
    %1472 = vmatprep.subr.mxu0 0.0
    %1473 = vmatpush1.msra.mxu0 0.0
    %1474 = vmatprep.subr.mxu0 0.0
    %1475 = vmatpush1.msra.mxu0 0.0
    %1476 = vmatprep.subr.mxu0 0.0
    %1477 = vmatpush1.msra.mxu0 0.0
    %1478 = vmatprep.subr.mxu0 0.0
    %1479 = vmatpush1.msra.mxu0 0.0
    %1480 = vmatprep.subr.mxu0 0.0
    %1481 = vmatpush1.msra.mxu0 0.0
    %1482 = vmatprep.subr.mxu0 0.0
    %1483 = vmatpush1.msra.mxu0 0.0
    %1484 = vmatprep.subr.mxu0 0.0
    %1485 = vmatpush1.msra.mxu0 0.0
    %1486 = vmatprep.subr.mxu0 0.0
    %1487 = vmatpush1.msra.mxu0 0.0
    %1488 = vmatprep.mubr.f32.mxu0 0.0
    %1489 = vmatmul.mubr.f32.gmra.mrb[0].mxu0 %v1410
    %v1490 = vpop.f32.mrb[0].mxu0
    %v1491 = vadd.f32 0.0, %v1490
    %v1492 = vpop.f32.mrb[0].mxu0
    %v1493 = vadd.f32 0.0, %v1492
    %1494 = vdwg.mxu0
    %1495 = vmatprep.subr.mxu0 %v1422
    %1496 = vmatpush1.msra.mxu0 %v1419
    %1497 = vmatprep.subr.mxu0 0.0
    %1498 = vmatpush1.msra.mxu0 0.0
    %1499 = vmatprep.subr.mxu0 0.0
    %1500 = vmatpush1.msra.mxu0 0.0
    %1501 = vmatprep.subr.mxu0 0.0
    %1502 = vmatpush1.msra.mxu0 0.0
    %1503 = vmatprep.subr.mxu0 0.0
    %1504 = vmatpush1.msra.mxu0 0.0
    %1505 = vmatprep.subr.mxu0 0.0
    %1506 = vmatpush1.msra.mxu0 0.0
    %1507 = vmatprep.subr.mxu0 0.0
    %1508 = vmatpush1.msra.mxu0 0.0
    %1509 = vmatprep.subr.mxu0 0.0
    %1510 = vmatpush1.msra.mxu0 0.0
    %1511 = vmatprep.subr.mxu0 0.0
    %1512 = vmatpush1.msra.mxu0 0.0
    %1513 = vmatprep.subr.mxu0 0.0
    %1514 = vmatpush1.msra.mxu0 0.0
    %1515 = vmatprep.subr.mxu0 0.0
    %1516 = vmatpush1.msra.mxu0 0.0
    %1517 = vmatprep.subr.mxu0 0.0
    %1518 = vmatpush1.msra.mxu0 0.0
    %1519 = vmatprep.subr.mxu0 0.0
    %1520 = vmatpush1.msra.mxu0 0.0
    %1521 = vmatprep.subr.mxu0 0.0
    %1522 = vmatpush1.msra.mxu0 0.0
    %1523 = vmatprep.subr.mxu0 0.0
    %1524 = vmatpush1.msra.mxu0 0.0
    %1525 = vmatprep.subr.mxu0 0.0
    %1526 = vmatpush1.msra.mxu0 0.0
    %1527 = vmatprep.subr.mxu0 0.0
    %1528 = vmatpush1.msra.mxu0 0.0
    %1529 = vmatprep.subr.mxu0 0.0
    %1530 = vmatpush1.msra.mxu0 0.0
    %1531 = vmatprep.subr.mxu0 0.0
    %1532 = vmatpush1.msra.mxu0 0.0
    %1533 = vmatprep.subr.mxu0 0.0
    %1534 = vmatpush1.msra.mxu0 0.0
    %1535 = vmatprep.subr.mxu0 0.0
    %1536 = vmatpush1.msra.mxu0 0.0
    %1537 = vmatprep.subr.mxu0 0.0
    %1538 = vmatpush1.msra.mxu0 0.0
    %1539 = vmatprep.subr.mxu0 0.0
    %1540 = vmatpush1.msra.mxu0 0.0
    %1541 = vmatprep.subr.mxu0 0.0
    %1542 = vmatpush1.msra.mxu0 0.0
    %1543 = vmatprep.subr.mxu0 0.0
    %1544 = vmatpush1.msra.mxu0 0.0
    %1545 = vmatprep.subr.mxu0 0.0
    %1546 = vmatpush1.msra.mxu0 0.0
    %1547 = vmatprep.subr.mxu0 0.0
    %1548 = vmatpush1.msra.mxu0 0.0
    %1549 = vmatprep.subr.mxu0 0.0
    %1550 = vmatpush1.msra.mxu0 0.0
    %1551 = vmatprep.subr.mxu0 0.0
    %1552 = vmatpush1.msra.mxu0 0.0
    %1553 = vmatprep.subr.mxu0 0.0
    %1554 = vmatpush1.msra.mxu0 0.0
    %1555 = vmatprep.subr.mxu0 0.0
    %1556 = vmatpush1.msra.mxu0 0.0
    %1557 = vmatprep.subr.mxu0 0.0
    %1558 = vmatpush1.msra.mxu0 0.0
    %1559 = vmatprep.mubr.f32.mxu0 0.0
    %1560 = vmatmul.mubr.f32.gmra.mrb[0].mxu0 %v1410
    %v1561 = vpop.f32.mrb[0].mxu0
    %v1562 = vadd.f32 0.0, %v1561
    %v1563 = vpop.f32.mrb[0].mxu0
    %v1564 = vadd.f32 0.0, %v1563
    %1565 = vdwg.mxu0
    %v1566 = vadd.f32 %v1374, %v1491
    %v1567 = vadd.f32 %v1375, %v1493
    %v1568 = vadd.f32 %v1376, %v1562
    %v1569 = vadd.f32 %v1377, %v1564
    %1570 = vrot.lane.b32.xlu0 %v21, 111
    %v1571 = vpop.permute.xlu0 %1570
    %1572 = vrot.lane.b32.xlu0 %v24, 111
    %v1573 = vpop.permute.xlu0 %1572
    %1574 = vrot.lane.b32.xlu0 %v22, 111
    %v1575 = vpop.permute.xlu0 %1574
    %1576 = vrot.lane.b32.xlu0 %v27, 111
    %v1577 = vpop.permute.xlu0 %1576
    %vm1578 = vcmask 908288
    %v1579 = vsel %vm1578, %v1571, %v1573
    %v1580 = vsel %vm1578, %v1573, %v1575
    %v1581 = vsel %vm1578, %v1575, %v1577
    %v1586 = vsel %vm1578, %v1577, 0.0
    %vm1587 = vmand %vm50, %vm58
    %vm1588 = vmand %vm51, %vm59
    %vm1589 = vmand %vm52, %vm60
    %vm1590 = vmand %vm53, %vm61
    %v1591 = vsel %vm1587, 1, 0
    %v1592 = vsel %vm1588, 1, 0
    %v1593 = vsel %vm1589, 1, 0
    %v1594 = vsel %vm1590, 1, 0
    %vm1595 = vcmp.eq.s32.totalorder %v1591, 1
    %vm1596 = vcmp.eq.s32.totalorder %v1592, 1
    %vm1597 = vcmp.eq.s32.totalorder %v1593, 1
    %vm1598 = vcmp.eq.s32.totalorder %v1594, 1
    %v1599 = vsel %vm1595, %v1579, 0.0
    %v1600 = vsel %vm1596, %v1580, 0.0
    %v1601 = vsel %vm1597, %v1581, 0.0
    %v1602 = vsel %vm1598, %v1586, 0.0
    %s1603 = scalar_lea.vmem %s1, 32
    %v1604 = vld [vmem:[%s1603] sm:$0xf]
    %v1606 = vsel %vm127, %v1604, 0
    %v1609 = vsel %vm131, %v1599, 0
    %v1612 = vsel %vm131, %v1600, 0
    %v1615 = vsel %vm131, %v1601, 0
    %v1618 = vsel %vm131, %v1602, 0
    %1620 = vmatprep.subr.mxu0 %v1612
    %1621 = vmatpush1.msra.mxu0 %v1609
    %1622 = vmatprep.subr.mxu0 0.0
    %1623 = vmatpush1.msra.mxu0 0.0
    %1624 = vmatprep.subr.mxu0 0.0
    %1625 = vmatpush1.msra.mxu0 0.0
    %1626 = vmatprep.subr.mxu0 0.0
    %1627 = vmatpush1.msra.mxu0 0.0
    %1628 = vmatprep.subr.mxu0 0.0
    %1629 = vmatpush1.msra.mxu0 0.0
    %1630 = vmatprep.subr.mxu0 0.0
    %1631 = vmatpush1.msra.mxu0 0.0
    %1632 = vmatprep.subr.mxu0 0.0
    %1633 = vmatpush1.msra.mxu0 0.0
    %1634 = vmatprep.subr.mxu0 0.0
    %1635 = vmatpush1.msra.mxu0 0.0
    %1636 = vmatprep.subr.mxu0 0.0
    %1637 = vmatpush1.msra.mxu0 0.0
    %1638 = vmatprep.subr.mxu0 0.0
    %1639 = vmatpush1.msra.mxu0 0.0
    %1640 = vmatprep.subr.mxu0 0.0
    %1641 = vmatpush1.msra.mxu0 0.0
    %1642 = vmatprep.subr.mxu0 0.0
    %1643 = vmatpush1.msra.mxu0 0.0
    %1644 = vmatprep.subr.mxu0 0.0
    %1645 = vmatpush1.msra.mxu0 0.0
    %1646 = vmatprep.subr.mxu0 0.0
    %1647 = vmatpush1.msra.mxu0 0.0
    %1648 = vmatprep.subr.mxu0 0.0
    %1649 = vmatpush1.msra.mxu0 0.0
    %1650 = vmatprep.subr.mxu0 0.0
    %1651 = vmatpush1.msra.mxu0 0.0
    %1652 = vmatprep.subr.mxu0 0.0
    %1653 = vmatpush1.msra.mxu0 0.0
    %1654 = vmatprep.subr.mxu0 0.0
    %1655 = vmatpush1.msra.mxu0 0.0
    %1656 = vmatprep.subr.mxu0 0.0
    %1657 = vmatpush1.msra.mxu0 0.0
    %1658 = vmatprep.subr.mxu0 0.0
    %1659 = vmatpush1.msra.mxu0 0.0
    %1660 = vmatprep.subr.mxu0 0.0
    %1661 = vmatpush1.msra.mxu0 0.0
    %1662 = vmatprep.subr.mxu0 0.0
    %1663 = vmatpush1.msra.mxu0 0.0
    %1664 = vmatprep.subr.mxu0 0.0
    %1665 = vmatpush1.msra.mxu0 0.0
    %1666 = vmatprep.subr.mxu0 0.0
    %1667 = vmatpush1.msra.mxu0 0.0
    %1668 = vmatprep.subr.mxu0 0.0
    %1669 = vmatpush1.msra.mxu0 0.0
    %1670 = vmatprep.subr.mxu0 0.0
    %1671 = vmatpush1.msra.mxu0 0.0
    %1672 = vmatprep.subr.mxu0 0.0
    %1673 = vmatpush1.msra.mxu0 0.0
    %1674 = vmatprep.subr.mxu0 0.0
    %1675 = vmatpush1.msra.mxu0 0.0
    %1676 = vmatprep.subr.mxu0 0.0
    %1677 = vmatpush1.msra.mxu0 0.0
    %1678 = vmatprep.subr.mxu0 0.0
    %1679 = vmatpush1.msra.mxu0 0.0
    %1680 = vmatprep.subr.mxu0 0.0
    %1681 = vmatpush1.msra.mxu0 0.0
    %1682 = vmatprep.subr.mxu0 0.0
    %1683 = vmatpush1.msra.mxu0 0.0
    %1684 = vmatprep.mubr.f32.mxu0 0.0
    %1685 = vmatmul.mubr.f32.gmra.mrb[0].mxu0 %v1606
    %v1686 = vpop.f32.mrb[0].mxu0
    %v1687 = vadd.f32 0.0, %v1686
    %v1688 = vpop.f32.mrb[0].mxu0
    %v1689 = vadd.f32 0.0, %v1688
    %1690 = vdwg.mxu0
    %1691 = vmatprep.subr.mxu0 %v1618
    %1692 = vmatpush1.msra.mxu0 %v1615
    %1693 = vmatprep.subr.mxu0 0.0
    %1694 = vmatpush1.msra.mxu0 0.0
    %1695 = vmatprep.subr.mxu0 0.0
    %1696 = vmatpush1.msra.mxu0 0.0
    %1697 = vmatprep.subr.mxu0 0.0
    %1698 = vmatpush1.msra.mxu0 0.0
    %1699 = vmatprep.subr.mxu0 0.0
    %1700 = vmatpush1.msra.mxu0 0.0
    %1701 = vmatprep.subr.mxu0 0.0
    %1702 = vmatpush1.msra.mxu0 0.0
    %1703 = vmatprep.subr.mxu0 0.0
    %1704 = vmatpush1.msra.mxu0 0.0
    %1705 = vmatprep.subr.mxu0 0.0
    %1706 = vmatpush1.msra.mxu0 0.0
    %1707 = vmatprep.subr.mxu0 0.0
    %1708 = vmatpush1.msra.mxu0 0.0
    %1709 = vmatprep.subr.mxu0 0.0
    %1710 = vmatpush1.msra.mxu0 0.0
    %1711 = vmatprep.subr.mxu0 0.0
    %1712 = vmatpush1.msra.mxu0 0.0
    %1713 = vmatprep.subr.mxu0 0.0
    %1714 = vmatpush1.msra.mxu0 0.0
    %1715 = vmatprep.subr.mxu0 0.0
    %1716 = vmatpush1.msra.mxu0 0.0
    %1717 = vmatprep.subr.mxu0 0.0
    %1718 = vmatpush1.msra.mxu0 0.0
    %1719 = vmatprep.subr.mxu0 0.0
    %1720 = vmatpush1.msra.mxu0 0.0
    %1721 = vmatprep.subr.mxu0 0.0
    %1722 = vmatpush1.msra.mxu0 0.0
    %1723 = vmatprep.subr.mxu0 0.0
    %1724 = vmatpush1.msra.mxu0 0.0
    %1725 = vmatprep.subr.mxu0 0.0
    %1726 = vmatpush1.msra.mxu0 0.0
    %1727 = vmatprep.subr.mxu0 0.0
    %1728 = vmatpush1.msra.mxu0 0.0
    %1729 = vmatprep.subr.mxu0 0.0
    %1730 = vmatpush1.msra.mxu0 0.0
    %1731 = vmatprep.subr.mxu0 0.0
    %1732 = vmatpush1.msra.mxu0 0.0
    %1733 = vmatprep.subr.mxu0 0.0
    %1734 = vmatpush1.msra.mxu0 0.0
    %1735 = vmatprep.subr.mxu0 0.0
    %1736 = vmatpush1.msra.mxu0 0.0
    %1737 = vmatprep.subr.mxu0 0.0
    %1738 = vmatpush1.msra.mxu0 0.0
    %1739 = vmatprep.subr.mxu0 0.0
    %1740 = vmatpush1.msra.mxu0 0.0
    %1741 = vmatprep.subr.mxu0 0.0
    %1742 = vmatpush1.msra.mxu0 0.0
    %1743 = vmatprep.subr.mxu0 0.0
    %1744 = vmatpush1.msra.mxu0 0.0
    %1745 = vmatprep.subr.mxu0 0.0
    %1746 = vmatpush1.msra.mxu0 0.0
    %1747 = vmatprep.subr.mxu0 0.0
    %1748 = vmatpush1.msra.mxu0 0.0
    %1749 = vmatprep.subr.mxu0 0.0
    %1750 = vmatpush1.msra.mxu0 0.0
    %1751 = vmatprep.subr.mxu0 0.0
    %1752 = vmatpush1.msra.mxu0 0.0
    %1753 = vmatprep.subr.mxu0 0.0
    %1754 = vmatpush1.msra.mxu0 0.0
    %1755 = vmatprep.mubr.f32.mxu0 0.0
    %1756 = vmatmul.mubr.f32.gmra.mrb[0].mxu0 %v1606
    %v1757 = vpop.f32.mrb[0].mxu0
    %v1758 = vadd.f32 0.0, %v1757
    %v1759 = vpop.f32.mrb[0].mxu0
    %v1760 = vadd.f32 0.0, %v1759
    %1761 = vdwg.mxu0
    %v1762 = vadd.f32 %v1566, %v1687
    %v1763 = vadd.f32 %v1567, %v1689
    %v1764 = vadd.f32 %v1568, %v1758
    %v1765 = vadd.f32 %v1569, %v1760
    %v1766 = vld [vmem:[%s2] sm:$0xf]
    %1768 = vset.pattern.permute.xlu0 0
    %1769 = vperm.xlu0 %1768, %v1766
    %v1770 = vpop.permute.xlu0 %1769
    %v1772 = vadd.f32 %v1762, %v1770
    %v1773 = vadd.f32 %v1763, %v1770
    %v1774 = vadd.f32 %v1764, %v1770
    %v1775 = vadd.f32 %v1765, %v1770
    %vm1776 = vcmp.gt.f32.partialorder %v1772, 0.0
    %vm1777 = vcmp.gt.f32.partialorder %v1773, 0.0
    %vm1778 = vcmp.gt.f32.partialorder %v1774, 0.0
    %vm1779 = vcmp.gt.f32.partialorder %v1775, 0.0
    %v1780 = vmul.f32 %v1772, 0.01
    %v1781 = vmul.f32 %v1773, 0.01
    %v1782 = vmul.f32 %v1774, 0.01
    %v1783 = vmul.f32 %v1775, 0.01
    %v1784 = vsel %vm1776, %v1772, %v1780
    %v1785 = vsel %vm1777, %v1773, %v1781
    %v1786 = vsel %vm1778, %v1774, %v1782
    %v1787 = vsel %vm1779, %v1775, %v1783
    %1792 = vrot.lane.b32.xlu0 %v1784, 17
    %v1793 = vpop.permute.xlu0 %1792
    %1794 = vrot.lane.b32.xlu0 %v1785, 17
    %v1795 = vpop.permute.xlu0 %1794
    %1796 = vrot.lane.b32.xlu0 %v1786, 17
    %v1797 = vpop.permute.xlu0 %1796
    %1798 = vrot.lane.b32.xlu0 %v1787, 17
    %v1799 = vpop.permute.xlu0 %1798
    %v1800 = vsel %vm70, %v1793, %v1795
    %v1801 = vsel %vm70, %v1795, %v1797
    %v1802 = vsel %vm70, %v1797, %v1799
    %v1807 = vsel %vm70, 0.0, %v1793
    %v1808 = vsel %vm87, %v1807, 0.0
    %v1809 = vsel %vm88, %v1800, 0.0
    %v1810 = vsel %vm89, %v1801, 0.0
    %v1811 = vsel %vm90, %v1802, 0.0
    %v1812 = vld [vmem:[%s3] sm:$0xf]
    %1813 = vrot.lane.b32.xlu0 %v1784, 16
    %v1814 = vpop.permute.xlu0 %1813
    %1815 = vrot.lane.b32.xlu0 %v1785, 16
    %v1816 = vpop.permute.xlu0 %1815
    %1817 = vrot.lane.b32.xlu0 %v1786, 16
    %v1818 = vpop.permute.xlu0 %1817
    %1819 = vrot.lane.b32.xlu0 %v1787, 16
    %v1820 = vpop.permute.xlu0 %1819
    %v1821 = vsel %vm104, %v1814, %v1816
    %v1822 = vsel %vm104, %v1816, %v1818
    %v1823 = vsel %vm104, %v1818, %v1820
    %v1828 = vsel %vm104, 0.0, %v1814
    %v1829 = vsel %vm117, %v1828, 0.0
    %v1830 = vsel %vm118, %v1821, 0.0
    %v1831 = vsel %vm119, %v1822, 0.0
    %v1832 = vsel %vm120, %v1823, 0.0
    %s1833 = scalar_lea.vmem %s3, 4
    %v1834 = vld [vmem:[%s1833] sm:$0xf]
    %v1836 = vsel %vm127, %v1834, 0
    %v1839 = vsel %vm131, %v1829, 0
    %v1842 = vsel %vm131, %v1830, 0
    %v1845 = vsel %vm131, %v1831, 0
    %v1848 = vsel %vm131, %v1832, 0
    %1850 = vmatprep.subr.mxu0 %v1842
    %1851 = vmatpush1.msra.mxu0 %v1839
    %1852 = vmatprep.subr.mxu0 0.0
    %1853 = vmatpush1.msra.mxu0 0.0
    %1854 = vmatprep.subr.mxu0 0.0
    %1855 = vmatpush1.msra.mxu0 0.0
    %1856 = vmatprep.subr.mxu0 0.0
    %1857 = vmatpush1.msra.mxu0 0.0
    %1858 = vmatprep.subr.mxu0 0.0
    %1859 = vmatpush1.msra.mxu0 0.0
    %1860 = vmatprep.subr.mxu0 0.0
    %1861 = vmatpush1.msra.mxu0 0.0
    %1862 = vmatprep.subr.mxu0 0.0
    %1863 = vmatpush1.msra.mxu0 0.0
    %1864 = vmatprep.subr.mxu0 0.0
    %1865 = vmatpush1.msra.mxu0 0.0
    %1866 = vmatprep.subr.mxu0 0.0
    %1867 = vmatpush1.msra.mxu0 0.0
    %1868 = vmatprep.subr.mxu0 0.0
    %1869 = vmatpush1.msra.mxu0 0.0
    %1870 = vmatprep.subr.mxu0 0.0
    %1871 = vmatpush1.msra.mxu0 0.0
    %1872 = vmatprep.subr.mxu0 0.0
    %1873 = vmatpush1.msra.mxu0 0.0
    %1874 = vmatprep.subr.mxu0 0.0
    %1875 = vmatpush1.msra.mxu0 0.0
    %1876 = vmatprep.subr.mxu0 0.0
    %1877 = vmatpush1.msra.mxu0 0.0
    %1878 = vmatprep.subr.mxu0 0.0
    %1879 = vmatpush1.msra.mxu0 0.0
    %1880 = vmatprep.subr.mxu0 0.0
    %1881 = vmatpush1.msra.mxu0 0.0
    %1882 = vmatprep.subr.mxu0 0.0
    %1883 = vmatpush1.msra.mxu0 0.0
    %1884 = vmatprep.subr.mxu0 0.0
    %1885 = vmatpush1.msra.mxu0 0.0
    %1886 = vmatprep.subr.mxu0 0.0
    %1887 = vmatpush1.msra.mxu0 0.0
    %1888 = vmatprep.subr.mxu0 0.0
    %1889 = vmatpush1.msra.mxu0 0.0
    %1890 = vmatprep.subr.mxu0 0.0
    %1891 = vmatpush1.msra.mxu0 0.0
    %1892 = vmatprep.subr.mxu0 0.0
    %1893 = vmatpush1.msra.mxu0 0.0
    %1894 = vmatprep.subr.mxu0 0.0
    %1895 = vmatpush1.msra.mxu0 0.0
    %1896 = vmatprep.subr.mxu0 0.0
    %1897 = vmatpush1.msra.mxu0 0.0
    %1898 = vmatprep.subr.mxu0 0.0
    %1899 = vmatpush1.msra.mxu0 0.0
    %1900 = vmatprep.subr.mxu0 0.0
    %1901 = vmatpush1.msra.mxu0 0.0
    %1902 = vmatprep.subr.mxu0 0.0
    %1903 = vmatpush1.msra.mxu0 0.0
    %1904 = vmatprep.subr.mxu0 0.0
    %1905 = vmatpush1.msra.mxu0 0.0
    %1906 = vmatprep.subr.mxu0 0.0
    %1907 = vmatpush1.msra.mxu0 0.0
    %1908 = vmatprep.subr.mxu0 0.0
    %1909 = vmatpush1.msra.mxu0 0.0
    %1910 = vmatprep.subr.mxu0 0.0
    %1911 = vmatpush1.msra.mxu0 0.0
    %1912 = vmatprep.subr.mxu0 0.0
    %1913 = vmatpush1.msra.mxu0 0.0
    %1914 = vmatprep.mubr.f32.mxu0 0.0
    %1915 = vmatmul.mubr.f32.gmra.mrb[0].mxu0 %v1836
    %v1916 = vpop.f32.mrb[0].mxu0
    %v1917 = vadd.f32 0.0, %v1916
    %v1918 = vpop.f32.mrb[0].mxu0
    %v1919 = vadd.f32 0.0, %v1918
    %1920 = vdwg.mxu0
    %1921 = vmatprep.subr.mxu0 %v1848
    %1922 = vmatpush1.msra.mxu0 %v1845
    %1923 = vmatprep.subr.mxu0 0.0
    %1924 = vmatpush1.msra.mxu0 0.0
    %1925 = vmatprep.subr.mxu0 0.0
    %1926 = vmatpush1.msra.mxu0 0.0
    %1927 = vmatprep.subr.mxu0 0.0
    %1928 = vmatpush1.msra.mxu0 0.0
    %1929 = vmatprep.subr.mxu0 0.0
    %1930 = vmatpush1.msra.mxu0 0.0
    %1931 = vmatprep.subr.mxu0 0.0
    %1932 = vmatpush1.msra.mxu0 0.0
    %1933 = vmatprep.subr.mxu0 0.0
    %1934 = vmatpush1.msra.mxu0 0.0
    %1935 = vmatprep.subr.mxu0 0.0
    %1936 = vmatpush1.msra.mxu0 0.0
    %1937 = vmatprep.subr.mxu0 0.0
    %1938 = vmatpush1.msra.mxu0 0.0
    %1939 = vmatprep.subr.mxu0 0.0
    %1940 = vmatpush1.msra.mxu0 0.0
    %1941 = vmatprep.subr.mxu0 0.0
    %1942 = vmatpush1.msra.mxu0 0.0
    %1943 = vmatprep.subr.mxu0 0.0
    %1944 = vmatpush1.msra.mxu0 0.0
    %1945 = vmatprep.subr.mxu0 0.0
    %1946 = vmatpush1.msra.mxu0 0.0
    %1947 = vmatprep.subr.mxu0 0.0
    %1948 = vmatpush1.msra.mxu0 0.0
    %1949 = vmatprep.subr.mxu0 0.0
    %1950 = vmatpush1.msra.mxu0 0.0
    %1951 = vmatprep.subr.mxu0 0.0
    %1952 = vmatpush1.msra.mxu0 0.0
    %1953 = vmatprep.subr.mxu0 0.0
    %1954 = vmatpush1.msra.mxu0 0.0
    %1955 = vmatprep.subr.mxu0 0.0
    %1956 = vmatpush1.msra.mxu0 0.0
    %1957 = vmatprep.subr.mxu0 0.0
    %1958 = vmatpush1.msra.mxu0 0.0
    %1959 = vmatprep.subr.mxu0 0.0
    %1960 = vmatpush1.msra.mxu0 0.0
    %1961 = vmatprep.subr.mxu0 0.0
    %1962 = vmatpush1.msra.mxu0 0.0
    %1963 = vmatprep.subr.mxu0 0.0
    %1964 = vmatpush1.msra.mxu0 0.0
    %1965 = vmatprep.subr.mxu0 0.0
    %1966 = vmatpush1.msra.mxu0 0.0
    %1967 = vmatprep.subr.mxu0 0.0
    %1968 = vmatpush1.msra.mxu0 0.0
    %1969 = vmatprep.subr.mxu0 0.0
    %1970 = vmatpush1.msra.mxu0 0.0
    %1971 = vmatprep.subr.mxu0 0.0
    %1972 = vmatpush1.msra.mxu0 0.0
    %1973 = vmatprep.subr.mxu0 0.0
    %1974 = vmatpush1.msra.mxu0 0.0
    %1975 = vmatprep.subr.mxu0 0.0
    %1976 = vmatpush1.msra.mxu0 0.0
    %1977 = vmatprep.subr.mxu0 0.0
    %1978 = vmatpush1.msra.mxu0 0.0
    %1979 = vmatprep.subr.mxu0 0.0
    %1980 = vmatpush1.msra.mxu0 0.0
    %1981 = vmatprep.subr.mxu0 0.0
    %1982 = vmatpush1.msra.mxu0 0.0
    %1983 = vmatprep.subr.mxu0 0.0
    %1984 = vmatpush1.msra.mxu0 0.0
    %1985 = vmatprep.mubr.f32.mxu0 0.0
    %1986 = vmatmul.mubr.f32.gmra.mrb[0].mxu0 %v1836
    %v1987 = vpop.f32.mrb[0].mxu0
    %v1988 = vadd.f32 0.0, %v1987
    %v1989 = vpop.f32.mrb[0].mxu0
    %v1990 = vadd.f32 0.0, %v1989
    %1991 = vdwg.mxu0
    %v1993 = vsel %vm127, %v1812, 0
    %v1996 = vsel %vm131, %v1808, 0
    %v1999 = vsel %vm131, %v1809, 0
    %v2002 = vsel %vm131, %v1810, 0
    %v2005 = vsel %vm131, %v1811, 0
    %2007 = vmatprep.subr.mxu0 %v1999
    %2008 = vmatpush1.msra.mxu0 %v1996
    %2009 = vmatprep.subr.mxu0 0.0
    %2010 = vmatpush1.msra.mxu0 0.0
    %2011 = vmatprep.subr.mxu0 0.0
    %2012 = vmatpush1.msra.mxu0 0.0
    %2013 = vmatprep.subr.mxu0 0.0
    %2014 = vmatpush1.msra.mxu0 0.0
    %2015 = vmatprep.subr.mxu0 0.0
    %2016 = vmatpush1.msra.mxu0 0.0
    %2017 = vmatprep.subr.mxu0 0.0
    %2018 = vmatpush1.msra.mxu0 0.0
    %2019 = vmatprep.subr.mxu0 0.0
    %2020 = vmatpush1.msra.mxu0 0.0
    %2021 = vmatprep.subr.mxu0 0.0
    %2022 = vmatpush1.msra.mxu0 0.0
    %2023 = vmatprep.subr.mxu0 0.0
    %2024 = vmatpush1.msra.mxu0 0.0
    %2025 = vmatprep.subr.mxu0 0.0
    %2026 = vmatpush1.msra.mxu0 0.0
    %2027 = vmatprep.subr.mxu0 0.0
    %2028 = vmatpush1.msra.mxu0 0.0
    %2029 = vmatprep.subr.mxu0 0.0
    %2030 = vmatpush1.msra.mxu0 0.0
    %2031 = vmatprep.subr.mxu0 0.0
    %2032 = vmatpush1.msra.mxu0 0.0
    %2033 = vmatprep.subr.mxu0 0.0
    %2034 = vmatpush1.msra.mxu0 0.0
    %2035 = vmatprep.subr.mxu0 0.0
    %2036 = vmatpush1.msra.mxu0 0.0
    %2037 = vmatprep.subr.mxu0 0.0
    %2038 = vmatpush1.msra.mxu0 0.0
    %2039 = vmatprep.subr.mxu0 0.0
    %2040 = vmatpush1.msra.mxu0 0.0
    %2041 = vmatprep.subr.mxu0 0.0
    %2042 = vmatpush1.msra.mxu0 0.0
    %2043 = vmatprep.subr.mxu0 0.0
    %2044 = vmatpush1.msra.mxu0 0.0
    %2045 = vmatprep.subr.mxu0 0.0
    %2046 = vmatpush1.msra.mxu0 0.0
    %2047 = vmatprep.subr.mxu0 0.0
    %2048 = vmatpush1.msra.mxu0 0.0
    %2049 = vmatprep.subr.mxu0 0.0
    %2050 = vmatpush1.msra.mxu0 0.0
    %2051 = vmatprep.subr.mxu0 0.0
    %2052 = vmatpush1.msra.mxu0 0.0
    %2053 = vmatprep.subr.mxu0 0.0
    %2054 = vmatpush1.msra.mxu0 0.0
    %2055 = vmatprep.subr.mxu0 0.0
    %2056 = vmatpush1.msra.mxu0 0.0
    %2057 = vmatprep.subr.mxu0 0.0
    %2058 = vmatpush1.msra.mxu0 0.0
    %2059 = vmatprep.subr.mxu0 0.0
    %2060 = vmatpush1.msra.mxu0 0.0
    %2061 = vmatprep.subr.mxu0 0.0
    %2062 = vmatpush1.msra.mxu0 0.0
    %2063 = vmatprep.subr.mxu0 0.0
    %2064 = vmatpush1.msra.mxu0 0.0
    %2065 = vmatprep.subr.mxu0 0.0
    %2066 = vmatpush1.msra.mxu0 0.0
    %2067 = vmatprep.subr.mxu0 0.0
    %2068 = vmatpush1.msra.mxu0 0.0
    %2069 = vmatprep.subr.mxu0 0.0
    %2070 = vmatpush1.msra.mxu0 0.0
    %2071 = vmatprep.mubr.f32.mxu0 0.0
    %2072 = vmatmul.mubr.f32.gmra.mrb[0].mxu0 %v1993
    %v2073 = vpop.f32.mrb[0].mxu0
    %v2074 = vadd.f32 %v1917, %v2073
    %v2075 = vpop.f32.mrb[0].mxu0
    %v2076 = vadd.f32 %v1919, %v2075
    %2077 = vdwg.mxu0
    %2078 = vmatprep.subr.mxu0 %v2005
    %2079 = vmatpush1.msra.mxu0 %v2002
    %2080 = vmatprep.subr.mxu0 0.0
    %2081 = vmatpush1.msra.mxu0 0.0
    %2082 = vmatprep.subr.mxu0 0.0
    %2083 = vmatpush1.msra.mxu0 0.0
    %2084 = vmatprep.subr.mxu0 0.0
    %2085 = vmatpush1.msra.mxu0 0.0
    %2086 = vmatprep.subr.mxu0 0.0
    %2087 = vmatpush1.msra.mxu0 0.0
    %2088 = vmatprep.subr.mxu0 0.0
    %2089 = vmatpush1.msra.mxu0 0.0
    %2090 = vmatprep.subr.mxu0 0.0
    %2091 = vmatpush1.msra.mxu0 0.0
    %2092 = vmatprep.subr.mxu0 0.0
    %2093 = vmatpush1.msra.mxu0 0.0
    %2094 = vmatprep.subr.mxu0 0.0
    %2095 = vmatpush1.msra.mxu0 0.0
    %2096 = vmatprep.subr.mxu0 0.0
    %2097 = vmatpush1.msra.mxu0 0.0
    %2098 = vmatprep.subr.mxu0 0.0
    %2099 = vmatpush1.msra.mxu0 0.0
    %2100 = vmatprep.subr.mxu0 0.0
    %2101 = vmatpush1.msra.mxu0 0.0
    %2102 = vmatprep.subr.mxu0 0.0
    %2103 = vmatpush1.msra.mxu0 0.0
    %2104 = vmatprep.subr.mxu0 0.0
    %2105 = vmatpush1.msra.mxu0 0.0
    %2106 = vmatprep.subr.mxu0 0.0
    %2107 = vmatpush1.msra.mxu0 0.0
    %2108 = vmatprep.subr.mxu0 0.0
    %2109 = vmatpush1.msra.mxu0 0.0
    %2110 = vmatprep.subr.mxu0 0.0
    %2111 = vmatpush1.msra.mxu0 0.0
    %2112 = vmatprep.subr.mxu0 0.0
    %2113 = vmatpush1.msra.mxu0 0.0
    %2114 = vmatprep.subr.mxu0 0.0
    %2115 = vmatpush1.msra.mxu0 0.0
    %2116 = vmatprep.subr.mxu0 0.0
    %2117 = vmatpush1.msra.mxu0 0.0
    %2118 = vmatprep.subr.mxu0 0.0
    %2119 = vmatpush1.msra.mxu0 0.0
    %2120 = vmatprep.subr.mxu0 0.0
    %2121 = vmatpush1.msra.mxu0 0.0
    %2122 = vmatprep.subr.mxu0 0.0
    %2123 = vmatpush1.msra.mxu0 0.0
    %2124 = vmatprep.subr.mxu0 0.0
    %2125 = vmatpush1.msra.mxu0 0.0
    %2126 = vmatprep.subr.mxu0 0.0
    %2127 = vmatpush1.msra.mxu0 0.0
    %2128 = vmatprep.subr.mxu0 0.0
    %2129 = vmatpush1.msra.mxu0 0.0
    %2130 = vmatprep.subr.mxu0 0.0
    %2131 = vmatpush1.msra.mxu0 0.0
    %2132 = vmatprep.subr.mxu0 0.0
    %2133 = vmatpush1.msra.mxu0 0.0
    %2134 = vmatprep.subr.mxu0 0.0
    %2135 = vmatpush1.msra.mxu0 0.0
    %2136 = vmatprep.subr.mxu0 0.0
    %2137 = vmatpush1.msra.mxu0 0.0
    %2138 = vmatprep.subr.mxu0 0.0
    %2139 = vmatpush1.msra.mxu0 0.0
    %2140 = vmatprep.subr.mxu0 0.0
    %2141 = vmatpush1.msra.mxu0 0.0
    %2142 = vmatprep.mubr.f32.mxu0 0.0
    %2143 = vmatmul.mubr.f32.gmra.mrb[0].mxu0 %v1993
    %v2144 = vpop.f32.mrb[0].mxu0
    %v2145 = vadd.f32 %v1988, %v2144
    %v2146 = vpop.f32.mrb[0].mxu0
    %v2147 = vadd.f32 %v1990, %v2146
    %2148 = vdwg.mxu0
    %2149 = vrot.lane.b32.xlu0 %v1784, 15
    %v2150 = vpop.permute.xlu0 %2149
    %2151 = vrot.lane.b32.xlu0 %v1785, 15
    %v2152 = vpop.permute.xlu0 %2151
    %2153 = vrot.lane.b32.xlu0 %v1786, 15
    %v2154 = vpop.permute.xlu0 %2153
    %2155 = vrot.lane.b32.xlu0 %v1787, 15
    %v2156 = vpop.permute.xlu0 %2155
    %v2157 = vsel %vm451, %v2150, %v2152
    %v2158 = vsel %vm451, %v2152, %v2154
    %v2159 = vsel %vm451, %v2154, %v2156
    %v2164 = vsel %vm451, 0.0, %v2150
    %v2165 = vsel %vm468, %v2164, 0.0
    %v2166 = vsel %vm469, %v2157, 0.0
    %v2167 = vsel %vm470, %v2158, 0.0
    %v2168 = vsel %vm471, %v2159, 0.0
    %s2169 = scalar_lea.vmem %s3, 8
    %v2170 = vld [vmem:[%s2169] sm:$0xf]
    %v2172 = vsel %vm127, %v2170, 0
    %v2175 = vsel %vm131, %v2165, 0
    %v2178 = vsel %vm131, %v2166, 0
    %v2181 = vsel %vm131, %v2167, 0
    %v2184 = vsel %vm131, %v2168, 0
    %2186 = vmatprep.subr.mxu0 %v2178
    %2187 = vmatpush1.msra.mxu0 %v2175
    %2188 = vmatprep.subr.mxu0 0.0
    %2189 = vmatpush1.msra.mxu0 0.0
    %2190 = vmatprep.subr.mxu0 0.0
    %2191 = vmatpush1.msra.mxu0 0.0
    %2192 = vmatprep.subr.mxu0 0.0
    %2193 = vmatpush1.msra.mxu0 0.0
    %2194 = vmatprep.subr.mxu0 0.0
    %2195 = vmatpush1.msra.mxu0 0.0
    %2196 = vmatprep.subr.mxu0 0.0
    %2197 = vmatpush1.msra.mxu0 0.0
    %2198 = vmatprep.subr.mxu0 0.0
    %2199 = vmatpush1.msra.mxu0 0.0
    %2200 = vmatprep.subr.mxu0 0.0
    %2201 = vmatpush1.msra.mxu0 0.0
    %2202 = vmatprep.subr.mxu0 0.0
    %2203 = vmatpush1.msra.mxu0 0.0
    %2204 = vmatprep.subr.mxu0 0.0
    %2205 = vmatpush1.msra.mxu0 0.0
    %2206 = vmatprep.subr.mxu0 0.0
    %2207 = vmatpush1.msra.mxu0 0.0
    %2208 = vmatprep.subr.mxu0 0.0
    %2209 = vmatpush1.msra.mxu0 0.0
    %2210 = vmatprep.subr.mxu0 0.0
    %2211 = vmatpush1.msra.mxu0 0.0
    %2212 = vmatprep.subr.mxu0 0.0
    %2213 = vmatpush1.msra.mxu0 0.0
    %2214 = vmatprep.subr.mxu0 0.0
    %2215 = vmatpush1.msra.mxu0 0.0
    %2216 = vmatprep.subr.mxu0 0.0
    %2217 = vmatpush1.msra.mxu0 0.0
    %2218 = vmatprep.subr.mxu0 0.0
    %2219 = vmatpush1.msra.mxu0 0.0
    %2220 = vmatprep.subr.mxu0 0.0
    %2221 = vmatpush1.msra.mxu0 0.0
    %2222 = vmatprep.subr.mxu0 0.0
    %2223 = vmatpush1.msra.mxu0 0.0
    %2224 = vmatprep.subr.mxu0 0.0
    %2225 = vmatpush1.msra.mxu0 0.0
    %2226 = vmatprep.subr.mxu0 0.0
    %2227 = vmatpush1.msra.mxu0 0.0
    %2228 = vmatprep.subr.mxu0 0.0
    %2229 = vmatpush1.msra.mxu0 0.0
    %2230 = vmatprep.subr.mxu0 0.0
    %2231 = vmatpush1.msra.mxu0 0.0
    %2232 = vmatprep.subr.mxu0 0.0
    %2233 = vmatpush1.msra.mxu0 0.0
    %2234 = vmatprep.subr.mxu0 0.0
    %2235 = vmatpush1.msra.mxu0 0.0
    %2236 = vmatprep.subr.mxu0 0.0
    %2237 = vmatpush1.msra.mxu0 0.0
    %2238 = vmatprep.subr.mxu0 0.0
    %2239 = vmatpush1.msra.mxu0 0.0
    %2240 = vmatprep.subr.mxu0 0.0
    %2241 = vmatpush1.msra.mxu0 0.0
    %2242 = vmatprep.subr.mxu0 0.0
    %2243 = vmatpush1.msra.mxu0 0.0
    %2244 = vmatprep.subr.mxu0 0.0
    %2245 = vmatpush1.msra.mxu0 0.0
    %2246 = vmatprep.subr.mxu0 0.0
    %2247 = vmatpush1.msra.mxu0 0.0
    %2248 = vmatprep.subr.mxu0 0.0
    %2249 = vmatpush1.msra.mxu0 0.0
    %2250 = vmatprep.mubr.f32.mxu0 0.0
    %2251 = vmatmul.mubr.f32.gmra.mrb[0].mxu0 %v2172
    %v2252 = vpop.f32.mrb[0].mxu0
    %v2253 = vadd.f32 0.0, %v2252
    %v2254 = vpop.f32.mrb[0].mxu0
    %v2255 = vadd.f32 0.0, %v2254
    %2256 = vdwg.mxu0
    %2257 = vmatprep.subr.mxu0 %v2184
    %2258 = vmatpush1.msra.mxu0 %v2181
    %2259 = vmatprep.subr.mxu0 0.0
    %2260 = vmatpush1.msra.mxu0 0.0
    %2261 = vmatprep.subr.mxu0 0.0
    %2262 = vmatpush1.msra.mxu0 0.0
    %2263 = vmatprep.subr.mxu0 0.0
    %2264 = vmatpush1.msra.mxu0 0.0
    %2265 = vmatprep.subr.mxu0 0.0
    %2266 = vmatpush1.msra.mxu0 0.0
    %2267 = vmatprep.subr.mxu0 0.0
    %2268 = vmatpush1.msra.mxu0 0.0
    %2269 = vmatprep.subr.mxu0 0.0
    %2270 = vmatpush1.msra.mxu0 0.0
    %2271 = vmatprep.subr.mxu0 0.0
    %2272 = vmatpush1.msra.mxu0 0.0
    %2273 = vmatprep.subr.mxu0 0.0
    %2274 = vmatpush1.msra.mxu0 0.0
    %2275 = vmatprep.subr.mxu0 0.0
    %2276 = vmatpush1.msra.mxu0 0.0
    %2277 = vmatprep.subr.mxu0 0.0
    %2278 = vmatpush1.msra.mxu0 0.0
    %2279 = vmatprep.subr.mxu0 0.0
    %2280 = vmatpush1.msra.mxu0 0.0
    %2281 = vmatprep.subr.mxu0 0.0
    %2282 = vmatpush1.msra.mxu0 0.0
    %2283 = vmatprep.subr.mxu0 0.0
    %2284 = vmatpush1.msra.mxu0 0.0
    %2285 = vmatprep.subr.mxu0 0.0
    %2286 = vmatpush1.msra.mxu0 0.0
    %2287 = vmatprep.subr.mxu0 0.0
    %2288 = vmatpush1.msra.mxu0 0.0
    %2289 = vmatprep.subr.mxu0 0.0
    %2290 = vmatpush1.msra.mxu0 0.0
    %2291 = vmatprep.subr.mxu0 0.0
    %2292 = vmatpush1.msra.mxu0 0.0
    %2293 = vmatprep.subr.mxu0 0.0
    %2294 = vmatpush1.msra.mxu0 0.0
    %2295 = vmatprep.subr.mxu0 0.0
    %2296 = vmatpush1.msra.mxu0 0.0
    %2297 = vmatprep.subr.mxu0 0.0
    %2298 = vmatpush1.msra.mxu0 0.0
    %2299 = vmatprep.subr.mxu0 0.0
    %2300 = vmatpush1.msra.mxu0 0.0
    %2301 = vmatprep.subr.mxu0 0.0
    %2302 = vmatpush1.msra.mxu0 0.0
    %2303 = vmatprep.subr.mxu0 0.0
    %2304 = vmatpush1.msra.mxu0 0.0
    %2305 = vmatprep.subr.mxu0 0.0
    %2306 = vmatpush1.msra.mxu0 0.0
    %2307 = vmatprep.subr.mxu0 0.0
    %2308 = vmatpush1.msra.mxu0 0.0
    %2309 = vmatprep.subr.mxu0 0.0
    %2310 = vmatpush1.msra.mxu0 0.0
    %2311 = vmatprep.subr.mxu0 0.0
    %2312 = vmatpush1.msra.mxu0 0.0
    %2313 = vmatprep.subr.mxu0 0.0
    %2314 = vmatpush1.msra.mxu0 0.0
    %2315 = vmatprep.subr.mxu0 0.0
    %2316 = vmatpush1.msra.mxu0 0.0
    %2317 = vmatprep.subr.mxu0 0.0
    %2318 = vmatpush1.msra.mxu0 0.0
    %2319 = vmatprep.subr.mxu0 0.0
    %2320 = vmatpush1.msra.mxu0 0.0
    %2321 = vmatprep.mubr.f32.mxu0 0.0
    %2322 = vmatmul.mubr.f32.gmra.mrb[0].mxu0 %v2172
    %v2323 = vpop.f32.mrb[0].mxu0
    %v2324 = vadd.f32 0.0, %v2323
    %v2325 = vpop.f32.mrb[0].mxu0
    %v2326 = vadd.f32 0.0, %v2325
    %2327 = vdwg.mxu0
    %v2328 = vadd.f32 %v2074, %v2253
    %v2329 = vadd.f32 %v2076, %v2255
    %v2330 = vadd.f32 %v2145, %v2324
    %v2331 = vadd.f32 %v2147, %v2326
    %2332 = vrot.lane.b32.xlu0 %v1784, 1
    %v2333 = vpop.permute.xlu0 %2332
    %2334 = vrot.lane.b32.xlu0 %v1785, 1
    %v2335 = vpop.permute.xlu0 %2334
    %2336 = vrot.lane.b32.xlu0 %v1786, 1
    %v2337 = vpop.permute.xlu0 %2336
    %2338 = vrot.lane.b32.xlu0 %v1787, 1
    %v2339 = vpop.permute.xlu0 %2338
    %v2340 = vsel %vm647, %v2333, %v2335
    %v2341 = vsel %vm647, %v2335, %v2337
    %v2342 = vsel %vm647, %v2337, %v2339
    %v2347 = vsel %vm647, 0.0, %v2333
    %v2348 = vsel %vm660, %v2347, 0.0
    %v2349 = vsel %vm661, %v2340, 0.0
    %v2350 = vsel %vm662, %v2341, 0.0
    %v2351 = vsel %vm663, %v2342, 0.0
    %s2352 = scalar_lea.vmem %s3, 12
    %v2353 = vld [vmem:[%s2352] sm:$0xf]
    %v2355 = vsel %vm127, %v2353, 0
    %v2358 = vsel %vm131, %v2348, 0
    %v2361 = vsel %vm131, %v2349, 0
    %v2364 = vsel %vm131, %v2350, 0
    %v2367 = vsel %vm131, %v2351, 0
    %2369 = vmatprep.subr.mxu0 %v2361
    %2370 = vmatpush1.msra.mxu0 %v2358
    %2371 = vmatprep.subr.mxu0 0.0
    %2372 = vmatpush1.msra.mxu0 0.0
    %2373 = vmatprep.subr.mxu0 0.0
    %2374 = vmatpush1.msra.mxu0 0.0
    %2375 = vmatprep.subr.mxu0 0.0
    %2376 = vmatpush1.msra.mxu0 0.0
    %2377 = vmatprep.subr.mxu0 0.0
    %2378 = vmatpush1.msra.mxu0 0.0
    %2379 = vmatprep.subr.mxu0 0.0
    %2380 = vmatpush1.msra.mxu0 0.0
    %2381 = vmatprep.subr.mxu0 0.0
    %2382 = vmatpush1.msra.mxu0 0.0
    %2383 = vmatprep.subr.mxu0 0.0
    %2384 = vmatpush1.msra.mxu0 0.0
    %2385 = vmatprep.subr.mxu0 0.0
    %2386 = vmatpush1.msra.mxu0 0.0
    %2387 = vmatprep.subr.mxu0 0.0
    %2388 = vmatpush1.msra.mxu0 0.0
    %2389 = vmatprep.subr.mxu0 0.0
    %2390 = vmatpush1.msra.mxu0 0.0
    %2391 = vmatprep.subr.mxu0 0.0
    %2392 = vmatpush1.msra.mxu0 0.0
    %2393 = vmatprep.subr.mxu0 0.0
    %2394 = vmatpush1.msra.mxu0 0.0
    %2395 = vmatprep.subr.mxu0 0.0
    %2396 = vmatpush1.msra.mxu0 0.0
    %2397 = vmatprep.subr.mxu0 0.0
    %2398 = vmatpush1.msra.mxu0 0.0
    %2399 = vmatprep.subr.mxu0 0.0
    %2400 = vmatpush1.msra.mxu0 0.0
    %2401 = vmatprep.subr.mxu0 0.0
    %2402 = vmatpush1.msra.mxu0 0.0
    %2403 = vmatprep.subr.mxu0 0.0
    %2404 = vmatpush1.msra.mxu0 0.0
    %2405 = vmatprep.subr.mxu0 0.0
    %2406 = vmatpush1.msra.mxu0 0.0
    %2407 = vmatprep.subr.mxu0 0.0
    %2408 = vmatpush1.msra.mxu0 0.0
    %2409 = vmatprep.subr.mxu0 0.0
    %2410 = vmatpush1.msra.mxu0 0.0
    %2411 = vmatprep.subr.mxu0 0.0
    %2412 = vmatpush1.msra.mxu0 0.0
    %2413 = vmatprep.subr.mxu0 0.0
    %2414 = vmatpush1.msra.mxu0 0.0
    %2415 = vmatprep.subr.mxu0 0.0
    %2416 = vmatpush1.msra.mxu0 0.0
    %2417 = vmatprep.subr.mxu0 0.0
    %2418 = vmatpush1.msra.mxu0 0.0
    %2419 = vmatprep.subr.mxu0 0.0
    %2420 = vmatpush1.msra.mxu0 0.0
    %2421 = vmatprep.subr.mxu0 0.0
    %2422 = vmatpush1.msra.mxu0 0.0
    %2423 = vmatprep.subr.mxu0 0.0
    %2424 = vmatpush1.msra.mxu0 0.0
    %2425 = vmatprep.subr.mxu0 0.0
    %2426 = vmatpush1.msra.mxu0 0.0
    %2427 = vmatprep.subr.mxu0 0.0
    %2428 = vmatpush1.msra.mxu0 0.0
    %2429 = vmatprep.subr.mxu0 0.0
    %2430 = vmatpush1.msra.mxu0 0.0
    %2431 = vmatprep.subr.mxu0 0.0
    %2432 = vmatpush1.msra.mxu0 0.0
    %2433 = vmatprep.mubr.f32.mxu0 0.0
    %2434 = vmatmul.mubr.f32.gmra.mrb[0].mxu0 %v2355
    %v2435 = vpop.f32.mrb[0].mxu0
    %v2436 = vadd.f32 0.0, %v2435
    %v2437 = vpop.f32.mrb[0].mxu0
    %v2438 = vadd.f32 0.0, %v2437
    %2439 = vdwg.mxu0
    %2440 = vmatprep.subr.mxu0 %v2367
    %2441 = vmatpush1.msra.mxu0 %v2364
    %2442 = vmatprep.subr.mxu0 0.0
    %2443 = vmatpush1.msra.mxu0 0.0
    %2444 = vmatprep.subr.mxu0 0.0
    %2445 = vmatpush1.msra.mxu0 0.0
    %2446 = vmatprep.subr.mxu0 0.0
    %2447 = vmatpush1.msra.mxu0 0.0
    %2448 = vmatprep.subr.mxu0 0.0
    %2449 = vmatpush1.msra.mxu0 0.0
    %2450 = vmatprep.subr.mxu0 0.0
    %2451 = vmatpush1.msra.mxu0 0.0
    %2452 = vmatprep.subr.mxu0 0.0
    %2453 = vmatpush1.msra.mxu0 0.0
    %2454 = vmatprep.subr.mxu0 0.0
    %2455 = vmatpush1.msra.mxu0 0.0
    %2456 = vmatprep.subr.mxu0 0.0
    %2457 = vmatpush1.msra.mxu0 0.0
    %2458 = vmatprep.subr.mxu0 0.0
    %2459 = vmatpush1.msra.mxu0 0.0
    %2460 = vmatprep.subr.mxu0 0.0
    %2461 = vmatpush1.msra.mxu0 0.0
    %2462 = vmatprep.subr.mxu0 0.0
    %2463 = vmatpush1.msra.mxu0 0.0
    %2464 = vmatprep.subr.mxu0 0.0
    %2465 = vmatpush1.msra.mxu0 0.0
    %2466 = vmatprep.subr.mxu0 0.0
    %2467 = vmatpush1.msra.mxu0 0.0
    %2468 = vmatprep.subr.mxu0 0.0
    %2469 = vmatpush1.msra.mxu0 0.0
    %2470 = vmatprep.subr.mxu0 0.0
    %2471 = vmatpush1.msra.mxu0 0.0
    %2472 = vmatprep.subr.mxu0 0.0
    %2473 = vmatpush1.msra.mxu0 0.0
    %2474 = vmatprep.subr.mxu0 0.0
    %2475 = vmatpush1.msra.mxu0 0.0
    %2476 = vmatprep.subr.mxu0 0.0
    %2477 = vmatpush1.msra.mxu0 0.0
    %2478 = vmatprep.subr.mxu0 0.0
    %2479 = vmatpush1.msra.mxu0 0.0
    %2480 = vmatprep.subr.mxu0 0.0
    %2481 = vmatpush1.msra.mxu0 0.0
    %2482 = vmatprep.subr.mxu0 0.0
    %2483 = vmatpush1.msra.mxu0 0.0
    %2484 = vmatprep.subr.mxu0 0.0
    %2485 = vmatpush1.msra.mxu0 0.0
    %2486 = vmatprep.subr.mxu0 0.0
    %2487 = vmatpush1.msra.mxu0 0.0
    %2488 = vmatprep.subr.mxu0 0.0
    %2489 = vmatpush1.msra.mxu0 0.0
    %2490 = vmatprep.subr.mxu0 0.0
    %2491 = vmatpush1.msra.mxu0 0.0
    %2492 = vmatprep.subr.mxu0 0.0
    %2493 = vmatpush1.msra.mxu0 0.0
    %2494 = vmatprep.subr.mxu0 0.0
    %2495 = vmatpush1.msra.mxu0 0.0
    %2496 = vmatprep.subr.mxu0 0.0
    %2497 = vmatpush1.msra.mxu0 0.0
    %2498 = vmatprep.subr.mxu0 0.0
    %2499 = vmatpush1.msra.mxu0 0.0
    %2500 = vmatprep.subr.mxu0 0.0
    %2501 = vmatpush1.msra.mxu0 0.0
    %2502 = vmatprep.subr.mxu0 0.0
    %2503 = vmatpush1.msra.mxu0 0.0
    %2504 = vmatprep.mubr.f32.mxu0 0.0
    %2505 = vmatmul.mubr.f32.gmra.mrb[0].mxu0 %v2355
    %v2506 = vpop.f32.mrb[0].mxu0
    %v2507 = vadd.f32 0.0, %v2506
    %v2508 = vpop.f32.mrb[0].mxu0
    %v2509 = vadd.f32 0.0, %v2508
    %2510 = vdwg.mxu0
    %v2511 = vadd.f32 %v2328, %v2436
    %v2512 = vadd.f32 %v2329, %v2438
    %v2513 = vadd.f32 %v2330, %v2507
    %v2514 = vadd.f32 %v2331, %v2509
    %s2515 = scalar_lea.vmem %s3, 16
    %v2516 = vld [vmem:[%s2515] sm:$0xf]
    %v2518 = vsel %vm127, %v2516, 0
    %v2520 = vsel %vm131, %v1784, 0
    %v2522 = vsel %vm131, %v1785, 0
    %v2524 = vsel %vm131, %v1786, 0
    %v2526 = vsel %vm131, %v1787, 0
    %2528 = vmatprep.subr.mxu0 %v2522
    %2529 = vmatpush1.msra.mxu0 %v2520
    %2530 = vmatprep.subr.mxu0 0.0
    %2531 = vmatpush1.msra.mxu0 0.0
    %2532 = vmatprep.subr.mxu0 0.0
    %2533 = vmatpush1.msra.mxu0 0.0
    %2534 = vmatprep.subr.mxu0 0.0
    %2535 = vmatpush1.msra.mxu0 0.0
    %2536 = vmatprep.subr.mxu0 0.0
    %2537 = vmatpush1.msra.mxu0 0.0
    %2538 = vmatprep.subr.mxu0 0.0
    %2539 = vmatpush1.msra.mxu0 0.0
    %2540 = vmatprep.subr.mxu0 0.0
    %2541 = vmatpush1.msra.mxu0 0.0
    %2542 = vmatprep.subr.mxu0 0.0
    %2543 = vmatpush1.msra.mxu0 0.0
    %2544 = vmatprep.subr.mxu0 0.0
    %2545 = vmatpush1.msra.mxu0 0.0
    %2546 = vmatprep.subr.mxu0 0.0
    %2547 = vmatpush1.msra.mxu0 0.0
    %2548 = vmatprep.subr.mxu0 0.0
    %2549 = vmatpush1.msra.mxu0 0.0
    %2550 = vmatprep.subr.mxu0 0.0
    %2551 = vmatpush1.msra.mxu0 0.0
    %2552 = vmatprep.subr.mxu0 0.0
    %2553 = vmatpush1.msra.mxu0 0.0
    %2554 = vmatprep.subr.mxu0 0.0
    %2555 = vmatpush1.msra.mxu0 0.0
    %2556 = vmatprep.subr.mxu0 0.0
    %2557 = vmatpush1.msra.mxu0 0.0
    %2558 = vmatprep.subr.mxu0 0.0
    %2559 = vmatpush1.msra.mxu0 0.0
    %2560 = vmatprep.subr.mxu0 0.0
    %2561 = vmatpush1.msra.mxu0 0.0
    %2562 = vmatprep.subr.mxu0 0.0
    %2563 = vmatpush1.msra.mxu0 0.0
    %2564 = vmatprep.subr.mxu0 0.0
    %2565 = vmatpush1.msra.mxu0 0.0
    %2566 = vmatprep.subr.mxu0 0.0
    %2567 = vmatpush1.msra.mxu0 0.0
    %2568 = vmatprep.subr.mxu0 0.0
    %2569 = vmatpush1.msra.mxu0 0.0
    %2570 = vmatprep.subr.mxu0 0.0
    %2571 = vmatpush1.msra.mxu0 0.0
    %2572 = vmatprep.subr.mxu0 0.0
    %2573 = vmatpush1.msra.mxu0 0.0
    %2574 = vmatprep.subr.mxu0 0.0
    %2575 = vmatpush1.msra.mxu0 0.0
    %2576 = vmatprep.subr.mxu0 0.0
    %2577 = vmatpush1.msra.mxu0 0.0
    %2578 = vmatprep.subr.mxu0 0.0
    %2579 = vmatpush1.msra.mxu0 0.0
    %2580 = vmatprep.subr.mxu0 0.0
    %2581 = vmatpush1.msra.mxu0 0.0
    %2582 = vmatprep.subr.mxu0 0.0
    %2583 = vmatpush1.msra.mxu0 0.0
    %2584 = vmatprep.subr.mxu0 0.0
    %2585 = vmatpush1.msra.mxu0 0.0
    %2586 = vmatprep.subr.mxu0 0.0
    %2587 = vmatpush1.msra.mxu0 0.0
    %2588 = vmatprep.subr.mxu0 0.0
    %2589 = vmatpush1.msra.mxu0 0.0
    %2590 = vmatprep.subr.mxu0 0.0
    %2591 = vmatpush1.msra.mxu0 0.0
    %2592 = vmatprep.mubr.f32.mxu0 0.0
    %2593 = vmatmul.mubr.f32.gmra.mrb[0].mxu0 %v2518
    %v2594 = vpop.f32.mrb[0].mxu0
    %v2595 = vadd.f32 0.0, %v2594
    %v2596 = vpop.f32.mrb[0].mxu0
    %v2597 = vadd.f32 0.0, %v2596
    %2598 = vdwg.mxu0
    %2599 = vmatprep.subr.mxu0 %v2526
    %2600 = vmatpush1.msra.mxu0 %v2524
    %2601 = vmatprep.subr.mxu0 0.0
    %2602 = vmatpush1.msra.mxu0 0.0
    %2603 = vmatprep.subr.mxu0 0.0
    %2604 = vmatpush1.msra.mxu0 0.0
    %2605 = vmatprep.subr.mxu0 0.0
    %2606 = vmatpush1.msra.mxu0 0.0
    %2607 = vmatprep.subr.mxu0 0.0
    %2608 = vmatpush1.msra.mxu0 0.0
    %2609 = vmatprep.subr.mxu0 0.0
    %2610 = vmatpush1.msra.mxu0 0.0
    %2611 = vmatprep.subr.mxu0 0.0
    %2612 = vmatpush1.msra.mxu0 0.0
    %2613 = vmatprep.subr.mxu0 0.0
    %2614 = vmatpush1.msra.mxu0 0.0
    %2615 = vmatprep.subr.mxu0 0.0
    %2616 = vmatpush1.msra.mxu0 0.0
    %2617 = vmatprep.subr.mxu0 0.0
    %2618 = vmatpush1.msra.mxu0 0.0
    %2619 = vmatprep.subr.mxu0 0.0
    %2620 = vmatpush1.msra.mxu0 0.0
    %2621 = vmatprep.subr.mxu0 0.0
    %2622 = vmatpush1.msra.mxu0 0.0
    %2623 = vmatprep.subr.mxu0 0.0
    %2624 = vmatpush1.msra.mxu0 0.0
    %2625 = vmatprep.subr.mxu0 0.0
    %2626 = vmatpush1.msra.mxu0 0.0
    %2627 = vmatprep.subr.mxu0 0.0
    %2628 = vmatpush1.msra.mxu0 0.0
    %2629 = vmatprep.subr.mxu0 0.0
    %2630 = vmatpush1.msra.mxu0 0.0
    %2631 = vmatprep.subr.mxu0 0.0
    %2632 = vmatpush1.msra.mxu0 0.0
    %2633 = vmatprep.subr.mxu0 0.0
    %2634 = vmatpush1.msra.mxu0 0.0
    %2635 = vmatprep.subr.mxu0 0.0
    %2636 = vmatpush1.msra.mxu0 0.0
    %2637 = vmatprep.subr.mxu0 0.0
    %2638 = vmatpush1.msra.mxu0 0.0
    %2639 = vmatprep.subr.mxu0 0.0
    %2640 = vmatpush1.msra.mxu0 0.0
    %2641 = vmatprep.subr.mxu0 0.0
    %2642 = vmatpush1.msra.mxu0 0.0
    %2643 = vmatprep.subr.mxu0 0.0
    %2644 = vmatpush1.msra.mxu0 0.0
    %2645 = vmatprep.subr.mxu0 0.0
    %2646 = vmatpush1.msra.mxu0 0.0
    %2647 = vmatprep.subr.mxu0 0.0
    %2648 = vmatpush1.msra.mxu0 0.0
    %2649 = vmatprep.subr.mxu0 0.0
    %2650 = vmatpush1.msra.mxu0 0.0
    %2651 = vmatprep.subr.mxu0 0.0
    %2652 = vmatpush1.msra.mxu0 0.0
    %2653 = vmatprep.subr.mxu0 0.0
    %2654 = vmatpush1.msra.mxu0 0.0
    %2655 = vmatprep.subr.mxu0 0.0
    %2656 = vmatpush1.msra.mxu0 0.0
    %2657 = vmatprep.subr.mxu0 0.0
    %2658 = vmatpush1.msra.mxu0 0.0
    %2659 = vmatprep.subr.mxu0 0.0
    %2660 = vmatpush1.msra.mxu0 0.0
    %2661 = vmatprep.subr.mxu0 0.0
    %2662 = vmatpush1.msra.mxu0 0.0
    %2663 = vmatprep.mubr.f32.mxu0 0.0
    %2664 = vmatmul.mubr.f32.gmra.mrb[0].mxu0 %v2518
    %v2665 = vpop.f32.mrb[0].mxu0
    %v2666 = vadd.f32 0.0, %v2665
    %v2667 = vpop.f32.mrb[0].mxu0
    %v2668 = vadd.f32 0.0, %v2667
    %2669 = vdwg.mxu0
    %v2670 = vadd.f32 %v2511, %v2595
    %v2671 = vadd.f32 %v2512, %v2597
    %v2672 = vadd.f32 %v2513, %v2666
    %v2673 = vadd.f32 %v2514, %v2668
    %2674 = vrot.lane.b32.xlu0 %v1784, 127
    %v2675 = vpop.permute.xlu0 %2674
    %2676 = vrot.lane.b32.xlu0 %v1785, 127
    %v2677 = vpop.permute.xlu0 %2676
    %2678 = vrot.lane.b32.xlu0 %v1786, 127
    %v2679 = vpop.permute.xlu0 %2678
    %2680 = vrot.lane.b32.xlu0 %v1787, 127
    %v2681 = vpop.permute.xlu0 %2680
    %v2682 = vsel %vm998, %v2675, %v2677
    %v2683 = vsel %vm998, %v2677, %v2679
    %v2684 = vsel %vm998, %v2679, %v2681
    %v2689 = vsel %vm998, %v2681, 0.0
    %v2690 = vsel %vm1011, %v2682, 0.0
    %v2691 = vsel %vm1012, %v2683, 0.0
    %v2692 = vsel %vm1013, %v2684, 0.0
    %v2693 = vsel %vm1014, %v2689, 0.0
    %s2694 = scalar_lea.vmem %s3, 20
    %v2695 = vld [vmem:[%s2694] sm:$0xf]
    %v2697 = vsel %vm127, %v2695, 0
    %v2700 = vsel %vm131, %v2690, 0
    %v2703 = vsel %vm131, %v2691, 0
    %v2706 = vsel %vm131, %v2692, 0
    %v2709 = vsel %vm131, %v2693, 0
    %2711 = vmatprep.subr.mxu0 %v2703
    %2712 = vmatpush1.msra.mxu0 %v2700
    %2713 = vmatprep.subr.mxu0 0.0
    %2714 = vmatpush1.msra.mxu0 0.0
    %2715 = vmatprep.subr.mxu0 0.0
    %2716 = vmatpush1.msra.mxu0 0.0
    %2717 = vmatprep.subr.mxu0 0.0
    %2718 = vmatpush1.msra.mxu0 0.0
    %2719 = vmatprep.subr.mxu0 0.0
    %2720 = vmatpush1.msra.mxu0 0.0
    %2721 = vmatprep.subr.mxu0 0.0
    %2722 = vmatpush1.msra.mxu0 0.0
    %2723 = vmatprep.subr.mxu0 0.0
    %2724 = vmatpush1.msra.mxu0 0.0
    %2725 = vmatprep.subr.mxu0 0.0
    %2726 = vmatpush1.msra.mxu0 0.0
    %2727 = vmatprep.subr.mxu0 0.0
    %2728 = vmatpush1.msra.mxu0 0.0
    %2729 = vmatprep.subr.mxu0 0.0
    %2730 = vmatpush1.msra.mxu0 0.0
    %2731 = vmatprep.subr.mxu0 0.0
    %2732 = vmatpush1.msra.mxu0 0.0
    %2733 = vmatprep.subr.mxu0 0.0
    %2734 = vmatpush1.msra.mxu0 0.0
    %2735 = vmatprep.subr.mxu0 0.0
    %2736 = vmatpush1.msra.mxu0 0.0
    %2737 = vmatprep.subr.mxu0 0.0
    %2738 = vmatpush1.msra.mxu0 0.0
    %2739 = vmatprep.subr.mxu0 0.0
    %2740 = vmatpush1.msra.mxu0 0.0
    %2741 = vmatprep.subr.mxu0 0.0
    %2742 = vmatpush1.msra.mxu0 0.0
    %2743 = vmatprep.subr.mxu0 0.0
    %2744 = vmatpush1.msra.mxu0 0.0
    %2745 = vmatprep.subr.mxu0 0.0
    %2746 = vmatpush1.msra.mxu0 0.0
    %2747 = vmatprep.subr.mxu0 0.0
    %2748 = vmatpush1.msra.mxu0 0.0
    %2749 = vmatprep.subr.mxu0 0.0
    %2750 = vmatpush1.msra.mxu0 0.0
    %2751 = vmatprep.subr.mxu0 0.0
    %2752 = vmatpush1.msra.mxu0 0.0
    %2753 = vmatprep.subr.mxu0 0.0
    %2754 = vmatpush1.msra.mxu0 0.0
    %2755 = vmatprep.subr.mxu0 0.0
    %2756 = vmatpush1.msra.mxu0 0.0
    %2757 = vmatprep.subr.mxu0 0.0
    %2758 = vmatpush1.msra.mxu0 0.0
    %2759 = vmatprep.subr.mxu0 0.0
    %2760 = vmatpush1.msra.mxu0 0.0
    %2761 = vmatprep.subr.mxu0 0.0
    %2762 = vmatpush1.msra.mxu0 0.0
    %2763 = vmatprep.subr.mxu0 0.0
    %2764 = vmatpush1.msra.mxu0 0.0
    %2765 = vmatprep.subr.mxu0 0.0
    %2766 = vmatpush1.msra.mxu0 0.0
    %2767 = vmatprep.subr.mxu0 0.0
    %2768 = vmatpush1.msra.mxu0 0.0
    %2769 = vmatprep.subr.mxu0 0.0
    %2770 = vmatpush1.msra.mxu0 0.0
    %2771 = vmatprep.subr.mxu0 0.0
    %2772 = vmatpush1.msra.mxu0 0.0
    %2773 = vmatprep.subr.mxu0 0.0
    %2774 = vmatpush1.msra.mxu0 0.0
    %2775 = vmatprep.mubr.f32.mxu0 0.0
    %2776 = vmatmul.mubr.f32.gmra.mrb[0].mxu0 %v2697
    %v2777 = vpop.f32.mrb[0].mxu0
    %v2778 = vadd.f32 0.0, %v2777
    %v2779 = vpop.f32.mrb[0].mxu0
    %v2780 = vadd.f32 0.0, %v2779
    %2781 = vdwg.mxu0
    %2782 = vmatprep.subr.mxu0 %v2709
    %2783 = vmatpush1.msra.mxu0 %v2706
    %2784 = vmatprep.subr.mxu0 0.0
    %2785 = vmatpush1.msra.mxu0 0.0
    %2786 = vmatprep.subr.mxu0 0.0
    %2787 = vmatpush1.msra.mxu0 0.0
    %2788 = vmatprep.subr.mxu0 0.0
    %2789 = vmatpush1.msra.mxu0 0.0
    %2790 = vmatprep.subr.mxu0 0.0
    %2791 = vmatpush1.msra.mxu0 0.0
    %2792 = vmatprep.subr.mxu0 0.0
    %2793 = vmatpush1.msra.mxu0 0.0
    %2794 = vmatprep.subr.mxu0 0.0
    %2795 = vmatpush1.msra.mxu0 0.0
    %2796 = vmatprep.subr.mxu0 0.0
    %2797 = vmatpush1.msra.mxu0 0.0
    %2798 = vmatprep.subr.mxu0 0.0
    %2799 = vmatpush1.msra.mxu0 0.0
    %2800 = vmatprep.subr.mxu0 0.0
    %2801 = vmatpush1.msra.mxu0 0.0
    %2802 = vmatprep.subr.mxu0 0.0
    %2803 = vmatpush1.msra.mxu0 0.0
    %2804 = vmatprep.subr.mxu0 0.0
    %2805 = vmatpush1.msra.mxu0 0.0
    %2806 = vmatprep.subr.mxu0 0.0
    %2807 = vmatpush1.msra.mxu0 0.0
    %2808 = vmatprep.subr.mxu0 0.0
    %2809 = vmatpush1.msra.mxu0 0.0
    %2810 = vmatprep.subr.mxu0 0.0
    %2811 = vmatpush1.msra.mxu0 0.0
    %2812 = vmatprep.subr.mxu0 0.0
    %2813 = vmatpush1.msra.mxu0 0.0
    %2814 = vmatprep.subr.mxu0 0.0
    %2815 = vmatpush1.msra.mxu0 0.0
    %2816 = vmatprep.subr.mxu0 0.0
    %2817 = vmatpush1.msra.mxu0 0.0
    %2818 = vmatprep.subr.mxu0 0.0
    %2819 = vmatpush1.msra.mxu0 0.0
    %2820 = vmatprep.subr.mxu0 0.0
    %2821 = vmatpush1.msra.mxu0 0.0
    %2822 = vmatprep.subr.mxu0 0.0
    %2823 = vmatpush1.msra.mxu0 0.0
    %2824 = vmatprep.subr.mxu0 0.0
    %2825 = vmatpush1.msra.mxu0 0.0
    %2826 = vmatprep.subr.mxu0 0.0
    %2827 = vmatpush1.msra.mxu0 0.0
    %2828 = vmatprep.subr.mxu0 0.0
    %2829 = vmatpush1.msra.mxu0 0.0
    %2830 = vmatprep.subr.mxu0 0.0
    %2831 = vmatpush1.msra.mxu0 0.0
    %2832 = vmatprep.subr.mxu0 0.0
    %2833 = vmatpush1.msra.mxu0 0.0
    %2834 = vmatprep.subr.mxu0 0.0
    %2835 = vmatpush1.msra.mxu0 0.0
    %2836 = vmatprep.subr.mxu0 0.0
    %2837 = vmatpush1.msra.mxu0 0.0
    %2838 = vmatprep.subr.mxu0 0.0
    %2839 = vmatpush1.msra.mxu0 0.0
    %2840 = vmatprep.subr.mxu0 0.0
    %2841 = vmatpush1.msra.mxu0 0.0
    %2842 = vmatprep.subr.mxu0 0.0
    %2843 = vmatpush1.msra.mxu0 0.0
    %2844 = vmatprep.subr.mxu0 0.0
    %2845 = vmatpush1.msra.mxu0 0.0
    %2846 = vmatprep.mubr.f32.mxu0 0.0
    %2847 = vmatmul.mubr.f32.gmra.mrb[0].mxu0 %v2697
    %v2848 = vpop.f32.mrb[0].mxu0
    %v2849 = vadd.f32 0.0, %v2848
    %v2850 = vpop.f32.mrb[0].mxu0
    %v2851 = vadd.f32 0.0, %v2850
    %2852 = vdwg.mxu0
    %v2853 = vadd.f32 %v2670, %v2778
    %v2854 = vadd.f32 %v2671, %v2780
    %v2855 = vadd.f32 %v2672, %v2849
    %v2856 = vadd.f32 %v2673, %v2851
    %2857 = vrot.lane.b32.xlu0 %v1784, 113
    %v2858 = vpop.permute.xlu0 %2857
    %2859 = vrot.lane.b32.xlu0 %v1785, 113
    %v2860 = vpop.permute.xlu0 %2859
    %2861 = vrot.lane.b32.xlu0 %v1786, 113
    %v2862 = vpop.permute.xlu0 %2861
    %2863 = vrot.lane.b32.xlu0 %v1787, 113
    %v2864 = vpop.permute.xlu0 %2863
    %v2865 = vsel %vm1190, %v2858, %v2860
    %v2866 = vsel %vm1190, %v2860, %v2862
    %v2867 = vsel %vm1190, %v2862, %v2864
    %v2872 = vsel %vm1190, %v2864, 0.0
    %v2873 = vsel %vm1207, %v2865, 0.0
    %v2874 = vsel %vm1208, %v2866, 0.0
    %v2875 = vsel %vm1209, %v2867, 0.0
    %v2876 = vsel %vm1210, %v2872, 0.0
    %s2877 = scalar_lea.vmem %s3, 24
    %v2878 = vld [vmem:[%s2877] sm:$0xf]
    %v2880 = vsel %vm127, %v2878, 0
    %v2883 = vsel %vm131, %v2873, 0
    %v2886 = vsel %vm131, %v2874, 0
    %v2889 = vsel %vm131, %v2875, 0
    %v2892 = vsel %vm131, %v2876, 0
    %2894 = vmatprep.subr.mxu0 %v2886
    %2895 = vmatpush1.msra.mxu0 %v2883
    %2896 = vmatprep.subr.mxu0 0.0
    %2897 = vmatpush1.msra.mxu0 0.0
    %2898 = vmatprep.subr.mxu0 0.0
    %2899 = vmatpush1.msra.mxu0 0.0
    %2900 = vmatprep.subr.mxu0 0.0
    %2901 = vmatpush1.msra.mxu0 0.0
    %2902 = vmatprep.subr.mxu0 0.0
    %2903 = vmatpush1.msra.mxu0 0.0
    %2904 = vmatprep.subr.mxu0 0.0
    %2905 = vmatpush1.msra.mxu0 0.0
    %2906 = vmatprep.subr.mxu0 0.0
    %2907 = vmatpush1.msra.mxu0 0.0
    %2908 = vmatprep.subr.mxu0 0.0
    %2909 = vmatpush1.msra.mxu0 0.0
    %2910 = vmatprep.subr.mxu0 0.0
    %2911 = vmatpush1.msra.mxu0 0.0
    %2912 = vmatprep.subr.mxu0 0.0
    %2913 = vmatpush1.msra.mxu0 0.0
    %2914 = vmatprep.subr.mxu0 0.0
    %2915 = vmatpush1.msra.mxu0 0.0
    %2916 = vmatprep.subr.mxu0 0.0
    %2917 = vmatpush1.msra.mxu0 0.0
    %2918 = vmatprep.subr.mxu0 0.0
    %2919 = vmatpush1.msra.mxu0 0.0
    %2920 = vmatprep.subr.mxu0 0.0
    %2921 = vmatpush1.msra.mxu0 0.0
    %2922 = vmatprep.subr.mxu0 0.0
    %2923 = vmatpush1.msra.mxu0 0.0
    %2924 = vmatprep.subr.mxu0 0.0
    %2925 = vmatpush1.msra.mxu0 0.0
    %2926 = vmatprep.subr.mxu0 0.0
    %2927 = vmatpush1.msra.mxu0 0.0
    %2928 = vmatprep.subr.mxu0 0.0
    %2929 = vmatpush1.msra.mxu0 0.0
    %2930 = vmatprep.subr.mxu0 0.0
    %2931 = vmatpush1.msra.mxu0 0.0
    %2932 = vmatprep.subr.mxu0 0.0
    %2933 = vmatpush1.msra.mxu0 0.0
    %2934 = vmatprep.subr.mxu0 0.0
    %2935 = vmatpush1.msra.mxu0 0.0
    %2936 = vmatprep.subr.mxu0 0.0
    %2937 = vmatpush1.msra.mxu0 0.0
    %2938 = vmatprep.subr.mxu0 0.0
    %2939 = vmatpush1.msra.mxu0 0.0
    %2940 = vmatprep.subr.mxu0 0.0
    %2941 = vmatpush1.msra.mxu0 0.0
    %2942 = vmatprep.subr.mxu0 0.0
    %2943 = vmatpush1.msra.mxu0 0.0
    %2944 = vmatprep.subr.mxu0 0.0
    %2945 = vmatpush1.msra.mxu0 0.0
    %2946 = vmatprep.subr.mxu0 0.0
    %2947 = vmatpush1.msra.mxu0 0.0
    %2948 = vmatprep.subr.mxu0 0.0
    %2949 = vmatpush1.msra.mxu0 0.0
    %2950 = vmatprep.subr.mxu0 0.0
    %2951 = vmatpush1.msra.mxu0 0.0
    %2952 = vmatprep.subr.mxu0 0.0
    %2953 = vmatpush1.msra.mxu0 0.0
    %2954 = vmatprep.subr.mxu0 0.0
    %2955 = vmatpush1.msra.mxu0 0.0
    %2956 = vmatprep.subr.mxu0 0.0
    %2957 = vmatpush1.msra.mxu0 0.0
    %2958 = vmatprep.mubr.f32.mxu0 0.0
    %2959 = vmatmul.mubr.f32.gmra.mrb[0].mxu0 %v2880
    %v2960 = vpop.f32.mrb[0].mxu0
    %v2961 = vadd.f32 0.0, %v2960
    %v2962 = vpop.f32.mrb[0].mxu0
    %v2963 = vadd.f32 0.0, %v2962
    %2964 = vdwg.mxu0
    %2965 = vmatprep.subr.mxu0 %v2892
    %2966 = vmatpush1.msra.mxu0 %v2889
    %2967 = vmatprep.subr.mxu0 0.0
    %2968 = vmatpush1.msra.mxu0 0.0
    %2969 = vmatprep.subr.mxu0 0.0
    %2970 = vmatpush1.msra.mxu0 0.0
    %2971 = vmatprep.subr.mxu0 0.0
    %2972 = vmatpush1.msra.mxu0 0.0
    %2973 = vmatprep.subr.mxu0 0.0
    %2974 = vmatpush1.msra.mxu0 0.0
    %2975 = vmatprep.subr.mxu0 0.0
    %2976 = vmatpush1.msra.mxu0 0.0
    %2977 = vmatprep.subr.mxu0 0.0
    %2978 = vmatpush1.msra.mxu0 0.0
    %2979 = vmatprep.subr.mxu0 0.0
    %2980 = vmatpush1.msra.mxu0 0.0
    %2981 = vmatprep.subr.mxu0 0.0
    %2982 = vmatpush1.msra.mxu0 0.0
    %2983 = vmatprep.subr.mxu0 0.0
    %2984 = vmatpush1.msra.mxu0 0.0
    %2985 = vmatprep.subr.mxu0 0.0
    %2986 = vmatpush1.msra.mxu0 0.0
    %2987 = vmatprep.subr.mxu0 0.0
    %2988 = vmatpush1.msra.mxu0 0.0
    %2989 = vmatprep.subr.mxu0 0.0
    %2990 = vmatpush1.msra.mxu0 0.0
    %2991 = vmatprep.subr.mxu0 0.0
    %2992 = vmatpush1.msra.mxu0 0.0
    %2993 = vmatprep.subr.mxu0 0.0
    %2994 = vmatpush1.msra.mxu0 0.0
    %2995 = vmatprep.subr.mxu0 0.0
    %2996 = vmatpush1.msra.mxu0 0.0
    %2997 = vmatprep.subr.mxu0 0.0
    %2998 = vmatpush1.msra.mxu0 0.0
    %2999 = vmatprep.subr.mxu0 0.0
    %3000 = vmatpush1.msra.mxu0 0.0
    %3001 = vmatprep.subr.mxu0 0.0
    %3002 = vmatpush1.msra.mxu0 0.0
    %3003 = vmatprep.subr.mxu0 0.0
    %3004 = vmatpush1.msra.mxu0 0.0
    %3005 = vmatprep.subr.mxu0 0.0
    %3006 = vmatpush1.msra.mxu0 0.0
    %3007 = vmatprep.subr.mxu0 0.0
    %3008 = vmatpush1.msra.mxu0 0.0
    %3009 = vmatprep.subr.mxu0 0.0
    %3010 = vmatpush1.msra.mxu0 0.0
    %3011 = vmatprep.subr.mxu0 0.0
    %3012 = vmatpush1.msra.mxu0 0.0
    %3013 = vmatprep.subr.mxu0 0.0
    %3014 = vmatpush1.msra.mxu0 0.0
    %3015 = vmatprep.subr.mxu0 0.0
    %3016 = vmatpush1.msra.mxu0 0.0
    %3017 = vmatprep.subr.mxu0 0.0
    %3018 = vmatpush1.msra.mxu0 0.0
    %3019 = vmatprep.subr.mxu0 0.0
    %3020 = vmatpush1.msra.mxu0 0.0
    %3021 = vmatprep.subr.mxu0 0.0
    %3022 = vmatpush1.msra.mxu0 0.0
    %3023 = vmatprep.subr.mxu0 0.0
    %3024 = vmatpush1.msra.mxu0 0.0
    %3025 = vmatprep.subr.mxu0 0.0
    %3026 = vmatpush1.msra.mxu0 0.0
    %3027 = vmatprep.subr.mxu0 0.0
    %3028 = vmatpush1.msra.mxu0 0.0
    %3029 = vmatprep.mubr.f32.mxu0 0.0
    %3030 = vmatmul.mubr.f32.gmra.mrb[0].mxu0 %v2880
    %v3031 = vpop.f32.mrb[0].mxu0
    %v3032 = vadd.f32 0.0, %v3031
    %v3033 = vpop.f32.mrb[0].mxu0
    %v3034 = vadd.f32 0.0, %v3033
    %3035 = vdwg.mxu0
    %v3036 = vadd.f32 %v2853, %v2961
    %v3037 = vadd.f32 %v2854, %v2963
    %v3038 = vadd.f32 %v2855, %v3032
    %v3039 = vadd.f32 %v2856, %v3034
    %3040 = vrot.lane.b32.xlu0 %v1784, 112
    %v3041 = vpop.permute.xlu0 %3040
    %3042 = vrot.lane.b32.xlu0 %v1785, 112
    %v3043 = vpop.permute.xlu0 %3042
    %3044 = vrot.lane.b32.xlu0 %v1786, 112
    %v3045 = vpop.permute.xlu0 %3044
    %3046 = vrot.lane.b32.xlu0 %v1787, 112
    %v3047 = vpop.permute.xlu0 %3046
    %v3048 = vsel %vm1386, %v3041, %v3043
    %v3049 = vsel %vm1386, %v3043, %v3045
    %v3050 = vsel %vm1386, %v3045, %v3047
    %v3055 = vsel %vm1386, %v3047, 0.0
    %v3056 = vsel %vm1399, %v3048, 0.0
    %v3057 = vsel %vm1400, %v3049, 0.0
    %v3058 = vsel %vm1401, %v3050, 0.0
    %v3059 = vsel %vm1402, %v3055, 0.0
    %s3060 = scalar_lea.vmem %s3, 28
    %v3061 = vld [vmem:[%s3060] sm:$0xf]
    %v3063 = vsel %vm127, %v3061, 0
    %v3066 = vsel %vm131, %v3056, 0
    %v3069 = vsel %vm131, %v3057, 0
    %v3072 = vsel %vm131, %v3058, 0
    %v3075 = vsel %vm131, %v3059, 0
    %3077 = vmatprep.subr.mxu0 %v3069
    %3078 = vmatpush1.msra.mxu0 %v3066
    %3079 = vmatprep.subr.mxu0 0.0
    %3080 = vmatpush1.msra.mxu0 0.0
    %3081 = vmatprep.subr.mxu0 0.0
    %3082 = vmatpush1.msra.mxu0 0.0
    %3083 = vmatprep.subr.mxu0 0.0
    %3084 = vmatpush1.msra.mxu0 0.0
    %3085 = vmatprep.subr.mxu0 0.0
    %3086 = vmatpush1.msra.mxu0 0.0
    %3087 = vmatprep.subr.mxu0 0.0
    %3088 = vmatpush1.msra.mxu0 0.0
    %3089 = vmatprep.subr.mxu0 0.0
    %3090 = vmatpush1.msra.mxu0 0.0
    %3091 = vmatprep.subr.mxu0 0.0
    %3092 = vmatpush1.msra.mxu0 0.0
    %3093 = vmatprep.subr.mxu0 0.0
    %3094 = vmatpush1.msra.mxu0 0.0
    %3095 = vmatprep.subr.mxu0 0.0
    %3096 = vmatpush1.msra.mxu0 0.0
    %3097 = vmatprep.subr.mxu0 0.0
    %3098 = vmatpush1.msra.mxu0 0.0
    %3099 = vmatprep.subr.mxu0 0.0
    %3100 = vmatpush1.msra.mxu0 0.0
    %3101 = vmatprep.subr.mxu0 0.0
    %3102 = vmatpush1.msra.mxu0 0.0
    %3103 = vmatprep.subr.mxu0 0.0
    %3104 = vmatpush1.msra.mxu0 0.0
    %3105 = vmatprep.subr.mxu0 0.0
    %3106 = vmatpush1.msra.mxu0 0.0
    %3107 = vmatprep.subr.mxu0 0.0
    %3108 = vmatpush1.msra.mxu0 0.0
    %3109 = vmatprep.subr.mxu0 0.0
    %3110 = vmatpush1.msra.mxu0 0.0
    %3111 = vmatprep.subr.mxu0 0.0
    %3112 = vmatpush1.msra.mxu0 0.0
    %3113 = vmatprep.subr.mxu0 0.0
    %3114 = vmatpush1.msra.mxu0 0.0
    %3115 = vmatprep.subr.mxu0 0.0
    %3116 = vmatpush1.msra.mxu0 0.0
    %3117 = vmatprep.subr.mxu0 0.0
    %3118 = vmatpush1.msra.mxu0 0.0
    %3119 = vmatprep.subr.mxu0 0.0
    %3120 = vmatpush1.msra.mxu0 0.0
    %3121 = vmatprep.subr.mxu0 0.0
    %3122 = vmatpush1.msra.mxu0 0.0
    %3123 = vmatprep.subr.mxu0 0.0
    %3124 = vmatpush1.msra.mxu0 0.0
    %3125 = vmatprep.subr.mxu0 0.0
    %3126 = vmatpush1.msra.mxu0 0.0
    %3127 = vmatprep.subr.mxu0 0.0
    %3128 = vmatpush1.msra.mxu0 0.0
    %3129 = vmatprep.subr.mxu0 0.0
    %3130 = vmatpush1.msra.mxu0 0.0
    %3131 = vmatprep.subr.mxu0 0.0
    %3132 = vmatpush1.msra.mxu0 0.0
    %3133 = vmatprep.subr.mxu0 0.0
    %3134 = vmatpush1.msra.mxu0 0.0
    %3135 = vmatprep.subr.mxu0 0.0
    %3136 = vmatpush1.msra.mxu0 0.0
    %3137 = vmatprep.subr.mxu0 0.0
    %3138 = vmatpush1.msra.mxu0 0.0
    %3139 = vmatprep.subr.mxu0 0.0
    %3140 = vmatpush1.msra.mxu0 0.0
    %3141 = vmatprep.mubr.f32.mxu0 0.0
    %3142 = vmatmul.mubr.f32.gmra.mrb[0].mxu0 %v3063
    %v3143 = vpop.f32.mrb[0].mxu0
    %v3144 = vadd.f32 0.0, %v3143
    %v3145 = vpop.f32.mrb[0].mxu0
    %v3146 = vadd.f32 0.0, %v3145
    %3147 = vdwg.mxu0
    %3148 = vmatprep.subr.mxu0 %v3075
    %3149 = vmatpush1.msra.mxu0 %v3072
    %3150 = vmatprep.subr.mxu0 0.0
    %3151 = vmatpush1.msra.mxu0 0.0
    %3152 = vmatprep.subr.mxu0 0.0
    %3153 = vmatpush1.msra.mxu0 0.0
    %3154 = vmatprep.subr.mxu0 0.0
    %3155 = vmatpush1.msra.mxu0 0.0
    %3156 = vmatprep.subr.mxu0 0.0
    %3157 = vmatpush1.msra.mxu0 0.0
    %3158 = vmatprep.subr.mxu0 0.0
    %3159 = vmatpush1.msra.mxu0 0.0
    %3160 = vmatprep.subr.mxu0 0.0
    %3161 = vmatpush1.msra.mxu0 0.0
    %3162 = vmatprep.subr.mxu0 0.0
    %3163 = vmatpush1.msra.mxu0 0.0
    %3164 = vmatprep.subr.mxu0 0.0
    %3165 = vmatpush1.msra.mxu0 0.0
    %3166 = vmatprep.subr.mxu0 0.0
    %3167 = vmatpush1.msra.mxu0 0.0
    %3168 = vmatprep.subr.mxu0 0.0
    %3169 = vmatpush1.msra.mxu0 0.0
    %3170 = vmatprep.subr.mxu0 0.0
    %3171 = vmatpush1.msra.mxu0 0.0
    %3172 = vmatprep.subr.mxu0 0.0
    %3173 = vmatpush1.msra.mxu0 0.0
    %3174 = vmatprep.subr.mxu0 0.0
    %3175 = vmatpush1.msra.mxu0 0.0
    %3176 = vmatprep.subr.mxu0 0.0
    %3177 = vmatpush1.msra.mxu0 0.0
    %3178 = vmatprep.subr.mxu0 0.0
    %3179 = vmatpush1.msra.mxu0 0.0
    %3180 = vmatprep.subr.mxu0 0.0
    %3181 = vmatpush1.msra.mxu0 0.0
    %3182 = vmatprep.subr.mxu0 0.0
    %3183 = vmatpush1.msra.mxu0 0.0
    %3184 = vmatprep.subr.mxu0 0.0
    %3185 = vmatpush1.msra.mxu0 0.0
    %3186 = vmatprep.subr.mxu0 0.0
    %3187 = vmatpush1.msra.mxu0 0.0
    %3188 = vmatprep.subr.mxu0 0.0
    %3189 = vmatpush1.msra.mxu0 0.0
    %3190 = vmatprep.subr.mxu0 0.0
    %3191 = vmatpush1.msra.mxu0 0.0
    %3192 = vmatprep.subr.mxu0 0.0
    %3193 = vmatpush1.msra.mxu0 0.0
    %3194 = vmatprep.subr.mxu0 0.0
    %3195 = vmatpush1.msra.mxu0 0.0
    %3196 = vmatprep.subr.mxu0 0.0
    %3197 = vmatpush1.msra.mxu0 0.0
    %3198 = vmatprep.subr.mxu0 0.0
    %3199 = vmatpush1.msra.mxu0 0.0
    %3200 = vmatprep.subr.mxu0 0.0
    %3201 = vmatpush1.msra.mxu0 0.0
    %3202 = vmatprep.subr.mxu0 0.0
    %3203 = vmatpush1.msra.mxu0 0.0
    %3204 = vmatprep.subr.mxu0 0.0
    %3205 = vmatpush1.msra.mxu0 0.0
    %3206 = vmatprep.subr.mxu0 0.0
    %3207 = vmatpush1.msra.mxu0 0.0
    %3208 = vmatprep.subr.mxu0 0.0
    %3209 = vmatpush1.msra.mxu0 0.0
    %3210 = vmatprep.subr.mxu0 0.0
    %3211 = vmatpush1.msra.mxu0 0.0
    %3212 = vmatprep.mubr.f32.mxu0 0.0
    %3213 = vmatmul.mubr.f32.gmra.mrb[0].mxu0 %v3063
    %v3214 = vpop.f32.mrb[0].mxu0
    %v3215 = vadd.f32 0.0, %v3214
    %v3216 = vpop.f32.mrb[0].mxu0
    %v3217 = vadd.f32 0.0, %v3216
    %3218 = vdwg.mxu0
    %v3219 = vadd.f32 %v3036, %v3144
    %v3220 = vadd.f32 %v3037, %v3146
    %v3221 = vadd.f32 %v3038, %v3215
    %v3222 = vadd.f32 %v3039, %v3217
    %3223 = vrot.lane.b32.xlu0 %v1784, 111
    %v3224 = vpop.permute.xlu0 %3223
    %3225 = vrot.lane.b32.xlu0 %v1785, 111
    %v3226 = vpop.permute.xlu0 %3225
    %3227 = vrot.lane.b32.xlu0 %v1786, 111
    %v3228 = vpop.permute.xlu0 %3227
    %3229 = vrot.lane.b32.xlu0 %v1787, 111
    %v3230 = vpop.permute.xlu0 %3229
    %v3231 = vsel %vm1578, %v3224, %v3226
    %v3232 = vsel %vm1578, %v3226, %v3228
    %v3233 = vsel %vm1578, %v3228, %v3230
    %v3238 = vsel %vm1578, %v3230, 0.0
    %v3239 = vsel %vm1595, %v3231, 0.0
    %v3240 = vsel %vm1596, %v3232, 0.0
    %v3241 = vsel %vm1597, %v3233, 0.0
    %v3242 = vsel %vm1598, %v3238, 0.0
    %s3243 = scalar_lea.vmem %s3, 32
    %v3244 = vld [vmem:[%s3243] sm:$0xf]
    %v3246 = vsel %vm127, %v3244, 0
    %v3249 = vsel %vm131, %v3239, 0
    %v3252 = vsel %vm131, %v3240, 0
    %v3255 = vsel %vm131, %v3241, 0
    %v3258 = vsel %vm131, %v3242, 0
    %3260 = vmatprep.subr.mxu0 %v3252
    %3261 = vmatpush1.msra.mxu0 %v3249
    %3262 = vmatprep.subr.mxu0 0.0
    %3263 = vmatpush1.msra.mxu0 0.0
    %3264 = vmatprep.subr.mxu0 0.0
    %3265 = vmatpush1.msra.mxu0 0.0
    %3266 = vmatprep.subr.mxu0 0.0
    %3267 = vmatpush1.msra.mxu0 0.0
    %3268 = vmatprep.subr.mxu0 0.0
    %3269 = vmatpush1.msra.mxu0 0.0
    %3270 = vmatprep.subr.mxu0 0.0
    %3271 = vmatpush1.msra.mxu0 0.0
    %3272 = vmatprep.subr.mxu0 0.0
    %3273 = vmatpush1.msra.mxu0 0.0
    %3274 = vmatprep.subr.mxu0 0.0
    %3275 = vmatpush1.msra.mxu0 0.0
    %3276 = vmatprep.subr.mxu0 0.0
    %3277 = vmatpush1.msra.mxu0 0.0
    %3278 = vmatprep.subr.mxu0 0.0
    %3279 = vmatpush1.msra.mxu0 0.0
    %3280 = vmatprep.subr.mxu0 0.0
    %3281 = vmatpush1.msra.mxu0 0.0
    %3282 = vmatprep.subr.mxu0 0.0
    %3283 = vmatpush1.msra.mxu0 0.0
    %3284 = vmatprep.subr.mxu0 0.0
    %3285 = vmatpush1.msra.mxu0 0.0
    %3286 = vmatprep.subr.mxu0 0.0
    %3287 = vmatpush1.msra.mxu0 0.0
    %3288 = vmatprep.subr.mxu0 0.0
    %3289 = vmatpush1.msra.mxu0 0.0
    %3290 = vmatprep.subr.mxu0 0.0
    %3291 = vmatpush1.msra.mxu0 0.0
    %3292 = vmatprep.subr.mxu0 0.0
    %3293 = vmatpush1.msra.mxu0 0.0
    %3294 = vmatprep.subr.mxu0 0.0
    %3295 = vmatpush1.msra.mxu0 0.0
    %3296 = vmatprep.subr.mxu0 0.0
    %3297 = vmatpush1.msra.mxu0 0.0
    %3298 = vmatprep.subr.mxu0 0.0
    %3299 = vmatpush1.msra.mxu0 0.0
    %3300 = vmatprep.subr.mxu0 0.0
    %3301 = vmatpush1.msra.mxu0 0.0
    %3302 = vmatprep.subr.mxu0 0.0
    %3303 = vmatpush1.msra.mxu0 0.0
    %3304 = vmatprep.subr.mxu0 0.0
    %3305 = vmatpush1.msra.mxu0 0.0
    %3306 = vmatprep.subr.mxu0 0.0
    %3307 = vmatpush1.msra.mxu0 0.0
    %3308 = vmatprep.subr.mxu0 0.0
    %3309 = vmatpush1.msra.mxu0 0.0
    %3310 = vmatprep.subr.mxu0 0.0
    %3311 = vmatpush1.msra.mxu0 0.0
    %3312 = vmatprep.subr.mxu0 0.0
    %3313 = vmatpush1.msra.mxu0 0.0
    %3314 = vmatprep.subr.mxu0 0.0
    %3315 = vmatpush1.msra.mxu0 0.0
    %3316 = vmatprep.subr.mxu0 0.0
    %3317 = vmatpush1.msra.mxu0 0.0
    %3318 = vmatprep.subr.mxu0 0.0
    %3319 = vmatpush1.msra.mxu0 0.0
    %3320 = vmatprep.subr.mxu0 0.0
    %3321 = vmatpush1.msra.mxu0 0.0
    %3322 = vmatprep.subr.mxu0 0.0
    %3323 = vmatpush1.msra.mxu0 0.0
    %3324 = vmatprep.mubr.f32.mxu0 0.0
    %3325 = vmatmul.mubr.f32.gmra.mrb[0].mxu0 %v3246
    %v3326 = vpop.f32.mrb[0].mxu0
    %v3327 = vadd.f32 0.0, %v3326
    %v3328 = vpop.f32.mrb[0].mxu0
    %v3329 = vadd.f32 0.0, %v3328
    %3330 = vdwg.mxu0
    %3331 = vmatprep.subr.mxu0 %v3258
    %3332 = vmatpush1.msra.mxu0 %v3255
    %3333 = vmatprep.subr.mxu0 0.0
    %3334 = vmatpush1.msra.mxu0 0.0
    %3335 = vmatprep.subr.mxu0 0.0
    %3336 = vmatpush1.msra.mxu0 0.0
    %3337 = vmatprep.subr.mxu0 0.0
    %3338 = vmatpush1.msra.mxu0 0.0
    %3339 = vmatprep.subr.mxu0 0.0
    %3340 = vmatpush1.msra.mxu0 0.0
    %3341 = vmatprep.subr.mxu0 0.0
    %3342 = vmatpush1.msra.mxu0 0.0
    %3343 = vmatprep.subr.mxu0 0.0
    %3344 = vmatpush1.msra.mxu0 0.0
    %3345 = vmatprep.subr.mxu0 0.0
    %3346 = vmatpush1.msra.mxu0 0.0
    %3347 = vmatprep.subr.mxu0 0.0
    %3348 = vmatpush1.msra.mxu0 0.0
    %3349 = vmatprep.subr.mxu0 0.0
    %3350 = vmatpush1.msra.mxu0 0.0
    %3351 = vmatprep.subr.mxu0 0.0
    %3352 = vmatpush1.msra.mxu0 0.0
    %3353 = vmatprep.subr.mxu0 0.0
    %3354 = vmatpush1.msra.mxu0 0.0
    %3355 = vmatprep.subr.mxu0 0.0
    %3356 = vmatpush1.msra.mxu0 0.0
    %3357 = vmatprep.subr.mxu0 0.0
    %3358 = vmatpush1.msra.mxu0 0.0
    %3359 = vmatprep.subr.mxu0 0.0
    %3360 = vmatpush1.msra.mxu0 0.0
    %3361 = vmatprep.subr.mxu0 0.0
    %3362 = vmatpush1.msra.mxu0 0.0
    %3363 = vmatprep.subr.mxu0 0.0
    %3364 = vmatpush1.msra.mxu0 0.0
    %3365 = vmatprep.subr.mxu0 0.0
    %3366 = vmatpush1.msra.mxu0 0.0
    %3367 = vmatprep.subr.mxu0 0.0
    %3368 = vmatpush1.msra.mxu0 0.0
    %3369 = vmatprep.subr.mxu0 0.0
    %3370 = vmatpush1.msra.mxu0 0.0
    %3371 = vmatprep.subr.mxu0 0.0
    %3372 = vmatpush1.msra.mxu0 0.0
    %3373 = vmatprep.subr.mxu0 0.0
    %3374 = vmatpush1.msra.mxu0 0.0
    %3375 = vmatprep.subr.mxu0 0.0
    %3376 = vmatpush1.msra.mxu0 0.0
    %3377 = vmatprep.subr.mxu0 0.0
    %3378 = vmatpush1.msra.mxu0 0.0
    %3379 = vmatprep.subr.mxu0 0.0
    %3380 = vmatpush1.msra.mxu0 0.0
    %3381 = vmatprep.subr.mxu0 0.0
    %3382 = vmatpush1.msra.mxu0 0.0
    %3383 = vmatprep.subr.mxu0 0.0
    %3384 = vmatpush1.msra.mxu0 0.0
    %3385 = vmatprep.subr.mxu0 0.0
    %3386 = vmatpush1.msra.mxu0 0.0
    %3387 = vmatprep.subr.mxu0 0.0
    %3388 = vmatpush1.msra.mxu0 0.0
    %3389 = vmatprep.subr.mxu0 0.0
    %3390 = vmatpush1.msra.mxu0 0.0
    %3391 = vmatprep.subr.mxu0 0.0
    %3392 = vmatpush1.msra.mxu0 0.0
    %3393 = vmatprep.subr.mxu0 0.0
    %3394 = vmatpush1.msra.mxu0 0.0
    %3395 = vmatprep.mubr.f32.mxu0 0.0
    %3396 = vmatmul.mubr.f32.gmra.mrb[0].mxu0 %v3246
    %v3397 = vpop.f32.mrb[0].mxu0
    %v3398 = vadd.f32 0.0, %v3397
    %v3399 = vpop.f32.mrb[0].mxu0
    %v3400 = vadd.f32 0.0, %v3399
    %3401 = vdwg.mxu0
    %v3402 = vadd.f32 %v3219, %v3327
    %v3403 = vadd.f32 %v3220, %v3329
    %v3404 = vadd.f32 %v3221, %v3398
    %v3405 = vadd.f32 %v3222, %v3400
    %v3406 = vld [vmem:[%s4] sm:$0xf]
    %3408 = vset.pattern.permute.xlu0 0
    %3409 = vperm.xlu0 %3408, %v3406
    %v3410 = vpop.permute.xlu0 %3409
    %v3412 = vadd.f32 %v3402, %v3410
    %v3413 = vadd.f32 %v3403, %v3410
    %v3414 = vadd.f32 %v3404, %v3410
    %v3415 = vadd.f32 %v3405, %v3410
    %v3416 = vadd.f32 %v3412, %v21
    %v3417 = vadd.f32 %v3413, %v24
    %v3418 = vadd.f32 %v3414, %v22
    %v3419 = vadd.f32 %v3415, %v27
    %v3422 = vcombine.low %v3416, %v3417
    %3424 = vst [vmem:[#allocation2] sm:$0xff] %v3422
    %v3427 = vcombine.low %v3418, %v3419
    %s3429 = scalar_lea.vmem [#allocation2], 8
    %3430 = vst [vmem:[%s3429] sm:$0xff] %v3427
    // Predicated region
    $region22: #{tpu_custom_call.1} parent=1 // pred_check
      _
    $region23: #{tpu_custom_call.1} parent=1 // pred_check_branch
      %3432 = sbr.rel (0) target = $region25
    $region24: #{tpu_custom_call.1} parent=1 // pred_region
      %s3434 = ssub.s32 256, 256
      %3435 = vsyncadd [#allocation3], %s3434
      %s3436 = sshll.u32 [#allocation2], 4
      %s3437 = int_to_ptr.vmem [resolvable:$true] %s3436
      %3442 = dma.vmem_to_hbm [thread:$0]  %s3437, 256, %s5, [#allocation3], 128, 128, 8
    $region25: #{tpu_custom_call.1} parent=1 // pred_fallthru
      _
    // Predicated region
    $region26: #{tpu_custom_call.1} parent=1 // pred_check
      _
    $region27: #{tpu_custom_call.1} parent=1 // pred_check_branch
      %3444 = sbr.rel (0) target = $region29
    $region28: #{tpu_custom_call.1} parent=1 // pred_region
      %3445 = dma.done [#allocation3], 256
    $region29: #{tpu_custom_call.1} parent=1 // pred_fallthru
      _
    %3446 = vsyncpa [#allocation3], 1

</llo_original>
